<compile_context>
chip_gen: v7x
topology: tpu7x:2x2x1
jax: 0.10.0
libtpu: 0.0.40
codegen_flags: <defaults>
</compile_context>

<pallas_src>
import functools

import jax
import jax.numpy as jnp
import numpy as np
from jax.experimental import pallas as pl
from jax.experimental.pallas import tpu as pltpu


def _const_spec(shape):
    """BlockSpec covering the full array; same (resident) block for every grid step."""
    n = len(shape)
    return pl.BlockSpec(shape, lambda i, _n=n: (0,) * _n)


def _maxpool2x2(y, tb, h, w, c):
    """2x2 / stride-2 max pool on flattened activations.

    y: (tb*h*w, c) with rows in (b, h, w) order.  Returns (tb, h//2, w//2, c).
    Uses only lane-preserving reshapes, static slices and jnp.maximum (VPU) —
    no scratch round trip, no strided gathers.
    """
    y = y.reshape(tb * (h // 2), 2, w, c)
    y = jnp.maximum(y[:, 0], y[:, 1])                 # pool over row pairs
    y = y.reshape(tb * (h // 2) * (w // 2), 2, c)
    y = jnp.maximum(y[:, 0], y[:, 1])                 # pool over column pairs
    return y.reshape(tb, h // 2, w // 2, c)


# ----------------------------------------------------------------------------
# Fused kernel: conv1 + pool1 + conv2 + pool2 + fc1 + ReLU + fc2 + sigmoid
# ----------------------------------------------------------------------------
def eegcnn_fused_kernel(p1_ref, w1_ref, b1_ref, w2_ref, b2_ref,
                        wf1_ref, bf1_ref, wf2_ref, bf2_ref,
                        out_ref, pad_sc, *, h, w):
    # p1_ref : (tb, h*w, 9*cin)  bf16   wrapper-built im2col patches for conv1
    # w1_ref : (9*cin, c1)       bf16   conv1 taps (kh, kw, cin) row order
    # b1_ref : (1, c1)           f32
    # w2_ref : (9*c1, c2)        bf16   conv2 taps (kh, kw, c1) row order
    # b2_ref : (1, c2)           f32
    # wf1_ref: (h2*w2*c2, n_fc)  bf16   rows pre-permuted to NHWC flatten order
    # bf1_ref: (1, n_fc)         f32
    # wf2_ref: (1, n_fc)         f32    fc2 weight used as a VPU broadcast factor
    # bf2_ref: (1, 1)            f32
    # out_ref: (1, tb, 1)        f32
    # pad_sc : (tb, h//2+2, w//2+2, c1) bf16  zero-padded conv2 input staging
    tb = p1_ref.shape[0]
    k1 = p1_ref.shape[2]
    c1 = w1_ref.shape[1]
    c2 = w2_ref.shape[1]
    ph, pw = h // 2, w // 2          # spatial dims after pool1
    ph2, pw2 = ph // 2, pw // 2      # spatial dims after pool2

    # ---- conv1: single MXU matmul on im2col patches + bias + ReLU -----------
    a1 = jnp.dot(p1_ref[...].reshape(tb * h * w, k1), w1_ref[...],
                 preferred_element_type=jnp.float32)
    a1 = jnp.maximum(a1 + b1_ref[...], 0.0)                      # (tb*h*w, c1)

    # ---- pool1 (2x2, stride 2) on in-register activations --------------------
    y1 = _maxpool2x2(a1, tb, h, w, c1)                           # (tb, ph, pw, c1)

    # ---- zero-pad pooled activations into VMEM scratch ('same' conv2) --------
    pad_sc[...] = jnp.zeros_like(pad_sc)
    pad_sc[:, 1:ph + 1, 1:pw + 1, :] = y1.astype(pad_sc.dtype)
    xp = pad_sc[...]                                             # (tb, ph+2, pw+2, c1) bf16

    # ---- conv2: in-kernel im2col (lane concat) -> single K=9*c1 matmul -------
    cols = jnp.concatenate(
        [xp[:, kh:kh + ph, kw:kw + pw, :].reshape(tb * ph * pw, c1)
         for kh in range(3) for kw in range(3)], axis=-1)        # (tb*ph*pw, 9*c1)
    a2 = jnp.dot(cols, w2_ref[...], preferred_element_type=jnp.float32)
    a2 = jnp.maximum(a2 + b2_ref[...], 0.0)                      # (tb*ph*pw, c2)

    # ---- pool2 ----------------------------------------------------------------
    y2 = _maxpool2x2(a2, tb, ph, pw, c2)                         # (tb, ph2, pw2, c2)

    # ---- flatten in (h, w, c) order (fc1 rows were pre-permuted to match) -----
    y2r = y2.reshape(tb, ph2 * pw2, c2)
    flat = jnp.concatenate([y2r[:, p, :] for p in range(ph2 * pw2)],
                           axis=-1).astype(jnp.bfloat16)         # (tb, ph2*pw2*c2)

    # ---- fc1 + ReLU ------------------------------------------------------------
    hfc = jnp.dot(flat, wf1_ref[...], preferred_element_type=jnp.float32)
    hfc = jnp.maximum(hfc + bf1_ref[...], 0.0)                   # (tb, n_fc) f32
    # (dropout = identity in inference)

    # ---- fc2 (N=1) as VPU lane reduction + sigmoid (EUP) -----------------------
    z = jnp.sum(hfc * wf2_ref[...], axis=-1, keepdims=True) + bf2_ref[...]   # (tb, 1)
    out_ref[...] = jax.nn.sigmoid(z).reshape(out_ref.shape)


# ----------------------------------------------------------------------------
# Wrapper: wrapper-side im2col for conv1, single fused pallas_call
# ----------------------------------------------------------------------------
def eegcnn_forward(x_nchw, params, *, tb=1):
    B, Cin, H, W = x_nchw.shape
    assert B % tb == 0, "batch must be divisible by batch-tile size"
    G = B // tb

    w1, b1 = params["conv1_w"], params["conv1_b"]
    w2, b2 = params["conv2_w"], params["conv2_b"]
    wf1, bf1 = params["fc1_w"], params["fc1_b"]
    wf2, bf2 = params["fc2_w"], params["fc2_b"]
    C1 = w1.shape[1]

    # NCHW -> NHWC (channels on lanes), bf16 operands, conv1 im2col built by XLA.
    x = jnp.transpose(x_nchw, (0, 2, 3, 1)).astype(jnp.bfloat16)
    xp = jnp.pad(x, ((0, 0), (1, 1), (1, 1), (0, 0)))
    taps = [xp[:, kh:kh + H, kw:kw + W, :] for kh in range(3) for kw in range(3)]
    patches = jnp.concatenate(taps, axis=-1).reshape(B, H * W, 9 * Cin)

    out = pl.pallas_call(
        functools.partial(eegcnn_fused_kernel, h=H, w=W),
        out_shape=jax.ShapeDtypeStruct((G, tb, 1), jnp.float32),
        grid=(G,),
        in_specs=[
            pl.BlockSpec((tb, H * W, 9 * Cin), lambda i: (i, 0, 0)),
            _const_spec(w1.shape), _const_spec(b1.shape),
            _const_spec(w2.shape), _const_spec(b2.shape),
            _const_spec(wf1.shape), _const_spec(bf1.shape),
            _const_spec(wf2.shape), _const_spec(bf2.shape),
        ],
        out_specs=pl.BlockSpec((1, tb, 1), lambda i: (i, 0, 0)),
        scratch_shapes=[pltpu.VMEM((tb, H // 2 + 2, W // 2 + 2, C1), jnp.bfloat16)],
        compiler_params=pltpu.CompilerParams(
            dimension_semantics=("parallel",)),   # batch-tile axis -> both TCs on v7x
    )(patches, w1, b1, w2, b2, wf1, bf1, wf2, bf2)
    return out.reshape(B, 1)


# ----------------------------------------------------------------------------
# Pure-JAX (f32) reference for correctness check
# ----------------------------------------------------------------------------
def ref_forward(x_nchw, raw):
    def block(x, w_oihw, b):
        y = jax.lax.conv_general_dilated(
            x, w_oihw, window_strides=(1, 1), padding="SAME",
            dimension_numbers=("NCHW", "OIHW", "NCHW"))
        y = jax.nn.relu(y + b[None, :, None, None])
        return jax.lax.reduce_window(y, -jnp.inf, jax.lax.max,
                                     (1, 1, 2, 2), (1, 1, 2, 2), "VALID")

    x = block(x_nchw, raw["conv1_w"], raw["conv1_b"])
    x = block(x, raw["conv2_w"], raw["conv2_b"])
    flat = x.reshape(x.shape[0], -1)
    h = jax.nn.relu(flat @ raw["fc1_w"].T + raw["fc1_b"])
    return jax.nn.sigmoid(h @ raw["fc2_w"].T + raw["fc2_b"])


# ----------------------------------------------------------------------------
# Deterministic parameters: PyTorch layouts (raw) + kernel layouts (params)
# ----------------------------------------------------------------------------
def make_params(key, in_ch, h2, w2, n_f1=32, n_f2=64, n_fc=128):
    flat_size = n_f2 * h2 * w2
    ks = jax.random.split(key, 8)
    raw = {
        "conv1_w": 0.1 * jax.random.normal(ks[0], (n_f1, in_ch, 3, 3), jnp.float32),
        "conv1_b": 0.05 * jax.random.normal(ks[1], (n_f1,), jnp.float32),
        "conv2_w": 0.1 * jax.random.normal(ks[2], (n_f2, n_f1, 3, 3), jnp.float32),
        "conv2_b": 0.05 * jax.random.normal(ks[3], (n_f2,), jnp.float32),
        "fc1_w": 0.05 * jax.random.normal(ks[4], (n_fc, flat_size), jnp.float32),
        "fc1_b": 0.05 * jax.random.normal(ks[5], (n_fc,), jnp.float32),
        "fc2_w": 0.05 * jax.random.normal(ks[6], (1, n_fc), jnp.float32),
        "fc2_b": 0.05 * jax.random.normal(ks[7], (1,), jnp.float32),
    }

    def tap_matrix(w_oihw):
        o, i, kh, kw = w_oihw.shape
        # (O, I, kh, kw) -> (kh, kw, I, O) -> (kh*kw*I, O): matches im2col column order
        return jnp.transpose(w_oihw, (2, 3, 1, 0)).reshape(kh * kw * i, o)

    # fc1 rows: torch flattens NCHW as (c, h, w); kernel flattens NHWC as (h, w, c).
    fc1_rows = raw["fc1_w"].T.reshape(n_f2, h2, w2, n_fc)          # (c, h, w, n_fc)
    fc1_rows = jnp.transpose(fc1_rows, (1, 2, 0, 3)).reshape(flat_size, n_fc)

    params = {
        "conv1_w": tap_matrix(raw["conv1_w"]).astype(jnp.bfloat16),   # (9*in_ch, n_f1)
        "conv1_b": raw["conv1_b"].reshape(1, n_f1),
        "conv2_w": tap_matrix(raw["conv2_w"]).astype(jnp.bfloat16),   # (9*n_f1, n_f2)
        "conv2_b": raw["conv2_b"].reshape(1, n_f2),
        "fc1_w": fc1_rows.astype(jnp.bfloat16),                       # (flat, n_fc) NHWC order
        "fc1_b": raw["fc1_b"].reshape(1, n_fc),
        "fc2_w": raw["fc2_w"].reshape(1, n_fc),                       # f32 (VPU reduction)
        "fc2_b": raw["fc2_b"].reshape(1, 1),
    }
    return raw, params


if __name__ == "__main__":
    # 2-D branch, small shapes: input_shape = (C=4, H=16, W=16), batch 2.
    B, C, H, W = 2, 4, 16, 16
    n_f1, n_f2, n_fc = 32, 64, 128
    H2, W2 = H // 4, W // 4

    key = jax.random.PRNGKey(0)
    kx, kp = jax.random.split(key)
    x = jax.random.normal(kx, (B, C, H, W), jnp.float32)
    raw, params = make_params(kp, in_ch=C, h2=H2, w2=W2, n_f1=n_f1, n_f2=n_f2, n_fc=n_fc)

    fwd = jax.jit(functools.partial(eegcnn_forward, tb=1))   # tb=1 -> grid=(2,) parallel
    out = jax.block_until_ready(fwd(x, params))
    assert out.shape == (B, 1), out.shape

    ref = ref_forward(x, raw)
    # Kernel runs the matmuls with bf16 operands (f32 accumulation); compare against
    # the pure-f32 reference with a tolerance that covers bf16 input quantization.
    np.testing.assert_allclose(np.asarray(out), np.asarray(ref), rtol=2e-2, atol=1e-2)

    print("KERNEL_OK")
</pallas_src>

<mosaic_0001>
module attributes {stable_mosaic.version = 11 : i64} {
  func.func @eegcnn_fused_kernel(%arg0: i32, %arg1: memref<1x256x36xbf16, #tpu.memory_space<vmem>>, %arg2: memref<36x32xbf16, #tpu.memory_space<vmem>>, %arg3: memref<1x32xf32, #tpu.memory_space<vmem>>, %arg4: memref<288x64xbf16, #tpu.memory_space<vmem>>, %arg5: memref<1x64xf32, #tpu.memory_space<vmem>>, %arg6: memref<1024x128xbf16, #tpu.memory_space<vmem>>, %arg7: memref<1x128xf32, #tpu.memory_space<vmem>>, %arg8: memref<1x128xf32, #tpu.memory_space<vmem>>, %arg9: memref<1x1xf32, #tpu.memory_space<vmem>>, %arg10: memref<1x1x1xf32, #tpu.memory_space<vmem>>, %arg11: memref<1x10x10x32xbf16, #tpu.memory_space<vmem>>) attributes {dimension_semantics = [#tpu.dimension_semantics<parallel>], iteration_bounds = array<i64: 2>, scalar_prefetch = 0 : i64, scratch_operands = 1 : i64, tpu.core_type = #tpu.core_type<tc>, window_params = [{transform_indices = @transform_0, window_bounds = array<i64: 1, 256, 36>}, {pipeline_mode = #tpu.pipeline_mode<synchronous>, transform_indices = @transform_1, window_bounds = array<i64: 36, 32>}, {pipeline_mode = #tpu.pipeline_mode<synchronous>, transform_indices = @transform_2, window_bounds = array<i64: 1, 32>}, {pipeline_mode = #tpu.pipeline_mode<synchronous>, transform_indices = @transform_3, window_bounds = array<i64: 288, 64>}, {pipeline_mode = #tpu.pipeline_mode<synchronous>, transform_indices = @transform_4, window_bounds = array<i64: 1, 64>}, {pipeline_mode = #tpu.pipeline_mode<synchronous>, transform_indices = @transform_5, window_bounds = array<i64: 1024, 128>}, {pipeline_mode = #tpu.pipeline_mode<synchronous>, transform_indices = @transform_6, window_bounds = array<i64: 1, 128>}, {pipeline_mode = #tpu.pipeline_mode<synchronous>, transform_indices = @transform_7, window_bounds = array<i64: 1, 128>}, {pipeline_mode = #tpu.pipeline_mode<synchronous>, transform_indices = @transform_8, window_bounds = array<i64: 1, 1>}, {transform_indices = @transform_9, window_bounds = array<i64: 1, 1, 1>}]} {
    %c0 = arith.constant 0 : index
    %c0_0 = arith.constant 0 : index
    %c0_1 = arith.constant 0 : index
    %0 = vector.load %arg1[%c0, %c0_0, %c0_1] : memref<1x256x36xbf16, #tpu.memory_space<vmem>>, vector<1x256x36xbf16>
    %1 = vector.shape_cast %0 : vector<1x256x36xbf16> to vector<256x36xbf16>
    %c0_2 = arith.constant 0 : index
    %c0_3 = arith.constant 0 : index
    %2 = vector.load %arg2[%c0_2, %c0_3] : memref<36x32xbf16, #tpu.memory_space<vmem>>, vector<36x32xbf16>
    %cst = arith.constant dense<0.000000e+00> : vector<256x32xf32>
    %3 = tpu.matmul %1, %2, %cst {dimension_numbers = #tpu.dot_dimension_numbers<[1], [0], [0], [1], [0, 0, 1, 1], [], []>} : vector<256x36xbf16>, vector<36x32xbf16>, vector<256x32xf32> -> vector<256x32xf32>
    %c0_4 = arith.constant 0 : index
    %c0_5 = arith.constant 0 : index
    %4 = vector.load %arg3[%c0_4, %c0_5] : memref<1x32xf32, #tpu.memory_space<vmem>>, vector<1x32xf32>
    %5 = vector.broadcast %4 : vector<1x32xf32> to vector<256x32xf32>
    %6 = arith.addf %3, %5 : vector<256x32xf32>
    %cst_6 = arith.constant 0.000000e+00 : f32
    %7 = vector.broadcast %cst_6 : f32 to vector<256x32xf32>
    %8 = arith.maximumf %6, %7 : vector<256x32xf32>
    %9 = vector.shape_cast %8 : vector<256x32xf32> to vector<8x2x16x32xf32>
    %10 = vector.extract_strided_slice %9 {offsets = [0, 0, 0, 0], sizes = [8, 1, 16, 32], strides = [1, 1, 1, 1]} : vector<8x2x16x32xf32> to vector<8x1x16x32xf32>
    %11 = vector.shape_cast %10 : vector<8x1x16x32xf32> to vector<8x16x32xf32>
    %12 = vector.extract_strided_slice %9 {offsets = [0, 1, 0, 0], sizes = [8, 1, 16, 32], strides = [1, 1, 1, 1]} : vector<8x2x16x32xf32> to vector<8x1x16x32xf32>
    %13 = vector.shape_cast %12 : vector<8x1x16x32xf32> to vector<8x16x32xf32>
    %14 = arith.maximumf %11, %13 : vector<8x16x32xf32>
    %15 = vector.shape_cast %14 : vector<8x16x32xf32> to vector<64x2x32xf32>
    %16 = vector.extract_strided_slice %15 {offsets = [0, 0, 0], sizes = [64, 1, 32], strides = [1, 1, 1]} : vector<64x2x32xf32> to vector<64x1x32xf32>
    %17 = vector.shape_cast %16 : vector<64x1x32xf32> to vector<64x32xf32>
    %18 = vector.extract_strided_slice %15 {offsets = [0, 1, 0], sizes = [64, 1, 32], strides = [1, 1, 1]} : vector<64x2x32xf32> to vector<64x1x32xf32>
    %19 = vector.shape_cast %18 : vector<64x1x32xf32> to vector<64x32xf32>
    %20 = arith.maximumf %17, %19 : vector<64x32xf32>
    %21 = vector.shape_cast %20 : vector<64x32xf32> to vector<1x8x8x32xf32>
    %cst_7 = arith.constant 0.000000e+00 : bf16
    %22 = vector.broadcast %cst_7 : bf16 to vector<1x10x10x32xbf16>
    %c0_8 = arith.constant 0 : index
    %c0_9 = arith.constant 0 : index
    %c0_10 = arith.constant 0 : index
    %c0_11 = arith.constant 0 : index
    %23 = vector.load %arg11[%c0_8, %c0_9, %c0_10, %c0_11] : memref<1x10x10x32xbf16, #tpu.memory_space<vmem>>, vector<1x10x10x32xbf16>
    tpu.vector_store %arg11[%c0_8, %c0_9, %c0_10, %c0_11], %22 {strides = array<i32>} : memref<1x10x10x32xbf16, #tpu.memory_space<vmem>>, vector<1x10x10x32xbf16>,
    %24 = arith.truncf %21 : vector<1x8x8x32xf32> to vector<1x8x8x32xbf16>
    %c0_12 = arith.constant 0 : index
    %c1 = arith.constant 1 : index
    %c1_13 = arith.constant 1 : index
    %c0_14 = arith.constant 0 : index
    %25 = vector.load %arg11[%c0_12, %c1, %c1_13, %c0_14] : memref<1x10x10x32xbf16, #tpu.memory_space<vmem>>, vector<1x8x8x32xbf16>
    tpu.vector_store %arg11[%c0_12, %c1, %c1_13, %c0_14], %24 {strides = array<i32>} : memref<1x10x10x32xbf16, #tpu.memory_space<vmem>>, vector<1x8x8x32xbf16>,
    %c0_15 = arith.constant 0 : index
    %c0_16 = arith.constant 0 : index
    %c0_17 = arith.constant 0 : index
    %c0_18 = arith.constant 0 : index
    %26 = vector.load %arg11[%c0_15, %c0_16, %c0_17, %c0_18] : memref<1x10x10x32xbf16, #tpu.memory_space<vmem>>, vector<1x10x10x32xbf16>
    %27 = vector.extract_strided_slice %26 {offsets = [0, 0, 0, 0], sizes = [1, 8, 8, 32], strides = [1, 1, 1, 1]} : vector<1x10x10x32xbf16> to vector<1x8x8x32xbf16>
    %28 = vector.shape_cast %27 : vector<1x8x8x32xbf16> to vector<64x32xbf16>
    %29 = vector.extract_strided_slice %26 {offsets = [0, 0, 1, 0], sizes = [1, 8, 8, 32], strides = [1, 1, 1, 1]} : vector<1x10x10x32xbf16> to vector<1x8x8x32xbf16>
    %30 = vector.shape_cast %29 : vector<1x8x8x32xbf16> to vector<64x32xbf16>
    %31 = vector.extract_strided_slice %26 {offsets = [0, 0, 2, 0], sizes = [1, 8, 8, 32], strides = [1, 1, 1, 1]} : vector<1x10x10x32xbf16> to vector<1x8x8x32xbf16>
    %32 = vector.shape_cast %31 : vector<1x8x8x32xbf16> to vector<64x32xbf16>
    %33 = vector.extract_strided_slice %26 {offsets = [0, 1, 0, 0], sizes = [1, 8, 8, 32], strides = [1, 1, 1, 1]} : vector<1x10x10x32xbf16> to vector<1x8x8x32xbf16>
    %34 = vector.shape_cast %33 : vector<1x8x8x32xbf16> to vector<64x32xbf16>
    %35 = vector.extract_strided_slice %26 {offsets = [0, 1, 1, 0], sizes = [1, 8, 8, 32], strides = [1, 1, 1, 1]} : vector<1x10x10x32xbf16> to vector<1x8x8x32xbf16>
    %36 = vector.shape_cast %35 : vector<1x8x8x32xbf16> to vector<64x32xbf16>
    %37 = vector.extract_strided_slice %26 {offsets = [0, 1, 2, 0], sizes = [1, 8, 8, 32], strides = [1, 1, 1, 1]} : vector<1x10x10x32xbf16> to vector<1x8x8x32xbf16>
    %38 = vector.shape_cast %37 : vector<1x8x8x32xbf16> to vector<64x32xbf16>
    %39 = vector.extract_strided_slice %26 {offsets = [0, 2, 0, 0], sizes = [1, 8, 8, 32], strides = [1, 1, 1, 1]} : vector<1x10x10x32xbf16> to vector<1x8x8x32xbf16>
    %40 = vector.shape_cast %39 : vector<1x8x8x32xbf16> to vector<64x32xbf16>
    %41 = vector.extract_strided_slice %26 {offsets = [0, 2, 1, 0], sizes = [1, 8, 8, 32], strides = [1, 1, 1, 1]} : vector<1x10x10x32xbf16> to vector<1x8x8x32xbf16>
    %42 = vector.shape_cast %41 : vector<1x8x8x32xbf16> to vector<64x32xbf16>
    %43 = vector.extract_strided_slice %26 {offsets = [0, 2, 2, 0], sizes = [1, 8, 8, 32], strides = [1, 1, 1, 1]} : vector<1x10x10x32xbf16> to vector<1x8x8x32xbf16>
    %44 = vector.shape_cast %43 : vector<1x8x8x32xbf16> to vector<64x32xbf16>
    %45 = tpu.concatenate %28, %30, %32, %34, %36, %38, %40, %42, %44 in 1 : vector<64x32xbf16>, vector<64x32xbf16>, vector<64x32xbf16>, vector<64x32xbf16>, vector<64x32xbf16>, vector<64x32xbf16>, vector<64x32xbf16>, vector<64x32xbf16>, vector<64x32xbf16> -> vector<64x288xbf16>
    %c0_19 = arith.constant 0 : index
    %c0_20 = arith.constant 0 : index
    %46 = vector.load %arg4[%c0_19, %c0_20] : memref<288x64xbf16, #tpu.memory_space<vmem>>, vector<288x64xbf16>
    %cst_21 = arith.constant dense<0.000000e+00> : vector<64x64xf32>
    %47 = tpu.matmul %45, %46, %cst_21 {dimension_numbers = #tpu.dot_dimension_numbers<[1], [0], [0], [1], [0, 0, 1, 1], [], []>} : vector<64x288xbf16>, vector<288x64xbf16>, vector<64x64xf32> -> vector<64x64xf32>
    %c0_22 = arith.constant 0 : index
    %c0_23 = arith.constant 0 : index
    %48 = vector.load %arg5[%c0_22, %c0_23] : memref<1x64xf32, #tpu.memory_space<vmem>>, vector<1x64xf32>
    %49 = vector.broadcast %48 : vector<1x64xf32> to vector<64x64xf32>
    %50 = arith.addf %47, %49 : vector<64x64xf32>
    %cst_24 = arith.constant 0.000000e+00 : f32
    %51 = vector.broadcast %cst_24 : f32 to vector<64x64xf32>
    %52 = arith.maximumf %50, %51 : vector<64x64xf32>
    %53 = vector.shape_cast %52 : vector<64x64xf32> to vector<4x2x8x64xf32>
    %54 = vector.extract_strided_slice %53 {offsets = [0, 0, 0, 0], sizes = [4, 1, 8, 64], strides = [1, 1, 1, 1]} : vector<4x2x8x64xf32> to vector<4x1x8x64xf32>
    %55 = vector.shape_cast %54 : vector<4x1x8x64xf32> to vector<4x8x64xf32>
    %56 = vector.extract_strided_slice %53 {offsets = [0, 1, 0, 0], sizes = [4, 1, 8, 64], strides = [1, 1, 1, 1]} : vector<4x2x8x64xf32> to vector<4x1x8x64xf32>
    %57 = vector.shape_cast %56 : vector<4x1x8x64xf32> to vector<4x8x64xf32>
    %58 = arith.maximumf %55, %57 : vector<4x8x64xf32>
    %59 = vector.shape_cast %58 : vector<4x8x64xf32> to vector<16x2x64xf32>
    %60 = vector.extract_strided_slice %59 {offsets = [0, 0, 0], sizes = [16, 1, 64], strides = [1, 1, 1]} : vector<16x2x64xf32> to vector<16x1x64xf32>
    %61 = vector.shape_cast %60 : vector<16x1x64xf32> to vector<16x64xf32>
    %62 = vector.extract_strided_slice %59 {offsets = [0, 1, 0], sizes = [16, 1, 64], strides = [1, 1, 1]} : vector<16x2x64xf32> to vector<16x1x64xf32>
    %63 = vector.shape_cast %62 : vector<16x1x64xf32> to vector<16x64xf32>
    %64 = arith.maximumf %61, %63 : vector<16x64xf32>
    %65 = vector.shape_cast %64 : vector<16x64xf32> to vector<1x4x4x64xf32>
    %66 = vector.shape_cast %65 : vector<1x4x4x64xf32> to vector<1x16x64xf32>
    %67 = vector.extract_strided_slice %66 {offsets = [0, 0, 0], sizes = [1, 1, 64], strides = [1, 1, 1]} : vector<1x16x64xf32> to vector<1x1x64xf32>
    %68 = vector.shape_cast %67 : vector<1x1x64xf32> to vector<1x64xf32>
    %69 = vector.extract_strided_slice %66 {offsets = [0, 1, 0], sizes = [1, 1, 64], strides = [1, 1, 1]} : vector<1x16x64xf32> to vector<1x1x64xf32>
    %70 = vector.shape_cast %69 : vector<1x1x64xf32> to vector<1x64xf32>
    %71 = vector.extract_strided_slice %66 {offsets = [0, 2, 0], sizes = [1, 1, 64], strides = [1, 1, 1]} : vector<1x16x64xf32> to vector<1x1x64xf32>
    %72 = vector.shape_cast %71 : vector<1x1x64xf32> to vector<1x64xf32>
    %73 = vector.extract_strided_slice %66 {offsets = [0, 3, 0], sizes = [1, 1, 64], strides = [1, 1, 1]} : vector<1x16x64xf32> to vector<1x1x64xf32>
    %74 = vector.shape_cast %73 : vector<1x1x64xf32> to vector<1x64xf32>
    %75 = vector.extract_strided_slice %66 {offsets = [0, 4, 0], sizes = [1, 1, 64], strides = [1, 1, 1]} : vector<1x16x64xf32> to vector<1x1x64xf32>
    %76 = vector.shape_cast %75 : vector<1x1x64xf32> to vector<1x64xf32>
    %77 = vector.extract_strided_slice %66 {offsets = [0, 5, 0], sizes = [1, 1, 64], strides = [1, 1, 1]} : vector<1x16x64xf32> to vector<1x1x64xf32>
    %78 = vector.shape_cast %77 : vector<1x1x64xf32> to vector<1x64xf32>
    %79 = vector.extract_strided_slice %66 {offsets = [0, 6, 0], sizes = [1, 1, 64], strides = [1, 1, 1]} : vector<1x16x64xf32> to vector<1x1x64xf32>
    %80 = vector.shape_cast %79 : vector<1x1x64xf32> to vector<1x64xf32>
    %81 = vector.extract_strided_slice %66 {offsets = [0, 7, 0], sizes = [1, 1, 64], strides = [1, 1, 1]} : vector<1x16x64xf32> to vector<1x1x64xf32>
    %82 = vector.shape_cast %81 : vector<1x1x64xf32> to vector<1x64xf32>
    %83 = vector.extract_strided_slice %66 {offsets = [0, 8, 0], sizes = [1, 1, 64], strides = [1, 1, 1]} : vector<1x16x64xf32> to vector<1x1x64xf32>
    %84 = vector.shape_cast %83 : vector<1x1x64xf32> to vector<1x64xf32>
    %85 = vector.extract_strided_slice %66 {offsets = [0, 9, 0], sizes = [1, 1, 64], strides = [1, 1, 1]} : vector<1x16x64xf32> to vector<1x1x64xf32>
    %86 = vector.shape_cast %85 : vector<1x1x64xf32> to vector<1x64xf32>
    %87 = vector.extract_strided_slice %66 {offsets = [0, 10, 0], sizes = [1, 1, 64], strides = [1, 1, 1]} : vector<1x16x64xf32> to vector<1x1x64xf32>
    %88 = vector.shape_cast %87 : vector<1x1x64xf32> to vector<1x64xf32>
    %89 = vector.extract_strided_slice %66 {offsets = [0, 11, 0], sizes = [1, 1, 64], strides = [1, 1, 1]} : vector<1x16x64xf32> to vector<1x1x64xf32>
    %90 = vector.shape_cast %89 : vector<1x1x64xf32> to vector<1x64xf32>
    %91 = vector.extract_strided_slice %66 {offsets = [0, 12, 0], sizes = [1, 1, 64], strides = [1, 1, 1]} : vector<1x16x64xf32> to vector<1x1x64xf32>
    %92 = vector.shape_cast %91 : vector<1x1x64xf32> to vector<1x64xf32>
    %93 = vector.extract_strided_slice %66 {offsets = [0, 13, 0], sizes = [1, 1, 64], strides = [1, 1, 1]} : vector<1x16x64xf32> to vector<1x1x64xf32>
    %94 = vector.shape_cast %93 : vector<1x1x64xf32> to vector<1x64xf32>
    %95 = vector.extract_strided_slice %66 {offsets = [0, 14, 0], sizes = [1, 1, 64], strides = [1, 1, 1]} : vector<1x16x64xf32> to vector<1x1x64xf32>
    %96 = vector.shape_cast %95 : vector<1x1x64xf32> to vector<1x64xf32>
    %97 = vector.extract_strided_slice %66 {offsets = [0, 15, 0], sizes = [1, 1, 64], strides = [1, 1, 1]} : vector<1x16x64xf32> to vector<1x1x64xf32>
    %98 = vector.shape_cast %97 : vector<1x1x64xf32> to vector<1x64xf32>
    %99 = tpu.concatenate %68, %70, %72, %74, %76, %78, %80, %82, %84, %86, %88, %90, %92, %94, %96, %98 in 1 : vector<1x64xf32>, vector<1x64xf32>, vector<1x64xf32>, vector<1x64xf32>, vector<1x64xf32>, vector<1x64xf32>, vector<1x64xf32>, vector<1x64xf32>, vector<1x64xf32>, vector<1x64xf32>, vector<1x64xf32>, vector<1x64xf32>, vector<1x64xf32>, vector<1x64xf32>, vector<1x64xf32>, vector<1x64xf32> -> vector<1x1024xf32>
    %100 = arith.truncf %99 : vector<1x1024xf32> to vector<1x1024xbf16>
    %c0_25 = arith.constant 0 : index
    %c0_26 = arith.constant 0 : index
    %101 = vector.load %arg6[%c0_25, %c0_26] : memref<1024x128xbf16, #tpu.memory_space<vmem>>, vector<1024x128xbf16>
    %cst_27 = arith.constant dense<0.000000e+00> : vector<1x128xf32>
    %102 = tpu.matmul %100, %101, %cst_27 {dimension_numbers = #tpu.dot_dimension_numbers<[1], [0], [0], [1], [0, 0, 1, 1], [], []>} : vector<1x1024xbf16>, vector<1024x128xbf16>, vector<1x128xf32> -> vector<1x128xf32>
    %c0_28 = arith.constant 0 : index
    %c0_29 = arith.constant 0 : index
    %103 = vector.load %arg7[%c0_28, %c0_29] : memref<1x128xf32, #tpu.memory_space<vmem>>, vector<1x128xf32>
    %104 = arith.addf %102, %103 : vector<1x128xf32>
    %cst_30 = arith.constant 0.000000e+00 : f32
    %105 = vector.broadcast %cst_30 : f32 to vector<1x128xf32>
    %106 = arith.maximumf %104, %105 : vector<1x128xf32>
    %c0_31 = arith.constant 0 : index
    %c0_32 = arith.constant 0 : index
    %107 = vector.load %arg8[%c0_31, %c0_32] : memref<1x128xf32, #tpu.memory_space<vmem>>, vector<1x128xf32>
    %108 = arith.mulf %106, %107 : vector<1x128xf32>
    %cst_33 = arith.constant dense<0.000000e+00> : vector<1xf32>
    %109 = vector.multi_reduction <add>, %108, %cst_33 [1] : vector<1x128xf32> to vector<1xf32>
    %110 = vector.shape_cast %109 : vector<1xf32> to vector<1x1xf32>
    %c0_34 = arith.constant 0 : index
    %c0_35 = arith.constant 0 : index
    %111 = vector.load %arg9[%c0_34, %c0_35] : memref<1x1xf32, #tpu.memory_space<vmem>>, vector<1x1xf32>
    %112 = arith.addf %110, %111 : vector<1x1xf32>
    %113 = arith.negf %112 : vector<1x1xf32>
    %114 = math.exp %113 : vector<1x1xf32>
    %cst_36 = arith.constant 1.000000e+00 : f32
    %115 = vector.broadcast %cst_36 : f32 to vector<1x1xf32>
    %116 = arith.addf %115, %114 : vector<1x1xf32>
    %117 = arith.divf %115, %116 : vector<1x1xf32>
    %118 = vector.shape_cast %117 : vector<1x1xf32> to vector<1x1x1xf32>
    %c0_37 = arith.constant 0 : index
    %c0_38 = arith.constant 0 : index
    %c0_39 = arith.constant 0 : index
    %119 = vector.load %arg10[%c0_37, %c0_38, %c0_39] : memref<1x1x1xf32, #tpu.memory_space<vmem>>, vector<1x1x1xf32>
    tpu.vector_store %arg10[%c0_37, %c0_38, %c0_39], %118 {strides = array<i32>} : memref<1x1x1xf32, #tpu.memory_space<vmem>>, vector<1x1x1xf32>,
    return
  }
  func.func @transform_0(%arg0: i32) -> (i32, i32, i32) {
    %c0_i32 = arith.constant 0 : i32
    %c0_i32_0 = arith.constant 0 : i32
    %c0_i32_1 = arith.constant 0 : i32
    return %arg0, %c0_i32, %c0_i32_0 : i32, i32, i32
  }
  func.func @transform_1(%arg0: i32) -> (i32, i32) {
    %c0_i32 = arith.constant 0 : i32
    %c0_i32_0 = arith.constant 0 : i32
    %c0_i32_1 = arith.constant 0 : i32
    return %c0_i32, %c0_i32_0 : i32, i32
  }
  func.func @transform_2(%arg0: i32) -> (i32, i32) {
    %c0_i32 = arith.constant 0 : i32
    %c0_i32_0 = arith.constant 0 : i32
    %c0_i32_1 = arith.constant 0 : i32
    return %c0_i32, %c0_i32_0 : i32, i32
  }
  func.func @transform_3(%arg0: i32) -> (i32, i32) {
    %c0_i32 = arith.constant 0 : i32
    %c0_i32_0 = arith.constant 0 : i32
    %c0_i32_1 = arith.constant 0 : i32
    return %c0_i32, %c0_i32_0 : i32, i32
  }
  func.func @transform_4(%arg0: i32) -> (i32, i32) {
    %c0_i32 = arith.constant 0 : i32
    %c0_i32_0 = arith.constant 0 : i32
    %c0_i32_1 = arith.constant 0 : i32
    return %c0_i32, %c0_i32_0 : i32, i32
  }
  func.func @transform_5(%arg0: i32) -> (i32, i32) {
    %c0_i32 = arith.constant 0 : i32
    %c0_i32_0 = arith.constant 0 : i32
    %c0_i32_1 = arith.constant 0 : i32
    return %c0_i32, %c0_i32_0 : i32, i32
  }
  func.func @transform_6(%arg0: i32) -> (i32, i32) {
    %c0_i32 = arith.constant 0 : i32
    %c0_i32_0 = arith.constant 0 : i32
    %c0_i32_1 = arith.constant 0 : i32
    return %c0_i32, %c0_i32_0 : i32, i32
  }
  func.func @transform_7(%arg0: i32) -> (i32, i32) {
    %c0_i32 = arith.constant 0 : i32
    %c0_i32_0 = arith.constant 0 : i32
    %c0_i32_1 = arith.constant 0 : i32
    return %c0_i32, %c0_i32_0 : i32, i32
  }
  func.func @transform_8(%arg0: i32) -> (i32, i32) {
    %c0_i32 = arith.constant 0 : i32
    %c0_i32_0 = arith.constant 0 : i32
    %c0_i32_1 = arith.constant 0 : i32
    return %c0_i32, %c0_i32_0 : i32, i32
  }
  func.func @transform_9(%arg0: i32) -> (i32, i32, i32) {
    %c0_i32 = arith.constant 0 : i32
    %c0_i32_0 = arith.constant 0 : i32
    %c0_i32_1 = arith.constant 0 : i32
    return %arg0, %c0_i32, %c0_i32_0 : i32, i32, i32
  }
}

</mosaic_0001>

<llo_original>
// kernel: eegcnn_forward.1
$region0: #{eegcnn_forward.1}
  #allocation0 [shape = 'u32[]', space=smem, size = 0x4, offset = 0x4, fixed_abs, tag = 'smem constant byte address 0x4 - core index']
  #allocation1 [shape = 'u32[144,128]{1,0:T(1,128)}', space=vmem, size = 0x12000, scoped, tag = 'internal scratch']
  #allocation2 [shape = 'bf16[1,10,10,32]{3,2,1,0:T(8,128)(2,1)}', space=vmem, size = 0xa000, scoped, tag = 'scratch operand']
  #allocation3 [shape = 'f32[1,1]{1,0:T(1,128)S(1)}', space=vmem, size = 0x200, scoped, tag = 'scoped memory for eegcnn_forward.1']
  %s0 = inlined_call_operand.vmem [shape: bf16[2,256,36], index: 0, kind: input, shape index: {}]
  %s1 = inlined_call_operand.vmem [shape: bf16[36,32], index: 1, kind: input, shape index: {}]
  %s2 = inlined_call_operand.vmem [shape: f32[1,32], index: 2, kind: input, shape index: {}]
  %s3 = inlined_call_operand.vmem [shape: bf16[288,64], index: 3, kind: input, shape index: {}]
  %s4 = inlined_call_operand.vmem [shape: f32[1,64], index: 4, kind: input, shape index: {}]
  %s5 = inlined_call_operand.vmem [shape: bf16[1024,128], index: 5, kind: input, shape index: {}]
  %s6 = inlined_call_operand.vmem [shape: f32[1,128], index: 6, kind: input, shape index: {}]
  %s7 = inlined_call_operand.vmem [shape: f32[1,128], index: 7, kind: input, shape index: {}]
  %s8 = inlined_call_operand.<no memory space> [shape: f32[1,1], index: 8, kind: input, shape index: {}]
  %s9 = inlined_call_operand.vmem [shape: f32[2,1,1], index: 9, kind: output, shape index: {}]
  %s10 = sld [smem:[#allocation0]]
  $region69: #{eegcnn_forward.1} parent=0
    _
  %s12 = ssub.s32 1, %s10
  %s13 = scalar_select 0, %s12, %s10
  %v14 = vstv %s8
  %15 = vst [vmem:[#allocation3] sm:$0x1] %v14
  loop: start=0, step=1, limit=4
  $region2: #{eegcnn_forward.1} parent=0 // loop_pre_header
    _
  $region3: #{eegcnn_forward.1} parent=0 // loop_header
    %s17 = sphi 0, %s21
    %p18 = scmp.ge.s32.totalorder %s17, 4
    %s27 = sphi 0, %s29
    %s30 = sphi 0, %s27
    %s31 = sphi 0, %s30
    %s47 = sphi 0, %s31
    %s51 = sphi 0, %s51
    %s53 = sphi 0, %s51
    %s54 = sphi 0, %s53
    %s68 = sphi 0, %s54
    %s72 = sphi 0, %s72
    %s74 = sphi 0, %s72
    %s75 = sphi 0, %s74
    %s89 = sphi 0, %s75
    %s93 = sphi 0, %s93
    %s95 = sphi 0, %s93
    %s96 = sphi 0, %s95
    %s110 = sphi 0, %s96
    %s114 = sphi 0, %s114
    %s116 = sphi 0, %s114
    %s117 = sphi 0, %s116
    %s131 = sphi 0, %s117
    %s135 = sphi 0, %s135
    %s137 = sphi 0, %s135
    %s138 = sphi 0, %s137
    %s152 = sphi 0, %s138
    %s156 = sphi 0, %s156
    %s158 = sphi 0, %s156
    %s159 = sphi 0, %s158
    %s173 = sphi 0, %s159
    %s177 = sphi 0, %s177
    %s179 = sphi 0, %s177
    %s180 = sphi 0, %s179
    %s194 = sphi 0, %s180
    %s198 = sphi 0, %s198
    %s200 = sphi 0, %s198
    %s201 = sphi 0, %s200
    %s215 = sphi 0, %s201
    %s221 = sphi 0, %s223
    %s224 = sphi 0, %s221
    %s225 = sphi 0, %s224
    %s241 = sphi 0, %s225
  $region4: #{eegcnn_forward.1} parent=0 // loop_header_branch
    %20 = sbr.rel (%p18) target = $region8
  $region5: #{eegcnn_forward.1} parent=0 // loop_body
    %s22 = ssub.s32 %s17, 1
    %s23 = ssub.s32 %s17, 2
    %s24 = sadd.s32 %s17, 1
    %s25 = ssub.s32 %s17, %s24
    %p26 = scmp.eq.s32.totalorder %s25, 0
    %s28 = sadd.s32 %s27, 1
    %s29 = scalar_select %p26, %s27, %s28
    %p32 = pneg %p26
    %p33 = scmp.eq.s32.totalorder %s17, 1
    %p34 = por %p32, %p33
    %p35 = scmp.ne.s32.totalorder %s27, %s30
    %p36 = scmp.eq.s32.totalorder %s17, 0
    %p37 = por %p35, %p36
    %p38 = scmp.ne.s32.totalorder %s27, %s30
    %p39 = scmp.eq.s32.totalorder %s22, 1
    %p40 = por %p38, %p39
    %p41 = scmp.ne.s32.totalorder %s30, %s31
    %p42 = scmp.eq.s32.totalorder %s22, 0
    %p43 = por %p41, %p42
    %p44 = scmp.ne.s32.totalorder %s30, %s31
    %p45 = scmp.eq.s32.totalorder %s23, 1
    %p46 = por %p44, %p45
    %p48 = scmp.ne.s32.totalorder %s31, %s47
    %p49 = scmp.eq.s32.totalorder %s23, 0
    %p50 = por %p48, %p49
    %s52 = sadd.s32 %s51, 1
    %p55 = scmp.eq.s32.totalorder %s17, 1
    %p56 = scmp.ne.s32.totalorder %s51, %s53
    %p57 = scmp.eq.s32.totalorder %s17, 0
    %p58 = por %p56, %p57
    %p59 = scmp.ne.s32.totalorder %s51, %s53
    %p60 = scmp.eq.s32.totalorder %s22, 1
    %p61 = por %p59, %p60
    %p62 = scmp.ne.s32.totalorder %s53, %s54
    %p63 = scmp.eq.s32.totalorder %s22, 0
    %p64 = por %p62, %p63
    %p65 = scmp.ne.s32.totalorder %s53, %s54
    %p66 = scmp.eq.s32.totalorder %s23, 1
    %p67 = por %p65, %p66
    %p69 = scmp.ne.s32.totalorder %s54, %s68
    %p70 = scmp.eq.s32.totalorder %s23, 0
    %p71 = por %p69, %p70
    %s73 = sadd.s32 %s72, 1
    %p76 = scmp.eq.s32.totalorder %s17, 1
    %p77 = scmp.ne.s32.totalorder %s72, %s74
    %p78 = scmp.eq.s32.totalorder %s17, 0
    %p79 = por %p77, %p78
    %p80 = scmp.ne.s32.totalorder %s72, %s74
    %p81 = scmp.eq.s32.totalorder %s22, 1
    %p82 = por %p80, %p81
    %p83 = scmp.ne.s32.totalorder %s74, %s75
    %p84 = scmp.eq.s32.totalorder %s22, 0
    %p85 = por %p83, %p84
    %p86 = scmp.ne.s32.totalorder %s74, %s75
    %p87 = scmp.eq.s32.totalorder %s23, 1
    %p88 = por %p86, %p87
    %p90 = scmp.ne.s32.totalorder %s75, %s89
    %p91 = scmp.eq.s32.totalorder %s23, 0
    %p92 = por %p90, %p91
    %s94 = sadd.s32 %s93, 1
    %p97 = scmp.eq.s32.totalorder %s17, 1
    %p98 = scmp.ne.s32.totalorder %s93, %s95
    %p99 = scmp.eq.s32.totalorder %s17, 0
    %p100 = por %p98, %p99
    %p101 = scmp.ne.s32.totalorder %s93, %s95
    %p102 = scmp.eq.s32.totalorder %s22, 1
    %p103 = por %p101, %p102
    %p104 = scmp.ne.s32.totalorder %s95, %s96
    %p105 = scmp.eq.s32.totalorder %s22, 0
    %p106 = por %p104, %p105
    %p107 = scmp.ne.s32.totalorder %s95, %s96
    %p108 = scmp.eq.s32.totalorder %s23, 1
    %p109 = por %p107, %p108
    %p111 = scmp.ne.s32.totalorder %s96, %s110
    %p112 = scmp.eq.s32.totalorder %s23, 0
    %p113 = por %p111, %p112
    %s115 = sadd.s32 %s114, 1
    %p118 = scmp.eq.s32.totalorder %s17, 1
    %p119 = scmp.ne.s32.totalorder %s114, %s116
    %p120 = scmp.eq.s32.totalorder %s17, 0
    %p121 = por %p119, %p120
    %p122 = scmp.ne.s32.totalorder %s114, %s116
    %p123 = scmp.eq.s32.totalorder %s22, 1
    %p124 = por %p122, %p123
    %p125 = scmp.ne.s32.totalorder %s116, %s117
    %p126 = scmp.eq.s32.totalorder %s22, 0
    %p127 = por %p125, %p126
    %p128 = scmp.ne.s32.totalorder %s116, %s117
    %p129 = scmp.eq.s32.totalorder %s23, 1
    %p130 = por %p128, %p129
    %p132 = scmp.ne.s32.totalorder %s117, %s131
    %p133 = scmp.eq.s32.totalorder %s23, 0
    %p134 = por %p132, %p133
    %s136 = sadd.s32 %s135, 1
    %p139 = scmp.eq.s32.totalorder %s17, 1
    %p140 = scmp.ne.s32.totalorder %s135, %s137
    %p141 = scmp.eq.s32.totalorder %s17, 0
    %p142 = por %p140, %p141
    %p143 = scmp.ne.s32.totalorder %s135, %s137
    %p144 = scmp.eq.s32.totalorder %s22, 1
    %p145 = por %p143, %p144
    %p146 = scmp.ne.s32.totalorder %s137, %s138
    %p147 = scmp.eq.s32.totalorder %s22, 0
    %p148 = por %p146, %p147
    %p149 = scmp.ne.s32.totalorder %s137, %s138
    %p150 = scmp.eq.s32.totalorder %s23, 1
    %p151 = por %p149, %p150
    %p153 = scmp.ne.s32.totalorder %s138, %s152
    %p154 = scmp.eq.s32.totalorder %s23, 0
    %p155 = por %p153, %p154
    %s157 = sadd.s32 %s156, 1
    %p160 = scmp.eq.s32.totalorder %s17, 1
    %p161 = scmp.ne.s32.totalorder %s156, %s158
    %p162 = scmp.eq.s32.totalorder %s17, 0
    %p163 = por %p161, %p162
    %p164 = scmp.ne.s32.totalorder %s156, %s158
    %p165 = scmp.eq.s32.totalorder %s22, 1
    %p166 = por %p164, %p165
    %p167 = scmp.ne.s32.totalorder %s158, %s159
    %p168 = scmp.eq.s32.totalorder %s22, 0
    %p169 = por %p167, %p168
    %p170 = scmp.ne.s32.totalorder %s158, %s159
    %p171 = scmp.eq.s32.totalorder %s23, 1
    %p172 = por %p170, %p171
    %p174 = scmp.ne.s32.totalorder %s159, %s173
    %p175 = scmp.eq.s32.totalorder %s23, 0
    %p176 = por %p174, %p175
    %s178 = sadd.s32 %s177, 1
    %p181 = scmp.eq.s32.totalorder %s17, 1
    %p182 = scmp.ne.s32.totalorder %s177, %s179
    %p183 = scmp.eq.s32.totalorder %s17, 0
    %p184 = por %p182, %p183
    %p185 = scmp.ne.s32.totalorder %s177, %s179
    %p186 = scmp.eq.s32.totalorder %s22, 1
    %p187 = por %p185, %p186
    %p188 = scmp.ne.s32.totalorder %s179, %s180
    %p189 = scmp.eq.s32.totalorder %s22, 0
    %p190 = por %p188, %p189
    %p191 = scmp.ne.s32.totalorder %s179, %s180
    %p192 = scmp.eq.s32.totalorder %s23, 1
    %p193 = por %p191, %p192
    %p195 = scmp.ne.s32.totalorder %s180, %s194
    %p196 = scmp.eq.s32.totalorder %s23, 0
    %p197 = por %p195, %p196
    %s199 = sadd.s32 %s198, 1
    %p202 = scmp.eq.s32.totalorder %s17, 1
    %p203 = scmp.ne.s32.totalorder %s198, %s200
    %p204 = scmp.eq.s32.totalorder %s17, 0
    %p205 = por %p203, %p204
    %p206 = scmp.ne.s32.totalorder %s198, %s200
    %p207 = scmp.eq.s32.totalorder %s22, 1
    %p208 = por %p206, %p207
    %p209 = scmp.ne.s32.totalorder %s200, %s201
    %p210 = scmp.eq.s32.totalorder %s22, 0
    %p211 = por %p209, %p210
    %p212 = scmp.ne.s32.totalorder %s200, %s201
    %p213 = scmp.eq.s32.totalorder %s23, 1
    %p214 = por %p212, %p213
    %p216 = scmp.ne.s32.totalorder %s201, %s215
    %p217 = scmp.eq.s32.totalorder %s23, 0
    %p218 = por %p216, %p217
    %s219 = ssub.s32 %s17, %s24
    %p220 = scmp.eq.s32.totalorder %s219, 0
    %s222 = sadd.s32 %s221, 1
    %s223 = scalar_select %p220, %s221, %s222
    %p226 = pneg %p220
    %p227 = scmp.eq.s32.totalorder %s17, 1
    %p228 = por %p226, %p227
    %p229 = scmp.ne.s32.totalorder %s221, %s224
    %p230 = scmp.eq.s32.totalorder %s17, 0
    %p231 = por %p229, %p230
    %p232 = scmp.ne.s32.totalorder %s221, %s224
    %p233 = scmp.eq.s32.totalorder %s22, 1
    %p234 = por %p232, %p233
    %p235 = scmp.ne.s32.totalorder %s224, %s225
    %p236 = scmp.eq.s32.totalorder %s22, 0
    %p237 = por %p235, %p236
    %p238 = scmp.ne.s32.totalorder %s224, %s225
    %p239 = scmp.eq.s32.totalorder %s23, 1
    %p240 = por %p238, %p239
    %p242 = scmp.ne.s32.totalorder %s225, %s241
    %p243 = scmp.eq.s32.totalorder %s23, 0
    %p244 = por %p242, %p243
    %p245 = scmp.le.s32.totalorder 1, %s17
    %p246 = scmp.lt.s32.totalorder %s17, 3
    %p247 = pnand %p245, %p246
    %p248 = pneg %p247
    // Predicated region
    $region9: #{eegcnn_forward.1} parent=5 // pred_check
      _
    $region10: #{eegcnn_forward.1} parent=5 // pred_check_branch
      %250 = sbr.rel (%p247) target = $region12
    $region11: #{eegcnn_forward.1} parent=5 // pred_region
      %s251 = ssub.s32 %s17, 1
      // Predicated region
      $region13: #{eegcnn_forward.1} parent=11 // pred_check
        %p252 = pneg %p64
      $region14: #{eegcnn_forward.1} parent=11 // pred_check_branch
        %254 = sbr.rel (%p252) target = $region16
      $region15: #{eegcnn_forward.1} parent=11 // pred_region
        _
      $region16: #{eegcnn_forward.1} parent=11 // pred_fallthru
        _
      // Predicated region
      $region17: #{eegcnn_forward.1} parent=11 // pred_check
        %p255 = pneg %p85
      $region18: #{eegcnn_forward.1} parent=11 // pred_check_branch
        %257 = sbr.rel (%p255) target = $region20
      $region19: #{eegcnn_forward.1} parent=11 // pred_region
        _
      $region20: #{eegcnn_forward.1} parent=11 // pred_fallthru
        _
      // Predicated region
      $region21: #{eegcnn_forward.1} parent=11 // pred_check
        %p258 = pneg %p106
      $region22: #{eegcnn_forward.1} parent=11 // pred_check_branch
        %260 = sbr.rel (%p258) target = $region24
      $region23: #{eegcnn_forward.1} parent=11 // pred_region
        _
      $region24: #{eegcnn_forward.1} parent=11 // pred_fallthru
        _
      // Predicated region
      $region25: #{eegcnn_forward.1} parent=11 // pred_check
        %p261 = pneg %p127
      $region26: #{eegcnn_forward.1} parent=11 // pred_check_branch
        %263 = sbr.rel (%p261) target = $region28
      $region27: #{eegcnn_forward.1} parent=11 // pred_region
        _
      $region28: #{eegcnn_forward.1} parent=11 // pred_fallthru
        _
      // Predicated region
      $region29: #{eegcnn_forward.1} parent=11 // pred_check
        %p264 = pneg %p148
      $region30: #{eegcnn_forward.1} parent=11 // pred_check_branch
        %266 = sbr.rel (%p264) target = $region32
      $region31: #{eegcnn_forward.1} parent=11 // pred_region
        _
      $region32: #{eegcnn_forward.1} parent=11 // pred_fallthru
        _
      // Predicated region
      $region33: #{eegcnn_forward.1} parent=11 // pred_check
        %p267 = pneg %p169
      $region34: #{eegcnn_forward.1} parent=11 // pred_check_branch
        %269 = sbr.rel (%p267) target = $region36
      $region35: #{eegcnn_forward.1} parent=11 // pred_region
        _
      $region36: #{eegcnn_forward.1} parent=11 // pred_fallthru
        _
      // Predicated region
      $region37: #{eegcnn_forward.1} parent=11 // pred_check
        %p270 = pneg %p190
      $region38: #{eegcnn_forward.1} parent=11 // pred_check_branch
        %272 = sbr.rel (%p270) target = $region40
      $region39: #{eegcnn_forward.1} parent=11 // pred_region
        _
      $region40: #{eegcnn_forward.1} parent=11 // pred_fallthru
        _
      // Predicated region
      $region41: #{eegcnn_forward.1} parent=11 // pred_check
        %p273 = pneg %p211
      $region42: #{eegcnn_forward.1} parent=11 // pred_check_branch
        %275 = sbr.rel (%p273) target = $region44
      $region43: #{eegcnn_forward.1} parent=11 // pred_region
        _
      $region44: #{eegcnn_forward.1} parent=11 // pred_fallthru
        _
    $region12: #{eegcnn_forward.1} parent=5 // pred_fallthru
      _
    %p276 = scmp.lt.s32.totalorder %s17, 2
    // Predicated region
    $region45: #{eegcnn_forward.1} parent=5 // pred_check
      %p277 = pneg %p276
    $region46: #{eegcnn_forward.1} parent=5 // pred_check_branch
      %279 = sbr.rel (%p277) target = $region48
    $region47: #{eegcnn_forward.1} parent=5 // pred_region
      // Predicated region
      $region49: #{eegcnn_forward.1} parent=47 // pred_check
        %p280 = pneg %p37
      $region50: #{eegcnn_forward.1} parent=47 // pred_check_branch
        %282 = sbr.rel (%p280) target = $region52
      $region51: #{eegcnn_forward.1} parent=47 // pred_region
        %p283 = scmp.lt.s32.totalorder %s17, 1
        %s284 = scalar_select %p283, %s17, 1
        %s285 = smul.addr %s284, 32
        %s286 = smul.addr %s285, 4
        %s287 = scalar_lea.vmem %s0, %s286
      $region52: #{eegcnn_forward.1} parent=47 // pred_fallthru
        _
    $region48: #{eegcnn_forward.1} parent=5 // pred_fallthru
      _
    %p288 = scmp.le.s32.totalorder 1, %s17
    %p289 = scmp.lt.s32.totalorder %s17, 3
    %p290 = pnand %p288, %p289
    %p291 = pneg %p290
    // Predicated region
    $region53: #{eegcnn_forward.1} parent=5 // pred_check
      _
    $region54: #{eegcnn_forward.1} parent=5 // pred_check_branch
      %293 = sbr.rel (%p290) target = $region56
    $region55: #{eegcnn_forward.1} parent=5 // pred_region
      %s294 = ssub.s32 %s17, 1
      %p295 = scmp.lt.s32.totalorder %s22, 1
      %s296 = scalar_select %p295, %s22, 1
      %s297 = smul.addr %s296, 32
      %s298 = smul.addr %s297, 4
      %s299 = scalar_lea.vmem %s0, %s298
      %p300 = pneg %p43
      %p301 = pneg %p40
      %p302 = pneg %p64
      %p303 = pneg %p61
      %p304 = pneg %p85
      %p305 = pneg %p82
      %p306 = pneg %p106
      %p307 = pneg %p103
      %p308 = pneg %p127
      %p309 = pneg %p124
      %p310 = pneg %p148
      %p311 = pneg %p145
      %p312 = pneg %p169
      %p313 = pneg %p166
      %p314 = pneg %p190
      %p315 = pneg %p187
      %p316 = pneg %p211
      %p317 = pneg %p208
      %p318 = pneg %p237
      %p319 = pneg %p234
      %p320 = scmp.lt.s32.totalorder %s22, 1
      %s321 = scalar_select %p320, %s22, 1
      %s322 = scalar_lea.vmem %s9, %s321
      %p323 = scmp.lt.s32.totalorder %s22, 1
      %s324 = scalar_select %p323, %s22, 1
      %s325 = smul.addr %s324, 32
      %s326 = smul.addr %s325, 4
      %s327 = scalar_lea.vmem %s0, %s326
      %p328 = scmp.lt.s32.totalorder %s22, 1
      %s329 = scalar_select %p328, %s22, 1
      %s330 = scalar_lea.vmem %s9, %s329
      %v332 = vld [vmem:[%s327] sm:$0xf]
      %v333 = vld [vmem:[%s327 + $0x4] sm:$0xf]
      %v334 = vld [vmem:[%s327 + $0x8] sm:$0xf]
      %v335 = vld [vmem:[%s327 + $0xc] sm:$0xf]
      %v336 = vld [vmem:[%s327 + $0x10] sm:$0xf]
      %v337 = vld [vmem:[%s327 + $0x14] sm:$0xf]
      %v338 = vld [vmem:[%s327 + $0x18] sm:$0xf]
      %v339 = vld [vmem:[%s327 + $0x1c] sm:$0xf]
      %v340 = vld [vmem:[%s327 + $0x20] sm:$0xf]
      %v341 = vld [vmem:[%s327 + $0x24] sm:$0xf]
      %v342 = vld [vmem:[%s327 + $0x28] sm:$0xf]
      %v343 = vld [vmem:[%s327 + $0x2c] sm:$0xf]
      %v344 = vld [vmem:[%s327 + $0x30] sm:$0xf]
      %v345 = vld [vmem:[%s327 + $0x34] sm:$0xf]
      %v346 = vld [vmem:[%s327 + $0x38] sm:$0xf]
      %v347 = vld [vmem:[%s327 + $0x3c] sm:$0xf]
      %v348 = vld [vmem:[%s327 + $0x40] sm:$0xf]
      %v349 = vld [vmem:[%s327 + $0x44] sm:$0xf]
      %v350 = vld [vmem:[%s327 + $0x48] sm:$0xf]
      %v351 = vld [vmem:[%s327 + $0x4c] sm:$0xf]
      %v352 = vld [vmem:[%s327 + $0x50] sm:$0xf]
      %v353 = vld [vmem:[%s327 + $0x54] sm:$0xf]
      %v354 = vld [vmem:[%s327 + $0x58] sm:$0xf]
      %v355 = vld [vmem:[%s327 + $0x5c] sm:$0xf]
      %v356 = vld [vmem:[%s327 + $0x60] sm:$0xf]
      %v357 = vld [vmem:[%s327 + $0x64] sm:$0xf]
      %v358 = vld [vmem:[%s327 + $0x68] sm:$0xf]
      %v359 = vld [vmem:[%s327 + $0x6c] sm:$0xf]
      %v360 = vld [vmem:[%s327 + $0x70] sm:$0xf]
      %v361 = vld [vmem:[%s327 + $0x74] sm:$0xf]
      %v362 = vld [vmem:[%s327 + $0x78] sm:$0xf]
      %v363 = vld [vmem:[%s327 + $0x7c] sm:$0xf]
      %v364 = vld [vmem:[%s1] sm:$0xf]
      %v365 = vld [vmem:[%s1 + $0x4] sm:$0xf]
      %v366 = vld [vmem:[%s1 + $0x8] sm:$0xf]
      %v367 = vld [vmem:[%s1 + $0xc] sm:$0xf]
      %v368 = vld [vmem:[%s1 + $0x10] sm:$0x3]
      %v369 = vld [vmem:[%s2] sm:$0x1]
      %v371 = vlaneseq
      %v372 = vshrl.u32 %v371, 7
      %v373 = vsub.s32 0, %v372
      %v374 = vrot.slane %v369, %v373
      %v408 = vunpack.c.l.b16 %v332
      %v409 = vunpack.c.l.b16 %v333
      %v410 = vunpack.c.l.b16 %v334
      %v411 = vunpack.c.l.b16 %v335
      %v412 = vunpack.c.l.b16 %v336
      %v413 = vunpack.c.l.b16 %v337
      %v414 = vunpack.c.l.b16 %v338
      %v415 = vunpack.c.l.b16 %v339
      %v416 = vunpack.c.l.b16 %v340
      %v417 = vunpack.c.l.b16 %v341
      %v418 = vunpack.c.l.b16 %v342
      %v419 = vunpack.c.l.b16 %v343
      %v420 = vunpack.c.l.b16 %v344
      %v421 = vunpack.c.l.b16 %v345
      %v422 = vunpack.c.l.b16 %v346
      %v423 = vunpack.c.l.b16 %v347
      %v424 = vunpack.c.l.b16 %v348
      %v425 = vunpack.c.l.b16 %v349
      %v426 = vunpack.c.l.b16 %v350
      %v427 = vunpack.c.l.b16 %v351
      %v428 = vunpack.c.l.b16 %v352
      %v429 = vunpack.c.l.b16 %v353
      %v430 = vunpack.c.l.b16 %v354
      %v431 = vunpack.c.l.b16 %v355
      %v432 = vunpack.c.l.b16 %v356
      %v433 = vunpack.c.l.b16 %v357
      %v434 = vunpack.c.l.b16 %v358
      %v435 = vunpack.c.l.b16 %v359
      %v436 = vunpack.c.l.b16 %v360
      %v437 = vunpack.c.l.b16 %v361
      %v438 = vunpack.c.l.b16 %v362
      %v439 = vunpack.c.l.b16 %v363
      %v440 = vpack.c.b16 %v409, %v408
      %v441 = vpack.c.b16 %v411, %v410
      %v442 = vpack.c.b16 %v413, %v412
      %v443 = vpack.c.b16 %v415, %v414
      %v444 = vpack.c.b16 %v417, %v416
      %v445 = vpack.c.b16 %v419, %v418
      %v446 = vpack.c.b16 %v421, %v420
      %v447 = vpack.c.b16 %v423, %v422
      %v448 = vpack.c.b16 %v425, %v424
      %v449 = vpack.c.b16 %v427, %v426
      %v450 = vpack.c.b16 %v429, %v428
      %v451 = vpack.c.b16 %v431, %v430
      %v452 = vpack.c.b16 %v433, %v432
      %v453 = vpack.c.b16 %v435, %v434
      %v454 = vpack.c.b16 %v437, %v436
      %v455 = vpack.c.b16 %v439, %v438
      %v461 = vunpack.c.l.b16 %v364
      %v462 = vunpack.c.l.b16 %v365
      %v463 = vunpack.c.l.b16 %v366
      %v464 = vunpack.c.l.b16 %v367
      %v465 = vunpack.c.l.b16 %v368
      %v466 = vpack.c.b16 %v462, %v461
      %v467 = vpack.c.b16 %v464, %v463
      %v468 = vpack.c.b16 %v465, %v465
      %vm471 = vcmask 293888
      %v473 = vsel %vm471, %v440, 0
      %v476 = vsel %vm471, %v441, 0
      %v479 = vsel %vm471, %v442, 0
      %v482 = vsel %vm471, %v443, 0
      %v485 = vsel %vm471, %v444, 0
      %v488 = vsel %vm471, %v445, 0
      %v491 = vsel %vm471, %v446, 0
      %v494 = vsel %vm471, %v447, 0
      %v497 = vsel %vm471, %v448, 0
      %v500 = vsel %vm471, %v449, 0
      %v503 = vsel %vm471, %v450, 0
      %v506 = vsel %vm471, %v451, 0
      %v509 = vsel %vm471, %v452, 0
      %v512 = vsel %vm471, %v453, 0
      %v515 = vsel %vm471, %v454, 0
      %v518 = vsel %vm471, %v455, 0
      %vm520 = vcmask 1041408
      %v522 = vsel %vm520, %v468, 0
      %524 = vmatprep.subr.bf16.mxu0 0
      %525 = vmatpush1.bf16.msra.mxu0 %v466
      %526 = vmatprep.subr.bf16.mxu0 0
      %527 = vmatpush1.bf16.msra.mxu0 %v467
      %528 = vmatprep.subr.bf16.mxu0 0
      %529 = vmatpush1.bf16.msra.mxu0 %v522
      %530 = vmatprep.subr.bf16.mxu0 0
      %531 = vmatpush1.bf16.msra.mxu0 0
      %532 = vmatprep.subr.bf16.mxu0 0
      %533 = vmatpush1.bf16.msra.mxu0 0
      %534 = vmatprep.subr.bf16.mxu0 0
      %535 = vmatpush1.bf16.msra.mxu0 0
      %536 = vmatprep.subr.bf16.mxu0 0
      %537 = vmatpush1.bf16.msra.mxu0 0
      %538 = vmatprep.subr.bf16.mxu0 0
      %539 = vmatpush1.bf16.msra.mxu0 0
      %540 = vmatprep.subr.bf16.mxu0 0
      %541 = vmatpush1.bf16.msra.mxu0 0
      %542 = vmatprep.subr.bf16.mxu0 0
      %543 = vmatpush1.bf16.msra.mxu0 0
      %544 = vmatprep.subr.bf16.mxu0 0
      %545 = vmatpush1.bf16.msra.mxu0 0
      %546 = vmatprep.subr.bf16.mxu0 0
      %547 = vmatpush1.bf16.msra.mxu0 0
      %548 = vmatprep.subr.bf16.mxu0 0
      %549 = vmatpush1.bf16.msra.mxu0 0
      %550 = vmatprep.subr.bf16.mxu0 0
      %551 = vmatpush1.bf16.msra.mxu0 0
      %552 = vmatprep.subr.bf16.mxu0 0
      %553 = vmatpush1.bf16.msra.mxu0 0
      %554 = vmatprep.subr.bf16.mxu0 0
      %555 = vmatpush1.bf16.msra.mxu0 0
      %556 = vmatprep.mubr.bf16.mxu0 0
      %557 = vmatmul.mubr.bf16.gmra.mrb[0].mxu0 %v473
      %v558 = vpop.f32.mrb[0].mxu0
      %v559 = vadd.f32 %v374, %v558
      %v560 = vpop.f32.mrb[0].mxu0
      %v561 = vpop.f32.mrb[0].mxu0
      %v562 = vadd.f32 %v374, %v561
      %v563 = vpop.f32.mrb[0].mxu0
      %564 = vmatprep.mubr.bf16.mxu0 0
      %565 = vmatmul.mubr.bf16.gmra.mrb[0].mxu0 %v476
      %v566 = vpop.f32.mrb[0].mxu0
      %v567 = vadd.f32 %v374, %v566
      %v568 = vpop.f32.mrb[0].mxu0
      %v569 = vpop.f32.mrb[0].mxu0
      %v570 = vadd.f32 %v374, %v569
      %v571 = vpop.f32.mrb[0].mxu0
      %572 = vmatprep.mubr.bf16.mxu0 0
      %573 = vmatmul.mubr.bf16.gmra.mrb[0].mxu0 %v479
      %v574 = vpop.f32.mrb[0].mxu0
      %v575 = vadd.f32 %v374, %v574
      %v576 = vpop.f32.mrb[0].mxu0
      %v577 = vpop.f32.mrb[0].mxu0
      %v578 = vadd.f32 %v374, %v577
      %v579 = vpop.f32.mrb[0].mxu0
      %580 = vmatprep.mubr.bf16.mxu0 0
      %581 = vmatmul.mubr.bf16.gmra.mrb[0].mxu0 %v482
      %v582 = vpop.f32.mrb[0].mxu0
      %v583 = vadd.f32 %v374, %v582
      %v584 = vpop.f32.mrb[0].mxu0
      %v585 = vpop.f32.mrb[0].mxu0
      %v586 = vadd.f32 %v374, %v585
      %v587 = vpop.f32.mrb[0].mxu0
      %588 = vmatprep.mubr.bf16.mxu0 0
      %589 = vmatmul.mubr.bf16.gmra.mrb[0].mxu0 %v485
      %v590 = vpop.f32.mrb[0].mxu0
      %v591 = vadd.f32 %v374, %v590
      %v592 = vpop.f32.mrb[0].mxu0
      %v593 = vpop.f32.mrb[0].mxu0
      %v594 = vadd.f32 %v374, %v593
      %v595 = vpop.f32.mrb[0].mxu0
      %596 = vmatprep.mubr.bf16.mxu0 0
      %597 = vmatmul.mubr.bf16.gmra.mrb[0].mxu0 %v488
      %v598 = vpop.f32.mrb[0].mxu0
      %v599 = vadd.f32 %v374, %v598
      %v600 = vpop.f32.mrb[0].mxu0
      %v601 = vpop.f32.mrb[0].mxu0
      %v602 = vadd.f32 %v374, %v601
      %v603 = vpop.f32.mrb[0].mxu0
      %604 = vmatprep.mubr.bf16.mxu0 0
      %605 = vmatmul.mubr.bf16.gmra.mrb[0].mxu0 %v491
      %v606 = vpop.f32.mrb[0].mxu0
      %v607 = vadd.f32 %v374, %v606
      %v608 = vpop.f32.mrb[0].mxu0
      %v609 = vpop.f32.mrb[0].mxu0
      %v610 = vadd.f32 %v374, %v609
      %v611 = vpop.f32.mrb[0].mxu0
      %612 = vmatprep.mubr.bf16.mxu0 0
      %613 = vmatmul.mubr.bf16.gmra.mrb[0].mxu0 %v494
      %v614 = vpop.f32.mrb[0].mxu0
      %v615 = vadd.f32 %v374, %v614
      %v616 = vpop.f32.mrb[0].mxu0
      %v617 = vpop.f32.mrb[0].mxu0
      %v618 = vadd.f32 %v374, %v617
      %v619 = vpop.f32.mrb[0].mxu0
      %620 = vmatprep.mubr.bf16.mxu0 0
      %621 = vmatmul.mubr.bf16.gmra.mrb[0].mxu0 %v497
      %v622 = vpop.f32.mrb[0].mxu0
      %v623 = vadd.f32 %v374, %v622
      %v624 = vpop.f32.mrb[0].mxu0
      %v625 = vpop.f32.mrb[0].mxu0
      %v626 = vadd.f32 %v374, %v625
      %v627 = vpop.f32.mrb[0].mxu0
      %628 = vmatprep.mubr.bf16.mxu0 0
      %629 = vmatmul.mubr.bf16.gmra.mrb[0].mxu0 %v500
      %v630 = vpop.f32.mrb[0].mxu0
      %v631 = vadd.f32 %v374, %v630
      %v632 = vpop.f32.mrb[0].mxu0
      %v633 = vpop.f32.mrb[0].mxu0
      %v634 = vadd.f32 %v374, %v633
      %v635 = vpop.f32.mrb[0].mxu0
      %636 = vmatprep.mubr.bf16.mxu0 0
      %637 = vmatmul.mubr.bf16.gmra.mrb[0].mxu0 %v503
      %v638 = vpop.f32.mrb[0].mxu0
      %v639 = vadd.f32 %v374, %v638
      %v640 = vpop.f32.mrb[0].mxu0
      %v641 = vpop.f32.mrb[0].mxu0
      %v642 = vadd.f32 %v374, %v641
      %v643 = vpop.f32.mrb[0].mxu0
      %644 = vmatprep.mubr.bf16.mxu0 0
      %645 = vmatmul.mubr.bf16.gmra.mrb[0].mxu0 %v506
      %v646 = vpop.f32.mrb[0].mxu0
      %v647 = vadd.f32 %v374, %v646
      %v648 = vpop.f32.mrb[0].mxu0
      %v649 = vpop.f32.mrb[0].mxu0
      %v650 = vadd.f32 %v374, %v649
      %v651 = vpop.f32.mrb[0].mxu0
      %652 = vmatprep.mubr.bf16.mxu0 0
      %653 = vmatmul.mubr.bf16.gmra.mrb[0].mxu0 %v509
      %v654 = vpop.f32.mrb[0].mxu0
      %v655 = vadd.f32 %v374, %v654
      %v656 = vpop.f32.mrb[0].mxu0
      %v657 = vpop.f32.mrb[0].mxu0
      %v658 = vadd.f32 %v374, %v657
      %v659 = vpop.f32.mrb[0].mxu0
      %660 = vmatprep.mubr.bf16.mxu0 0
      %661 = vmatmul.mubr.bf16.gmra.mrb[0].mxu0 %v512
      %v662 = vpop.f32.mrb[0].mxu0
      %v663 = vadd.f32 %v374, %v662
      %v664 = vpop.f32.mrb[0].mxu0
      %v665 = vpop.f32.mrb[0].mxu0
      %v666 = vadd.f32 %v374, %v665
      %v667 = vpop.f32.mrb[0].mxu0
      %668 = vmatprep.mubr.bf16.mxu0 0
      %669 = vmatmul.mubr.bf16.gmra.mrb[0].mxu0 %v515
      %v670 = vpop.f32.mrb[0].mxu0
      %v671 = vadd.f32 %v374, %v670
      %v672 = vpop.f32.mrb[0].mxu0
      %v673 = vpop.f32.mrb[0].mxu0
      %v674 = vadd.f32 %v374, %v673
      %v675 = vpop.f32.mrb[0].mxu0
      %676 = vmatprep.mubr.bf16.mxu0 0
      %677 = vmatmul.mubr.bf16.gmra.mrb[0].mxu0 %v518
      %v678 = vpop.f32.mrb[0].mxu0
      %v679 = vadd.f32 %v374, %v678
      %v680 = vpop.f32.mrb[0].mxu0
      %v681 = vpop.f32.mrb[0].mxu0
      %v682 = vadd.f32 %v374, %v681
      %v683 = vpop.f32.mrb[0].mxu0
      %684 = vdwg.mxu0
      %v685 = vmax.f32 %v559, 0.0
      %v686 = vmax.f32 %v562, 0.0
      %v687 = vmax.f32 %v567, 0.0
      %v688 = vmax.f32 %v570, 0.0
      %v689 = vmax.f32 %v575, 0.0
      %v690 = vmax.f32 %v578, 0.0
      %v691 = vmax.f32 %v583, 0.0
      %v692 = vmax.f32 %v586, 0.0
      %v693 = vmax.f32 %v591, 0.0
      %v694 = vmax.f32 %v594, 0.0
      %v695 = vmax.f32 %v599, 0.0
      %v696 = vmax.f32 %v602, 0.0
      %v697 = vmax.f32 %v607, 0.0
      %v698 = vmax.f32 %v610, 0.0
      %v699 = vmax.f32 %v615, 0.0
      %v700 = vmax.f32 %v618, 0.0
      %v701 = vmax.f32 %v623, 0.0
      %v702 = vmax.f32 %v626, 0.0
      %v703 = vmax.f32 %v631, 0.0
      %v704 = vmax.f32 %v634, 0.0
      %v705 = vmax.f32 %v639, 0.0
      %v706 = vmax.f32 %v642, 0.0
      %v707 = vmax.f32 %v647, 0.0
      %v708 = vmax.f32 %v650, 0.0
      %v709 = vmax.f32 %v655, 0.0
      %v710 = vmax.f32 %v658, 0.0
      %v711 = vmax.f32 %v663, 0.0
      %v712 = vmax.f32 %v666, 0.0
      %v713 = vmax.f32 %v671, 0.0
      %v714 = vmax.f32 %v674, 0.0
      %v715 = vmax.f32 %v679, 0.0
      %v716 = vmax.f32 %v682, 0.0
      %v717 = vmax.f32 %v685, %v687
      %v718 = vmax.f32 %v686, %v688
      %v719 = vmax.f32 %v689, %v691
      %v720 = vmax.f32 %v690, %v692
      %v721 = vmax.f32 %v693, %v695
      %v722 = vmax.f32 %v694, %v696
      %v723 = vmax.f32 %v697, %v699
      %v724 = vmax.f32 %v698, %v700
      %v725 = vmax.f32 %v701, %v703
      %v726 = vmax.f32 %v702, %v704
      %v727 = vmax.f32 %v705, %v707
      %v728 = vmax.f32 %v706, %v708
      %v729 = vmax.f32 %v709, %v711
      %v730 = vmax.f32 %v710, %v712
      %v731 = vmax.f32 %v713, %v715
      %v732 = vmax.f32 %v714, %v716
      %v749 = vcombine.high %v717, %v717
      %v751 = vunpack.c.l.s4 1983009808
      %v752 = vunpack.c.0.s8 %v751
      %v753 = vlaneseq
      %v754 = vshrl.u32 %v753, 7
      %v755 = vsub.s32 %v752, %v754
      %v756 = vrot.slane %v717, %v755
      %v758 = vunpack.c.l.s4 1983009808
      %v759 = vunpack.c.0.s8 %v758
      %v760 = vlaneseq
      %v761 = vshrl.u32 %v760, 7
      %v762 = vsub.s32 %v759, %v761
      %v763 = vrot.slane %v749, %v762
      %v764 = vcombine.high %v756, %v756
      %v765 = vcombine.high %v763, %v763
      %v766 = vcombine.high %v718, %v718
      %v768 = vunpack.c.l.s4 1983009808
      %v769 = vunpack.c.0.s8 %v768
      %v770 = vlaneseq
      %v771 = vshrl.u32 %v770, 7
      %v772 = vsub.s32 %v769, %v771
      %v773 = vrot.slane %v718, %v772
      %v775 = vunpack.c.l.s4 1983009808
      %v776 = vunpack.c.0.s8 %v775
      %v777 = vlaneseq
      %v778 = vshrl.u32 %v777, 7
      %v779 = vsub.s32 %v776, %v778
      %v780 = vrot.slane %v766, %v779
      %v781 = vcombine.high %v773, %v773
      %v782 = vcombine.high %v780, %v780
      %v783 = vcombine.high %v719, %v719
      %v785 = vunpack.c.l.s4 1983009808
      %v786 = vunpack.c.0.s8 %v785
      %v787 = vlaneseq
      %v788 = vshrl.u32 %v787, 7
      %v789 = vsub.s32 %v786, %v788
      %v790 = vrot.slane %v719, %v789
      %v792 = vunpack.c.l.s4 1983009808
      %v793 = vunpack.c.0.s8 %v792
      %v794 = vlaneseq
      %v795 = vshrl.u32 %v794, 7
      %v796 = vsub.s32 %v793, %v795
      %v797 = vrot.slane %v783, %v796
      %v798 = vcombine.high %v790, %v790
      %v799 = vcombine.high %v797, %v797
      %v800 = vcombine.high %v720, %v720
      %v802 = vunpack.c.l.s4 1983009808
      %v803 = vunpack.c.0.s8 %v802
      %v804 = vlaneseq
      %v805 = vshrl.u32 %v804, 7
      %v806 = vsub.s32 %v803, %v805
      %v807 = vrot.slane %v720, %v806
      %v809 = vunpack.c.l.s4 1983009808
      %v810 = vunpack.c.0.s8 %v809
      %v811 = vlaneseq
      %v812 = vshrl.u32 %v811, 7
      %v813 = vsub.s32 %v810, %v812
      %v814 = vrot.slane %v800, %v813
      %v815 = vcombine.high %v807, %v807
      %v816 = vcombine.high %v814, %v814
      %v817 = vcombine.high %v721, %v721
      %v819 = vunpack.c.l.s4 1983009808
      %v820 = vunpack.c.0.s8 %v819
      %v821 = vlaneseq
      %v822 = vshrl.u32 %v821, 7
      %v823 = vsub.s32 %v820, %v822
      %v824 = vrot.slane %v721, %v823
      %v826 = vunpack.c.l.s4 1983009808
      %v827 = vunpack.c.0.s8 %v826
      %v828 = vlaneseq
      %v829 = vshrl.u32 %v828, 7
      %v830 = vsub.s32 %v827, %v829
      %v831 = vrot.slane %v817, %v830
      %v832 = vcombine.high %v824, %v824
      %v833 = vcombine.high %v831, %v831
      %v834 = vcombine.high %v722, %v722
      %v836 = vunpack.c.l.s4 1983009808
      %v837 = vunpack.c.0.s8 %v836
      %v838 = vlaneseq
      %v839 = vshrl.u32 %v838, 7
      %v840 = vsub.s32 %v837, %v839
      %v841 = vrot.slane %v722, %v840
      %v843 = vunpack.c.l.s4 1983009808
      %v844 = vunpack.c.0.s8 %v843
      %v845 = vlaneseq
      %v846 = vshrl.u32 %v845, 7
      %v847 = vsub.s32 %v844, %v846
      %v848 = vrot.slane %v834, %v847
      %v849 = vcombine.high %v841, %v841
      %v850 = vcombine.high %v848, %v848
      %v851 = vcombine.high %v723, %v723
      %v853 = vunpack.c.l.s4 1983009808
      %v854 = vunpack.c.0.s8 %v853
      %v855 = vlaneseq
      %v856 = vshrl.u32 %v855, 7
      %v857 = vsub.s32 %v854, %v856
      %v858 = vrot.slane %v723, %v857
      %v860 = vunpack.c.l.s4 1983009808
      %v861 = vunpack.c.0.s8 %v860
      %v862 = vlaneseq
      %v863 = vshrl.u32 %v862, 7
      %v864 = vsub.s32 %v861, %v863
      %v865 = vrot.slane %v851, %v864
      %v866 = vcombine.high %v858, %v858
      %v867 = vcombine.high %v865, %v865
      %v868 = vcombine.high %v724, %v724
      %v870 = vunpack.c.l.s4 1983009808
      %v871 = vunpack.c.0.s8 %v870
      %v872 = vlaneseq
      %v873 = vshrl.u32 %v872, 7
      %v874 = vsub.s32 %v871, %v873
      %v875 = vrot.slane %v724, %v874
      %v877 = vunpack.c.l.s4 1983009808
      %v878 = vunpack.c.0.s8 %v877
      %v879 = vlaneseq
      %v880 = vshrl.u32 %v879, 7
      %v881 = vsub.s32 %v878, %v880
      %v882 = vrot.slane %v868, %v881
      %v883 = vcombine.high %v875, %v875
      %v884 = vcombine.high %v882, %v882
      %v885 = vcombine.high %v725, %v725
      %v887 = vunpack.c.l.s4 1983009808
      %v888 = vunpack.c.0.s8 %v887
      %v889 = vlaneseq
      %v890 = vshrl.u32 %v889, 7
      %v891 = vsub.s32 %v888, %v890
      %v892 = vrot.slane %v725, %v891
      %v894 = vunpack.c.l.s4 1983009808
      %v895 = vunpack.c.0.s8 %v894
      %v896 = vlaneseq
      %v897 = vshrl.u32 %v896, 7
      %v898 = vsub.s32 %v895, %v897
      %v899 = vrot.slane %v885, %v898
      %v900 = vcombine.high %v892, %v892
      %v901 = vcombine.high %v899, %v899
      %v902 = vcombine.high %v726, %v726
      %v904 = vunpack.c.l.s4 1983009808
      %v905 = vunpack.c.0.s8 %v904
      %v906 = vlaneseq
      %v907 = vshrl.u32 %v906, 7
      %v908 = vsub.s32 %v905, %v907
      %v909 = vrot.slane %v726, %v908
      %v911 = vunpack.c.l.s4 1983009808
      %v912 = vunpack.c.0.s8 %v911
      %v913 = vlaneseq
      %v914 = vshrl.u32 %v913, 7
      %v915 = vsub.s32 %v912, %v914
      %v916 = vrot.slane %v902, %v915
      %v917 = vcombine.high %v909, %v909
      %v918 = vcombine.high %v916, %v916
      %v919 = vcombine.high %v727, %v727
      %v921 = vunpack.c.l.s4 1983009808
      %v922 = vunpack.c.0.s8 %v921
      %v923 = vlaneseq
      %v924 = vshrl.u32 %v923, 7
      %v925 = vsub.s32 %v922, %v924
      %v926 = vrot.slane %v727, %v925
      %v928 = vunpack.c.l.s4 1983009808
      %v929 = vunpack.c.0.s8 %v928
      %v930 = vlaneseq
      %v931 = vshrl.u32 %v930, 7
      %v932 = vsub.s32 %v929, %v931
      %v933 = vrot.slane %v919, %v932
      %v934 = vcombine.high %v926, %v926
      %v935 = vcombine.high %v933, %v933
      %v936 = vcombine.high %v728, %v728
      %v938 = vunpack.c.l.s4 1983009808
      %v939 = vunpack.c.0.s8 %v938
      %v940 = vlaneseq
      %v941 = vshrl.u32 %v940, 7
      %v942 = vsub.s32 %v939, %v941
      %v943 = vrot.slane %v728, %v942
      %v945 = vunpack.c.l.s4 1983009808
      %v946 = vunpack.c.0.s8 %v945
      %v947 = vlaneseq
      %v948 = vshrl.u32 %v947, 7
      %v949 = vsub.s32 %v946, %v948
      %v950 = vrot.slane %v936, %v949
      %v951 = vcombine.high %v943, %v943
      %v952 = vcombine.high %v950, %v950
      %v953 = vcombine.high %v729, %v729
      %v955 = vunpack.c.l.s4 1983009808
      %v956 = vunpack.c.0.s8 %v955
      %v957 = vlaneseq
      %v958 = vshrl.u32 %v957, 7
      %v959 = vsub.s32 %v956, %v958
      %v960 = vrot.slane %v729, %v959
      %v962 = vunpack.c.l.s4 1983009808
      %v963 = vunpack.c.0.s8 %v962
      %v964 = vlaneseq
      %v965 = vshrl.u32 %v964, 7
      %v966 = vsub.s32 %v963, %v965
      %v967 = vrot.slane %v953, %v966
      %v968 = vcombine.high %v960, %v960
      %v969 = vcombine.high %v967, %v967
      %v970 = vcombine.high %v730, %v730
      %v972 = vunpack.c.l.s4 1983009808
      %v973 = vunpack.c.0.s8 %v972
      %v974 = vlaneseq
      %v975 = vshrl.u32 %v974, 7
      %v976 = vsub.s32 %v973, %v975
      %v977 = vrot.slane %v730, %v976
      %v979 = vunpack.c.l.s4 1983009808
      %v980 = vunpack.c.0.s8 %v979
      %v981 = vlaneseq
      %v982 = vshrl.u32 %v981, 7
      %v983 = vsub.s32 %v980, %v982
      %v984 = vrot.slane %v970, %v983
      %v985 = vcombine.high %v977, %v977
      %v986 = vcombine.high %v984, %v984
      %v987 = vcombine.high %v731, %v731
      %v989 = vunpack.c.l.s4 1983009808
      %v990 = vunpack.c.0.s8 %v989
      %v991 = vlaneseq
      %v992 = vshrl.u32 %v991, 7
      %v993 = vsub.s32 %v990, %v992
      %v994 = vrot.slane %v731, %v993
      %v996 = vunpack.c.l.s4 1983009808
      %v997 = vunpack.c.0.s8 %v996
      %v998 = vlaneseq
      %v999 = vshrl.u32 %v998, 7
      %v1000 = vsub.s32 %v997, %v999
      %v1001 = vrot.slane %v987, %v1000
      %v1002 = vcombine.high %v994, %v994
      %v1003 = vcombine.high %v1001, %v1001
      %v1004 = vcombine.high %v732, %v732
      %v1006 = vunpack.c.l.s4 1983009808
      %v1007 = vunpack.c.0.s8 %v1006
      %v1008 = vlaneseq
      %v1009 = vshrl.u32 %v1008, 7
      %v1010 = vsub.s32 %v1007, %v1009
      %v1011 = vrot.slane %v732, %v1010
      %v1013 = vunpack.c.l.s4 1983009808
      %v1014 = vunpack.c.0.s8 %v1013
      %v1015 = vlaneseq
      %v1016 = vshrl.u32 %v1015, 7
      %v1017 = vsub.s32 %v1014, %v1016
      %v1018 = vrot.slane %v1004, %v1017
      %v1019 = vcombine.high %v1011, %v1011
      %v1020 = vcombine.high %v1018, %v1018
      %v1085 = vrot.slane %v756, 7
      %v1086 = vrot.slane %v1085, 2
      %v1087 = vrot.slane %v764, 7
      %v1088 = vrot.slane %v1087, 2
      %v1089 = vrot.slane %v763, 7
      %v1090 = vrot.slane %v1089, 2
      %v1091 = vrot.slane %v765, 7
      %v1092 = vrot.slane %v1091, 2
      %v1093 = vrot.slane %v773, 7
      %v1094 = vrot.slane %v1093, 2
      %v1095 = vrot.slane %v781, 7
      %v1096 = vrot.slane %v1095, 2
      %v1097 = vrot.slane %v780, 7
      %v1098 = vrot.slane %v1097, 2
      %v1099 = vrot.slane %v782, 7
      %v1100 = vrot.slane %v1099, 2
      %v1101 = vrot.slane %v790, 7
      %v1102 = vrot.slane %v1101, 2
      %v1103 = vrot.slane %v798, 7
      %v1104 = vrot.slane %v1103, 2
      %v1105 = vrot.slane %v797, 7
      %v1106 = vrot.slane %v1105, 2
      %v1107 = vrot.slane %v799, 7
      %v1108 = vrot.slane %v1107, 2
      %v1109 = vrot.slane %v807, 7
      %v1110 = vrot.slane %v1109, 2
      %v1111 = vrot.slane %v815, 7
      %v1112 = vrot.slane %v1111, 2
      %v1113 = vrot.slane %v814, 7
      %v1114 = vrot.slane %v1113, 2
      %v1115 = vrot.slane %v816, 7
      %v1116 = vrot.slane %v1115, 2
      %v1117 = vrot.slane %v824, 7
      %v1118 = vrot.slane %v1117, 2
      %v1119 = vrot.slane %v832, 7
      %v1120 = vrot.slane %v1119, 2
      %v1121 = vrot.slane %v831, 7
      %v1122 = vrot.slane %v1121, 2
      %v1123 = vrot.slane %v833, 7
      %v1124 = vrot.slane %v1123, 2
      %v1125 = vrot.slane %v841, 7
      %v1126 = vrot.slane %v1125, 2
      %v1127 = vrot.slane %v849, 7
      %v1128 = vrot.slane %v1127, 2
      %v1129 = vrot.slane %v848, 7
      %v1130 = vrot.slane %v1129, 2
      %v1131 = vrot.slane %v850, 7
      %v1132 = vrot.slane %v1131, 2
      %v1133 = vrot.slane %v858, 7
      %v1134 = vrot.slane %v1133, 2
      %v1135 = vrot.slane %v866, 7
      %v1136 = vrot.slane %v1135, 2
      %v1137 = vrot.slane %v865, 7
      %v1138 = vrot.slane %v1137, 2
      %v1139 = vrot.slane %v867, 7
      %v1140 = vrot.slane %v1139, 2
      %v1141 = vrot.slane %v875, 7
      %v1142 = vrot.slane %v1141, 2
      %v1143 = vrot.slane %v883, 7
      %v1144 = vrot.slane %v1143, 2
      %v1145 = vrot.slane %v882, 7
      %v1146 = vrot.slane %v1145, 2
      %v1147 = vrot.slane %v884, 7
      %v1148 = vrot.slane %v1147, 2
      %v1149 = vrot.slane %v892, 7
      %v1150 = vrot.slane %v1149, 2
      %v1151 = vrot.slane %v900, 7
      %v1152 = vrot.slane %v1151, 2
      %v1153 = vrot.slane %v899, 7
      %v1154 = vrot.slane %v1153, 2
      %v1155 = vrot.slane %v901, 7
      %v1156 = vrot.slane %v1155, 2
      %v1157 = vrot.slane %v909, 7
      %v1158 = vrot.slane %v1157, 2
      %v1159 = vrot.slane %v917, 7
      %v1160 = vrot.slane %v1159, 2
      %v1161 = vrot.slane %v916, 7
      %v1162 = vrot.slane %v1161, 2
      %v1163 = vrot.slane %v918, 7
      %v1164 = vrot.slane %v1163, 2
      %v1165 = vrot.slane %v926, 7
      %v1166 = vrot.slane %v1165, 2
      %v1167 = vrot.slane %v934, 7
      %v1168 = vrot.slane %v1167, 2
      %v1169 = vrot.slane %v933, 7
      %v1170 = vrot.slane %v1169, 2
      %v1171 = vrot.slane %v935, 7
      %v1172 = vrot.slane %v1171, 2
      %v1173 = vrot.slane %v943, 7
      %v1174 = vrot.slane %v1173, 2
      %v1175 = vrot.slane %v951, 7
      %v1176 = vrot.slane %v1175, 2
      %v1177 = vrot.slane %v950, 7
      %v1178 = vrot.slane %v1177, 2
      %v1179 = vrot.slane %v952, 7
      %v1180 = vrot.slane %v1179, 2
      %v1181 = vrot.slane %v960, 7
      %v1182 = vrot.slane %v1181, 2
      %v1183 = vrot.slane %v968, 7
      %v1184 = vrot.slane %v1183, 2
      %v1185 = vrot.slane %v967, 7
      %v1186 = vrot.slane %v1185, 2
      %v1187 = vrot.slane %v969, 7
      %v1188 = vrot.slane %v1187, 2
      %v1189 = vrot.slane %v977, 7
      %v1190 = vrot.slane %v1189, 2
      %v1191 = vrot.slane %v985, 7
      %v1192 = vrot.slane %v1191, 2
      %v1193 = vrot.slane %v984, 7
      %v1194 = vrot.slane %v1193, 2
      %v1195 = vrot.slane %v986, 7
      %v1196 = vrot.slane %v1195, 2
      %v1197 = vrot.slane %v994, 7
      %v1198 = vrot.slane %v1197, 2
      %v1199 = vrot.slane %v1002, 7
      %v1200 = vrot.slane %v1199, 2
      %v1201 = vrot.slane %v1001, 7
      %v1202 = vrot.slane %v1201, 2
      %v1203 = vrot.slane %v1003, 7
      %v1204 = vrot.slane %v1203, 2
      %v1205 = vrot.slane %v1011, 7
      %v1206 = vrot.slane %v1205, 2
      %v1207 = vrot.slane %v1019, 7
      %v1208 = vrot.slane %v1207, 2
      %v1209 = vrot.slane %v1018, 7
      %v1210 = vrot.slane %v1209, 2
      %v1211 = vrot.slane %v1020, 7
      %v1212 = vrot.slane %v1211, 2
      %v1277 = vmax.f32 %v756, %v1086
      %v1278 = vmax.f32 %v764, %v1088
      %v1279 = vmax.f32 %v763, %v1090
      %v1280 = vmax.f32 %v765, %v1092
      %v1281 = vmax.f32 %v773, %v1094
      %v1282 = vmax.f32 %v781, %v1096
      %v1283 = vmax.f32 %v780, %v1098
      %v1284 = vmax.f32 %v782, %v1100
      %v1285 = vmax.f32 %v790, %v1102
      %v1286 = vmax.f32 %v798, %v1104
      %v1287 = vmax.f32 %v797, %v1106
      %v1288 = vmax.f32 %v799, %v1108
      %v1289 = vmax.f32 %v807, %v1110
      %v1290 = vmax.f32 %v815, %v1112
      %v1291 = vmax.f32 %v814, %v1114
      %v1292 = vmax.f32 %v816, %v1116
      %v1293 = vmax.f32 %v824, %v1118
      %v1294 = vmax.f32 %v832, %v1120
      %v1295 = vmax.f32 %v831, %v1122
      %v1296 = vmax.f32 %v833, %v1124
      %v1297 = vmax.f32 %v841, %v1126
      %v1298 = vmax.f32 %v849, %v1128
      %v1299 = vmax.f32 %v848, %v1130
      %v1300 = vmax.f32 %v850, %v1132
      %v1301 = vmax.f32 %v858, %v1134
      %v1302 = vmax.f32 %v866, %v1136
      %v1303 = vmax.f32 %v865, %v1138
      %v1304 = vmax.f32 %v867, %v1140
      %v1305 = vmax.f32 %v875, %v1142
      %v1306 = vmax.f32 %v883, %v1144
      %v1307 = vmax.f32 %v882, %v1146
      %v1308 = vmax.f32 %v884, %v1148
      %v1309 = vmax.f32 %v892, %v1150
      %v1310 = vmax.f32 %v900, %v1152
      %v1311 = vmax.f32 %v899, %v1154
      %v1312 = vmax.f32 %v901, %v1156
      %v1313 = vmax.f32 %v909, %v1158
      %v1314 = vmax.f32 %v917, %v1160
      %v1315 = vmax.f32 %v916, %v1162
      %v1316 = vmax.f32 %v918, %v1164
      %v1317 = vmax.f32 %v926, %v1166
      %v1318 = vmax.f32 %v934, %v1168
      %v1319 = vmax.f32 %v933, %v1170
      %v1320 = vmax.f32 %v935, %v1172
      %v1321 = vmax.f32 %v943, %v1174
      %v1322 = vmax.f32 %v951, %v1176
      %v1323 = vmax.f32 %v950, %v1178
      %v1324 = vmax.f32 %v952, %v1180
      %v1325 = vmax.f32 %v960, %v1182
      %v1326 = vmax.f32 %v968, %v1184
      %v1327 = vmax.f32 %v967, %v1186
      %v1328 = vmax.f32 %v969, %v1188
      %v1329 = vmax.f32 %v977, %v1190
      %v1330 = vmax.f32 %v985, %v1192
      %v1331 = vmax.f32 %v984, %v1194
      %v1332 = vmax.f32 %v986, %v1196
      %v1333 = vmax.f32 %v994, %v1198
      %v1334 = vmax.f32 %v1002, %v1200
      %v1335 = vmax.f32 %v1001, %v1202
      %v1336 = vmax.f32 %v1003, %v1204
      %v1337 = vmax.f32 %v1011, %v1206
      %v1338 = vmax.f32 %v1019, %v1208
      %v1339 = vmax.f32 %v1018, %v1210
      %v1340 = vmax.f32 %v1020, %v1212
      %vm1341 = vcmask 257024
      %1342 = vst.msk [vmem:[#allocation2] sm:$0xf] %vm1341, 0
      %vm1343 = vcmask 253952
      %1344 = vst.msk [vmem:[#allocation2 + $0x4] sm:$0x1] %vm1343, 0
      %1345 = vst.msk [vmem:[#allocation2 + $0x8] sm:$0xf] %vm1341, 0
      %1346 = vst.msk [vmem:[#allocation2 + $0xc] sm:$0x1] %vm1343, 0
      %1347 = vst.msk [vmem:[#allocation2 + $0x10] sm:$0xf] %vm1341, 0
      %1348 = vst.msk [vmem:[#allocation2 + $0x14] sm:$0x1] %vm1343, 0
      %1349 = vst.msk [vmem:[#allocation2 + $0x18] sm:$0xf] %vm1341, 0
      %1350 = vst.msk [vmem:[#allocation2 + $0x1c] sm:$0x1] %vm1343, 0
      %1351 = vst.msk [vmem:[#allocation2 + $0x20] sm:$0xf] %vm1341, 0
      %1352 = vst.msk [vmem:[#allocation2 + $0x24] sm:$0x1] %vm1343, 0
      %1353 = vst.msk [vmem:[#allocation2 + $0x28] sm:$0xf] %vm1341, 0
      %1354 = vst.msk [vmem:[#allocation2 + $0x2c] sm:$0x1] %vm1343, 0
      %1355 = vst.msk [vmem:[#allocation2 + $0x30] sm:$0xf] %vm1341, 0
      %1356 = vst.msk [vmem:[#allocation2 + $0x34] sm:$0x1] %vm1343, 0
      %1357 = vst.msk [vmem:[#allocation2 + $0x38] sm:$0xf] %vm1341, 0
      %1358 = vst.msk [vmem:[#allocation2 + $0x3c] sm:$0x1] %vm1343, 0
      %1359 = vst.msk [vmem:[#allocation2 + $0x40] sm:$0xf] %vm1341, 0
      %1360 = vst.msk [vmem:[#allocation2 + $0x44] sm:$0x1] %vm1343, 0
      %1361 = vst.msk [vmem:[#allocation2 + $0x48] sm:$0xf] %vm1341, 0
      %1362 = vst.msk [vmem:[#allocation2 + $0x4c] sm:$0x1] %vm1343, 0
      %v1363 = vpack.c.bf16 %v1277, %v1277
      %v1364 = vpack.c.bf16 %v1278, %v1278
      %v1365 = vpack.c.bf16 %v1279, %v1279
      %v1366 = vpack.c.bf16 %v1280, %v1280
      %v1367 = vpack.c.bf16 %v1281, %v1281
      %v1368 = vpack.c.bf16 %v1282, %v1282
      %v1369 = vpack.c.bf16 %v1283, %v1283
      %v1370 = vpack.c.bf16 %v1284, %v1284
      %v1371 = vpack.c.bf16 %v1285, %v1285
      %v1372 = vpack.c.bf16 %v1286, %v1286
      %v1373 = vpack.c.bf16 %v1287, %v1287
      %v1374 = vpack.c.bf16 %v1288, %v1288
      %v1375 = vpack.c.bf16 %v1289, %v1289
      %v1376 = vpack.c.bf16 %v1290, %v1290
      %v1377 = vpack.c.bf16 %v1291, %v1291
      %v1378 = vpack.c.bf16 %v1292, %v1292
      %v1379 = vpack.c.bf16 %v1293, %v1293
      %v1380 = vpack.c.bf16 %v1294, %v1294
      %v1381 = vpack.c.bf16 %v1295, %v1295
      %v1382 = vpack.c.bf16 %v1296, %v1296
      %v1383 = vpack.c.bf16 %v1297, %v1297
      %v1384 = vpack.c.bf16 %v1298, %v1298
      %v1385 = vpack.c.bf16 %v1299, %v1299
      %v1386 = vpack.c.bf16 %v1300, %v1300
      %v1387 = vpack.c.bf16 %v1301, %v1301
      %v1388 = vpack.c.bf16 %v1302, %v1302
      %v1389 = vpack.c.bf16 %v1303, %v1303
      %v1390 = vpack.c.bf16 %v1304, %v1304
      %v1391 = vpack.c.bf16 %v1305, %v1305
      %v1392 = vpack.c.bf16 %v1306, %v1306
      %v1393 = vpack.c.bf16 %v1307, %v1307
      %v1394 = vpack.c.bf16 %v1308, %v1308
      %v1395 = vpack.c.bf16 %v1309, %v1309
      %v1396 = vpack.c.bf16 %v1310, %v1310
      %v1397 = vpack.c.bf16 %v1311, %v1311
      %v1398 = vpack.c.bf16 %v1312, %v1312
      %v1399 = vpack.c.bf16 %v1313, %v1313
      %v1400 = vpack.c.bf16 %v1314, %v1314
      %v1401 = vpack.c.bf16 %v1315, %v1315
      %v1402 = vpack.c.bf16 %v1316, %v1316
      %v1403 = vpack.c.bf16 %v1317, %v1317
      %v1404 = vpack.c.bf16 %v1318, %v1318
      %v1405 = vpack.c.bf16 %v1319, %v1319
      %v1406 = vpack.c.bf16 %v1320, %v1320
      %v1407 = vpack.c.bf16 %v1321, %v1321
      %v1408 = vpack.c.bf16 %v1322, %v1322
      %v1409 = vpack.c.bf16 %v1323, %v1323
      %v1410 = vpack.c.bf16 %v1324, %v1324
      %v1411 = vpack.c.bf16 %v1325, %v1325
      %v1412 = vpack.c.bf16 %v1326, %v1326
      %v1413 = vpack.c.bf16 %v1327, %v1327
      %v1414 = vpack.c.bf16 %v1328, %v1328
      %v1415 = vpack.c.bf16 %v1329, %v1329
      %v1416 = vpack.c.bf16 %v1330, %v1330
      %v1417 = vpack.c.bf16 %v1331, %v1331
      %v1418 = vpack.c.bf16 %v1332, %v1332
      %v1419 = vpack.c.bf16 %v1333, %v1333
      %v1420 = vpack.c.bf16 %v1334, %v1334
      %v1421 = vpack.c.bf16 %v1335, %v1335
      %v1422 = vpack.c.bf16 %v1336, %v1336
      %v1423 = vpack.c.bf16 %v1337, %v1337
      %v1424 = vpack.c.bf16 %v1338, %v1338
      %v1425 = vpack.c.bf16 %v1339, %v1339
      %v1426 = vpack.c.bf16 %v1340, %v1340
      %v1491 = vunpack.c.l.b16 %v1363
      %v1492 = vunpack.c.l.b16 %v1364
      %v1493 = vunpack.c.l.b16 %v1365
      %v1494 = vunpack.c.l.b16 %v1366
      %v1495 = vunpack.c.l.b16 %v1367
      %v1496 = vunpack.c.l.b16 %v1368
      %v1497 = vunpack.c.l.b16 %v1369
      %v1498 = vunpack.c.l.b16 %v1370
      %v1499 = vunpack.c.l.b16 %v1371
      %v1500 = vunpack.c.l.b16 %v1372
      %v1501 = vunpack.c.l.b16 %v1373
      %v1502 = vunpack.c.l.b16 %v1374
      %v1503 = vunpack.c.l.b16 %v1375
      %v1504 = vunpack.c.l.b16 %v1376
      %v1505 = vunpack.c.l.b16 %v1377
      %v1506 = vunpack.c.l.b16 %v1378
      %v1507 = vunpack.c.l.b16 %v1379
      %v1508 = vunpack.c.l.b16 %v1380
      %v1509 = vunpack.c.l.b16 %v1381
      %v1510 = vunpack.c.l.b16 %v1382
      %v1511 = vunpack.c.l.b16 %v1383
      %v1512 = vunpack.c.l.b16 %v1384
      %v1513 = vunpack.c.l.b16 %v1385
      %v1514 = vunpack.c.l.b16 %v1386
      %v1515 = vunpack.c.l.b16 %v1387
      %v1516 = vunpack.c.l.b16 %v1388
      %v1517 = vunpack.c.l.b16 %v1389
      %v1518 = vunpack.c.l.b16 %v1390
      %v1519 = vunpack.c.l.b16 %v1391
      %v1520 = vunpack.c.l.b16 %v1392
      %v1521 = vunpack.c.l.b16 %v1393
      %v1522 = vunpack.c.l.b16 %v1394
      %v1523 = vunpack.c.l.b16 %v1395
      %v1524 = vunpack.c.l.b16 %v1396
      %v1525 = vunpack.c.l.b16 %v1397
      %v1526 = vunpack.c.l.b16 %v1398
      %v1527 = vunpack.c.l.b16 %v1399
      %v1528 = vunpack.c.l.b16 %v1400
      %v1529 = vunpack.c.l.b16 %v1401
      %v1530 = vunpack.c.l.b16 %v1402
      %v1531 = vunpack.c.l.b16 %v1403
      %v1532 = vunpack.c.l.b16 %v1404
      %v1533 = vunpack.c.l.b16 %v1405
      %v1534 = vunpack.c.l.b16 %v1406
      %v1535 = vunpack.c.l.b16 %v1407
      %v1536 = vunpack.c.l.b16 %v1408
      %v1537 = vunpack.c.l.b16 %v1409
      %v1538 = vunpack.c.l.b16 %v1410
      %v1539 = vunpack.c.l.b16 %v1411
      %v1540 = vunpack.c.l.b16 %v1412
      %v1541 = vunpack.c.l.b16 %v1413
      %v1542 = vunpack.c.l.b16 %v1414
      %v1543 = vunpack.c.l.b16 %v1415
      %v1544 = vunpack.c.l.b16 %v1416
      %v1545 = vunpack.c.l.b16 %v1417
      %v1546 = vunpack.c.l.b16 %v1418
      %v1547 = vunpack.c.l.b16 %v1419
      %v1548 = vunpack.c.l.b16 %v1420
      %v1549 = vunpack.c.l.b16 %v1421
      %v1550 = vunpack.c.l.b16 %v1422
      %v1551 = vunpack.c.l.b16 %v1423
      %v1552 = vunpack.c.l.b16 %v1424
      %v1553 = vunpack.c.l.b16 %v1425
      %v1554 = vunpack.c.l.b16 %v1426
      %v1555 = vpack.c.b16 %v1491, %v1491
      %v1556 = vpack.c.b16 %v1492, %v1492
      %v1557 = vpack.c.b16 %v1493, %v1493
      %v1558 = vpack.c.b16 %v1494, %v1494
      %v1559 = vpack.c.b16 %v1495, %v1495
      %v1560 = vpack.c.b16 %v1496, %v1496
      %v1561 = vpack.c.b16 %v1497, %v1497
      %v1562 = vpack.c.b16 %v1498, %v1498
      %v1563 = vpack.c.b16 %v1499, %v1499
      %v1564 = vpack.c.b16 %v1500, %v1500
      %v1565 = vpack.c.b16 %v1501, %v1501
      %v1566 = vpack.c.b16 %v1502, %v1502
      %v1567 = vpack.c.b16 %v1503, %v1503
      %v1568 = vpack.c.b16 %v1504, %v1504
      %v1569 = vpack.c.b16 %v1505, %v1505
      %v1570 = vpack.c.b16 %v1506, %v1506
      %v1571 = vpack.c.b16 %v1507, %v1507
      %v1572 = vpack.c.b16 %v1508, %v1508
      %v1573 = vpack.c.b16 %v1509, %v1509
      %v1574 = vpack.c.b16 %v1510, %v1510
      %v1575 = vpack.c.b16 %v1511, %v1511
      %v1576 = vpack.c.b16 %v1512, %v1512
      %v1577 = vpack.c.b16 %v1513, %v1513
      %v1578 = vpack.c.b16 %v1514, %v1514
      %v1579 = vpack.c.b16 %v1515, %v1515
      %v1580 = vpack.c.b16 %v1516, %v1516
      %v1581 = vpack.c.b16 %v1517, %v1517
      %v1582 = vpack.c.b16 %v1518, %v1518
      %v1583 = vpack.c.b16 %v1519, %v1519
      %v1584 = vpack.c.b16 %v1520, %v1520
      %v1585 = vpack.c.b16 %v1521, %v1521
      %v1586 = vpack.c.b16 %v1522, %v1522
      %v1587 = vpack.c.b16 %v1523, %v1523
      %v1588 = vpack.c.b16 %v1524, %v1524
      %v1589 = vpack.c.b16 %v1525, %v1525
      %v1590 = vpack.c.b16 %v1526, %v1526
      %v1591 = vpack.c.b16 %v1527, %v1527
      %v1592 = vpack.c.b16 %v1528, %v1528
      %v1593 = vpack.c.b16 %v1529, %v1529
      %v1594 = vpack.c.b16 %v1530, %v1530
      %v1595 = vpack.c.b16 %v1531, %v1531
      %v1596 = vpack.c.b16 %v1532, %v1532
      %v1597 = vpack.c.b16 %v1533, %v1533
      %v1598 = vpack.c.b16 %v1534, %v1534
      %v1599 = vpack.c.b16 %v1535, %v1535
      %v1600 = vpack.c.b16 %v1536, %v1536
      %v1601 = vpack.c.b16 %v1537, %v1537
      %v1602 = vpack.c.b16 %v1538, %v1538
      %v1603 = vpack.c.b16 %v1539, %v1539
      %v1604 = vpack.c.b16 %v1540, %v1540
      %v1605 = vpack.c.b16 %v1541, %v1541
      %v1606 = vpack.c.b16 %v1542, %v1542
      %v1607 = vpack.c.b16 %v1543, %v1543
      %v1608 = vpack.c.b16 %v1544, %v1544
      %v1609 = vpack.c.b16 %v1545, %v1545
      %v1610 = vpack.c.b16 %v1546, %v1546
      %v1611 = vpack.c.b16 %v1547, %v1547
      %v1612 = vpack.c.b16 %v1548, %v1548
      %v1613 = vpack.c.b16 %v1549, %v1549
      %v1614 = vpack.c.b16 %v1550, %v1550
      %v1615 = vpack.c.b16 %v1551, %v1551
      %v1616 = vpack.c.b16 %v1552, %v1552
      %v1617 = vpack.c.b16 %v1553, %v1553
      %v1618 = vpack.c.b16 %v1554, %v1554
      %v1619 = vunpack.c.l.b16 %v1555
      %v1620 = vunpack.c.l.b16 %v1556
      %v1621 = vunpack.c.l.b16 %v1557
      %v1622 = vunpack.c.l.b16 %v1558
      %v1623 = vunpack.c.l.b16 %v1559
      %v1624 = vunpack.c.l.b16 %v1560
      %v1625 = vunpack.c.l.b16 %v1561
      %v1626 = vunpack.c.l.b16 %v1562
      %v1627 = vunpack.c.l.b16 %v1563
      %v1628 = vunpack.c.l.b16 %v1564
      %v1629 = vunpack.c.l.b16 %v1565
      %v1630 = vunpack.c.l.b16 %v1566
      %v1631 = vunpack.c.l.b16 %v1567
      %v1632 = vunpack.c.l.b16 %v1568
      %v1633 = vunpack.c.l.b16 %v1569
      %v1634 = vunpack.c.l.b16 %v1570
      %v1635 = vunpack.c.l.b16 %v1571
      %v1636 = vunpack.c.l.b16 %v1572
      %v1637 = vunpack.c.l.b16 %v1573
      %v1638 = vunpack.c.l.b16 %v1574
      %v1639 = vunpack.c.l.b16 %v1575
      %v1640 = vunpack.c.l.b16 %v1576
      %v1641 = vunpack.c.l.b16 %v1577
      %v1642 = vunpack.c.l.b16 %v1578
      %v1643 = vunpack.c.l.b16 %v1579
      %v1644 = vunpack.c.l.b16 %v1580
      %v1645 = vunpack.c.l.b16 %v1581
      %v1646 = vunpack.c.l.b16 %v1582
      %v1647 = vunpack.c.l.b16 %v1583
      %v1648 = vunpack.c.l.b16 %v1584
      %v1649 = vunpack.c.l.b16 %v1585
      %v1650 = vunpack.c.l.b16 %v1586
      %v1651 = vunpack.c.l.b16 %v1587
      %v1652 = vunpack.c.l.b16 %v1588
      %v1653 = vunpack.c.l.b16 %v1589
      %v1654 = vunpack.c.l.b16 %v1590
      %v1655 = vunpack.c.l.b16 %v1591
      %v1656 = vunpack.c.l.b16 %v1592
      %v1657 = vunpack.c.l.b16 %v1593
      %v1658 = vunpack.c.l.b16 %v1594
      %v1659 = vunpack.c.l.b16 %v1595
      %v1660 = vunpack.c.l.b16 %v1596
      %v1661 = vunpack.c.l.b16 %v1597
      %v1662 = vunpack.c.l.b16 %v1598
      %v1663 = vunpack.c.l.b16 %v1599
      %v1664 = vunpack.c.l.b16 %v1600
      %v1665 = vunpack.c.l.b16 %v1601
      %v1666 = vunpack.c.l.b16 %v1602
      %v1667 = vunpack.c.l.b16 %v1603
      %v1668 = vunpack.c.l.b16 %v1604
      %v1669 = vunpack.c.l.b16 %v1605
      %v1670 = vunpack.c.l.b16 %v1606
      %v1671 = vunpack.c.l.b16 %v1607
      %v1672 = vunpack.c.l.b16 %v1608
      %v1673 = vunpack.c.l.b16 %v1609
      %v1674 = vunpack.c.l.b16 %v1610
      %v1675 = vunpack.c.l.b16 %v1611
      %v1676 = vunpack.c.l.b16 %v1612
      %v1677 = vunpack.c.l.b16 %v1613
      %v1678 = vunpack.c.l.b16 %v1614
      %v1679 = vunpack.c.l.b16 %v1615
      %v1680 = vunpack.c.l.b16 %v1616
      %v1681 = vunpack.c.l.b16 %v1617
      %v1682 = vunpack.c.l.b16 %v1618
      %v1683 = vrot.slane %v1619, 7
      %v1684 = vrot.slane %v1620, 6
      %vm1685 = vcmask 1042434
      %v1686 = vsel %vm1685, %v1684, %v1683
      %v1687 = vrot.slane %v1621, 5
      %vm1688 = vcmask 1043459
      %v1689 = vsel %vm1688, %v1687, %v1686
      %v1690 = vrot.slane %v1622, 4
      %vm1691 = vcmask 1044484
      %v1692 = vsel %vm1691, %v1690, %v1689
      %v1693 = vrot.slane %v1623, 3
      %vm1694 = vcmask 1045509
      %v1695 = vsel %vm1694, %v1693, %v1692
      %v1696 = vrot.slane %v1624, 2
      %vm1697 = vcmask 1046534
      %v1698 = vsel %vm1697, %v1696, %v1695
      %v1699 = vrot.slane %v1625, 1
      %vm1700 = vcmask 1047559
      %v1701 = vsel %vm1700, %v1699, %v1698
      %v1702 = vrot.slane %v1627, 7
      %v1703 = vrot.slane %v1628, 6
      %v1704 = vsel %vm1685, %v1703, %v1702
      %v1705 = vrot.slane %v1629, 5
      %v1706 = vsel %vm1688, %v1705, %v1704
      %v1707 = vrot.slane %v1630, 4
      %v1708 = vsel %vm1691, %v1707, %v1706
      %v1709 = vrot.slane %v1631, 3
      %v1710 = vsel %vm1694, %v1709, %v1708
      %v1711 = vrot.slane %v1632, 2
      %v1712 = vsel %vm1697, %v1711, %v1710
      %v1713 = vrot.slane %v1633, 1
      %v1714 = vsel %vm1700, %v1713, %v1712
      %v1715 = vrot.slane %v1635, 7
      %v1716 = vrot.slane %v1636, 6
      %v1717 = vsel %vm1685, %v1716, %v1715
      %v1718 = vrot.slane %v1637, 5
      %v1719 = vsel %vm1688, %v1718, %v1717
      %v1720 = vrot.slane %v1638, 4
      %v1721 = vsel %vm1691, %v1720, %v1719
      %v1722 = vrot.slane %v1639, 3
      %v1723 = vsel %vm1694, %v1722, %v1721
      %v1724 = vrot.slane %v1640, 2
      %v1725 = vsel %vm1697, %v1724, %v1723
      %v1726 = vrot.slane %v1641, 1
      %v1727 = vsel %vm1700, %v1726, %v1725
      %v1728 = vrot.slane %v1643, 7
      %v1729 = vrot.slane %v1644, 6
      %v1730 = vsel %vm1685, %v1729, %v1728
      %v1731 = vrot.slane %v1645, 5
      %v1732 = vsel %vm1688, %v1731, %v1730
      %v1733 = vrot.slane %v1646, 4
      %v1734 = vsel %vm1691, %v1733, %v1732
      %v1735 = vrot.slane %v1647, 3
      %v1736 = vsel %vm1694, %v1735, %v1734
      %v1737 = vrot.slane %v1648, 2
      %v1738 = vsel %vm1697, %v1737, %v1736
      %v1739 = vrot.slane %v1649, 1
      %v1740 = vsel %vm1700, %v1739, %v1738
      %v1741 = vrot.slane %v1651, 7
      %v1742 = vrot.slane %v1652, 6
      %v1743 = vsel %vm1685, %v1742, %v1741
      %v1744 = vrot.slane %v1653, 5
      %v1745 = vsel %vm1688, %v1744, %v1743
      %v1746 = vrot.slane %v1654, 4
      %v1747 = vsel %vm1691, %v1746, %v1745
      %v1748 = vrot.slane %v1655, 3
      %v1749 = vsel %vm1694, %v1748, %v1747
      %v1750 = vrot.slane %v1656, 2
      %v1751 = vsel %vm1697, %v1750, %v1749
      %v1752 = vrot.slane %v1657, 1
      %v1753 = vsel %vm1700, %v1752, %v1751
      %v1754 = vrot.slane %v1659, 7
      %v1755 = vrot.slane %v1660, 6
      %v1756 = vsel %vm1685, %v1755, %v1754
      %v1757 = vrot.slane %v1661, 5
      %v1758 = vsel %vm1688, %v1757, %v1756
      %v1759 = vrot.slane %v1662, 4
      %v1760 = vsel %vm1691, %v1759, %v1758
      %v1761 = vrot.slane %v1663, 3
      %v1762 = vsel %vm1694, %v1761, %v1760
      %v1763 = vrot.slane %v1664, 2
      %v1764 = vsel %vm1697, %v1763, %v1762
      %v1765 = vrot.slane %v1665, 1
      %v1766 = vsel %vm1700, %v1765, %v1764
      %v1767 = vrot.slane %v1667, 7
      %v1768 = vrot.slane %v1668, 6
      %v1769 = vsel %vm1685, %v1768, %v1767
      %v1770 = vrot.slane %v1669, 5
      %v1771 = vsel %vm1688, %v1770, %v1769
      %v1772 = vrot.slane %v1670, 4
      %v1773 = vsel %vm1691, %v1772, %v1771
      %v1774 = vrot.slane %v1671, 3
      %v1775 = vsel %vm1694, %v1774, %v1773
      %v1776 = vrot.slane %v1672, 2
      %v1777 = vsel %vm1697, %v1776, %v1775
      %v1778 = vrot.slane %v1673, 1
      %v1779 = vsel %vm1700, %v1778, %v1777
      %v1780 = vrot.slane %v1675, 7
      %v1781 = vrot.slane %v1676, 6
      %v1782 = vsel %vm1685, %v1781, %v1780
      %v1783 = vrot.slane %v1677, 5
      %v1784 = vsel %vm1688, %v1783, %v1782
      %v1785 = vrot.slane %v1678, 4
      %v1786 = vsel %vm1691, %v1785, %v1784
      %v1787 = vrot.slane %v1679, 3
      %v1788 = vsel %vm1694, %v1787, %v1786
      %v1789 = vrot.slane %v1680, 2
      %v1790 = vsel %vm1697, %v1789, %v1788
      %v1791 = vrot.slane %v1681, 1
      %v1792 = vsel %vm1700, %v1791, %v1790
      %v1793 = vpack.c.b16 %v1701, %v1701
      %v1794 = vpack.c.b16 %v1626, %v1626
      %v1795 = vpack.c.b16 %v1714, %v1714
      %v1796 = vpack.c.b16 %v1634, %v1634
      %v1797 = vpack.c.b16 %v1727, %v1727
      %v1798 = vpack.c.b16 %v1642, %v1642
      %v1799 = vpack.c.b16 %v1740, %v1740
      %v1800 = vpack.c.b16 %v1650, %v1650
      %v1801 = vpack.c.b16 %v1753, %v1753
      %v1802 = vpack.c.b16 %v1658, %v1658
      %v1803 = vpack.c.b16 %v1766, %v1766
      %v1804 = vpack.c.b16 %v1666, %v1666
      %v1805 = vpack.c.b16 %v1779, %v1779
      %v1806 = vpack.c.b16 %v1674, %v1674
      %v1807 = vpack.c.b16 %v1792, %v1792
      %v1808 = vpack.c.b16 %v1682, %v1682
      %s1825 = scalar_lea.vmem [#allocation2], 8
      %vm1826 = vcmask 257024
      %vm1827 = vsmask.f32 7938
      %vm1828 = vmand %vm1826, %vm1827
      %v1829 = vld [vmem:[%s1825] sm:$0xf]
      %v1830 = vsel %vm1828, %v1793, %v1829
      %1831 = vst [vmem:[%s1825] sm:$0xf] %v1830
      %vm1832 = vcmask 253952
      %vm1833 = vsmask.f32 256
      %vm1834 = vmand %vm1832, %vm1833
      %v1835 = vld [vmem:[%s1825 + $0x4] sm:$0x1]
      %v1836 = vsel %vm1834, %v1794, %v1835
      %1837 = vst [vmem:[%s1825 + $0x4] sm:$0x1] %v1836
      %v1838 = vld [vmem:[%s1825 + $0x8] sm:$0xf]
      %v1839 = vsel %vm1828, %v1795, %v1838
      %1840 = vst [vmem:[%s1825 + $0x8] sm:$0xf] %v1839
      %v1841 = vld [vmem:[%s1825 + $0xc] sm:$0x1]
      %v1842 = vsel %vm1834, %v1796, %v1841
      %1843 = vst [vmem:[%s1825 + $0xc] sm:$0x1] %v1842
      %v1844 = vld [vmem:[%s1825 + $0x10] sm:$0xf]
      %v1845 = vsel %vm1828, %v1797, %v1844
      %1846 = vst [vmem:[%s1825 + $0x10] sm:$0xf] %v1845
      %v1847 = vld [vmem:[%s1825 + $0x14] sm:$0x1]
      %v1848 = vsel %vm1834, %v1798, %v1847
      %1849 = vst [vmem:[%s1825 + $0x14] sm:$0x1] %v1848
      %v1850 = vld [vmem:[%s1825 + $0x18] sm:$0xf]
      %v1851 = vsel %vm1828, %v1799, %v1850
      %1852 = vst [vmem:[%s1825 + $0x18] sm:$0xf] %v1851
      %v1853 = vld [vmem:[%s1825 + $0x1c] sm:$0x1]
      %v1854 = vsel %vm1834, %v1800, %v1853
      %1855 = vst [vmem:[%s1825 + $0x1c] sm:$0x1] %v1854
      %v1856 = vld [vmem:[%s1825 + $0x20] sm:$0xf]
      %v1857 = vsel %vm1828, %v1801, %v1856
      %1858 = vst [vmem:[%s1825 + $0x20] sm:$0xf] %v1857
      %v1859 = vld [vmem:[%s1825 + $0x24] sm:$0x1]
      %v1860 = vsel %vm1834, %v1802, %v1859
      %1861 = vst [vmem:[%s1825 + $0x24] sm:$0x1] %v1860
      %v1862 = vld [vmem:[%s1825 + $0x28] sm:$0xf]
      %v1863 = vsel %vm1828, %v1803, %v1862
      %1864 = vst [vmem:[%s1825 + $0x28] sm:$0xf] %v1863
      %v1865 = vld [vmem:[%s1825 + $0x2c] sm:$0x1]
      %v1866 = vsel %vm1834, %v1804, %v1865
      %1867 = vst [vmem:[%s1825 + $0x2c] sm:$0x1] %v1866
      %v1868 = vld [vmem:[%s1825 + $0x30] sm:$0xf]
      %v1869 = vsel %vm1828, %v1805, %v1868
      %1870 = vst [vmem:[%s1825 + $0x30] sm:$0xf] %v1869
      %v1871 = vld [vmem:[%s1825 + $0x34] sm:$0x1]
      %v1872 = vsel %vm1834, %v1806, %v1871
      %1873 = vst [vmem:[%s1825 + $0x34] sm:$0x1] %v1872
      %v1874 = vld [vmem:[%s1825 + $0x38] sm:$0xf]
      %v1875 = vsel %vm1828, %v1807, %v1874
      %1876 = vst [vmem:[%s1825 + $0x38] sm:$0xf] %v1875
      %v1877 = vld [vmem:[%s1825 + $0x3c] sm:$0x1]
      %v1878 = vsel %vm1834, %v1808, %v1877
      %1879 = vst [vmem:[%s1825 + $0x3c] sm:$0x1] %v1878
      %v1880 = vld [vmem:[#allocation2] sm:$0xf]
      %v1881 = vld [vmem:[#allocation2 + $0x4] sm:$0x1]
      %v1882 = vld [vmem:[#allocation2 + $0x8] sm:$0xf]
      %v1883 = vld [vmem:[#allocation2 + $0xc] sm:$0x1]
      %v1884 = vld [vmem:[#allocation2 + $0x10] sm:$0xf]
      %v1885 = vld [vmem:[#allocation2 + $0x14] sm:$0x1]
      %v1886 = vld [vmem:[#allocation2 + $0x18] sm:$0xf]
      %v1887 = vld [vmem:[#allocation2 + $0x1c] sm:$0x1]
      %v1888 = vld [vmem:[#allocation2 + $0x20] sm:$0xf]
      %v1889 = vld [vmem:[#allocation2 + $0x24] sm:$0x1]
      %v1890 = vld [vmem:[#allocation2 + $0x28] sm:$0xf]
      %v1891 = vld [vmem:[#allocation2 + $0x2c] sm:$0x1]
      %v1892 = vld [vmem:[#allocation2 + $0x30] sm:$0xf]
      %v1893 = vld [vmem:[#allocation2 + $0x34] sm:$0x1]
      %v1894 = vld [vmem:[#allocation2 + $0x38] sm:$0xf]
      %v1895 = vld [vmem:[#allocation2 + $0x3c] sm:$0x1]
      %v1896 = vld [vmem:[#allocation2 + $0x40] sm:$0xf]
      %v1897 = vld [vmem:[#allocation2 + $0x44] sm:$0x1]
      %v1898 = vld [vmem:[#allocation2 + $0x48] sm:$0xf]
      %v1899 = vld [vmem:[#allocation2 + $0x4c] sm:$0x1]
      %vm1900 = vsmask.f32 3328
      %vm1901 = vsmask.f32 7440
      %vm1902 = vmor %vm1900, %vm1901
      %v1904 = vshrl.u32 %v1880, 16
      %v1906 = vrot.slane %v1904, 4
      %v1907 = vshll.u32 %v1880, 16
      %v1909 = vrot.slane %v1907, 5
      %v1910 = vor.u32 %v1906, %v1909
      %v1911 = vrot.slane %v1910, 4
      %v1913 = vshll.u32 %v1881, 16
      %v1915 = vrot.slane %v1913, 5
      %v1916 = vsel %vm1902, %v1911, %v1915
      %v1918 = vshrl.u32 %v1882, 16
      %v1920 = vrot.slane %v1918, 4
      %v1921 = vshll.u32 %v1882, 16
      %v1923 = vrot.slane %v1921, 5
      %v1924 = vor.u32 %v1920, %v1923
      %v1925 = vrot.slane %v1924, 4
      %v1927 = vshll.u32 %v1883, 16
      %v1929 = vrot.slane %v1927, 5
      %v1930 = vsel %vm1902, %v1925, %v1929
      %v1932 = vshrl.u32 %v1884, 16
      %v1934 = vrot.slane %v1932, 4
      %v1935 = vshll.u32 %v1884, 16
      %v1937 = vrot.slane %v1935, 5
      %v1938 = vor.u32 %v1934, %v1937
      %v1939 = vrot.slane %v1938, 4
      %v1941 = vshll.u32 %v1885, 16
      %v1943 = vrot.slane %v1941, 5
      %v1944 = vsel %vm1902, %v1939, %v1943
      %v1946 = vshrl.u32 %v1886, 16
      %v1948 = vrot.slane %v1946, 4
      %v1949 = vshll.u32 %v1886, 16
      %v1951 = vrot.slane %v1949, 5
      %v1952 = vor.u32 %v1948, %v1951
      %v1953 = vrot.slane %v1952, 4
      %v1955 = vshll.u32 %v1887, 16
      %v1957 = vrot.slane %v1955, 5
      %v1958 = vsel %vm1902, %v1953, %v1957
      %v1960 = vshrl.u32 %v1888, 16
      %v1962 = vrot.slane %v1960, 4
      %v1963 = vshll.u32 %v1888, 16
      %v1965 = vrot.slane %v1963, 5
      %v1966 = vor.u32 %v1962, %v1965
      %v1967 = vrot.slane %v1966, 4
      %v1969 = vshll.u32 %v1889, 16
      %v1971 = vrot.slane %v1969, 5
      %v1972 = vsel %vm1902, %v1967, %v1971
      %v1974 = vshrl.u32 %v1890, 16
      %v1976 = vrot.slane %v1974, 4
      %v1977 = vshll.u32 %v1890, 16
      %v1979 = vrot.slane %v1977, 5
      %v1980 = vor.u32 %v1976, %v1979
      %v1981 = vrot.slane %v1980, 4
      %v1983 = vshll.u32 %v1891, 16
      %v1985 = vrot.slane %v1983, 5
      %v1986 = vsel %vm1902, %v1981, %v1985
      %v1988 = vshrl.u32 %v1892, 16
      %v1990 = vrot.slane %v1988, 4
      %v1991 = vshll.u32 %v1892, 16
      %v1993 = vrot.slane %v1991, 5
      %v1994 = vor.u32 %v1990, %v1993
      %v1995 = vrot.slane %v1994, 4
      %v1997 = vshll.u32 %v1893, 16
      %v1999 = vrot.slane %v1997, 5
      %v2000 = vsel %vm1902, %v1995, %v1999
      %v2002 = vshrl.u32 %v1894, 16
      %v2004 = vrot.slane %v2002, 4
      %v2005 = vshll.u32 %v1894, 16
      %v2007 = vrot.slane %v2005, 5
      %v2008 = vor.u32 %v2004, %v2007
      %v2009 = vrot.slane %v2008, 4
      %v2011 = vshll.u32 %v1895, 16
      %v2013 = vrot.slane %v2011, 5
      %v2014 = vsel %vm1902, %v2009, %v2013
      %vm2031 = vcmask 1042432
      %vm2032 = vcmask 1046532
      %vm2033 = vmor %vm2031, %vm2032
      %v2034 = vrot.slane %v1880, 5
      %v2035 = vrot.slane %v2034, 4
      %v2036 = vrot.slane %v1881, 5
      %v2037 = vsel %vm2033, %v2035, %v2036
      %v2038 = vrot.slane %v1882, 5
      %v2039 = vrot.slane %v2038, 4
      %v2040 = vrot.slane %v1883, 5
      %v2041 = vsel %vm2033, %v2039, %v2040
      %v2042 = vrot.slane %v1884, 5
      %v2043 = vrot.slane %v2042, 4
      %v2044 = vrot.slane %v1885, 5
      %v2045 = vsel %vm2033, %v2043, %v2044
      %v2046 = vrot.slane %v1886, 5
      %v2047 = vrot.slane %v2046, 4
      %v2048 = vrot.slane %v1887, 5
      %v2049 = vsel %vm2033, %v2047, %v2048
      %v2050 = vrot.slane %v1888, 5
      %v2051 = vrot.slane %v2050, 4
      %v2052 = vrot.slane %v1889, 5
      %v2053 = vsel %vm2033, %v2051, %v2052
      %v2054 = vrot.slane %v1890, 5
      %v2055 = vrot.slane %v2054, 4
      %v2056 = vrot.slane %v1891, 5
      %v2057 = vsel %vm2033, %v2055, %v2056
      %v2058 = vrot.slane %v1892, 5
      %v2059 = vrot.slane %v2058, 4
      %v2060 = vrot.slane %v1893, 5
      %v2061 = vsel %vm2033, %v2059, %v2060
      %v2062 = vrot.slane %v1894, 5
      %v2063 = vrot.slane %v2062, 4
      %v2064 = vrot.slane %v1895, 5
      %v2065 = vsel %vm2033, %v2063, %v2064
      %v2067 = vshrl.u32 %v1896, 16
      %v2069 = vrot.slane %v2067, 4
      %v2070 = vshll.u32 %v1896, 16
      %v2072 = vrot.slane %v2070, 5
      %v2073 = vor.u32 %v2069, %v2072
      %v2074 = vrot.slane %v2073, 4
      %v2076 = vshll.u32 %v1897, 16
      %v2078 = vrot.slane %v2076, 5
      %v2079 = vsel %vm1902, %v2074, %v2078
      %v2082 = vrot.slane %v1896, 5
      %v2083 = vrot.slane %v2082, 4
      %v2084 = vrot.slane %v1897, 5
      %v2085 = vsel %vm2033, %v2083, %v2084
      %v2087 = vshrl.u32 %v1898, 16
      %v2089 = vrot.slane %v2087, 4
      %v2090 = vshll.u32 %v1898, 16
      %v2092 = vrot.slane %v2090, 5
      %v2093 = vor.u32 %v2089, %v2092
      %v2094 = vrot.slane %v2093, 4
      %v2096 = vshll.u32 %v1899, 16
      %v2098 = vrot.slane %v2096, 5
      %v2099 = vsel %vm1902, %v2094, %v2098
      %v2102 = vrot.slane %v1898, 5
      %v2103 = vrot.slane %v2102, 4
      %v2104 = vrot.slane %v1899, 5
      %v2105 = vsel %vm2033, %v2103, %v2104
      %v2106 = vunpack.c.l.b16 %v1880
      %v2107 = vunpack.c.l.b16 %v1882
      %v2108 = vunpack.c.l.b16 %v1884
      %v2109 = vunpack.c.l.b16 %v1886
      %v2110 = vunpack.c.l.b16 %v1888
      %v2111 = vunpack.c.l.b16 %v1890
      %v2112 = vunpack.c.l.b16 %v1892
      %v2113 = vunpack.c.l.b16 %v1894
      %v2114 = vpack.c.b16 %v2107, %v2106
      %v2115 = vpack.c.b16 %v2109, %v2108
      %v2116 = vpack.c.b16 %v2111, %v2110
      %v2117 = vpack.c.b16 %v2113, %v2112
      %v2118 = vunpack.c.l.b16 %v1916
      %v2119 = vunpack.c.l.b16 %v1930
      %v2120 = vunpack.c.l.b16 %v1944
      %v2121 = vunpack.c.l.b16 %v1958
      %v2122 = vunpack.c.l.b16 %v1972
      %v2123 = vunpack.c.l.b16 %v1986
      %v2124 = vunpack.c.l.b16 %v2000
      %v2125 = vunpack.c.l.b16 %v2014
      %v2126 = vpack.c.b16 %v2119, %v2118
      %v2127 = vpack.c.b16 %v2121, %v2120
      %v2128 = vpack.c.b16 %v2123, %v2122
      %v2129 = vpack.c.b16 %v2125, %v2124
      %2130 = vrot.lane.b32.xlu0 %v2126, 32
      %v2131 = vpop.permute.xlu0 %2130
      %2132 = vrot.lane.b32.xlu0 %v2127, 32
      %v2133 = vpop.permute.xlu0 %2132
      %2134 = vrot.lane.b32.xlu0 %v2128, 32
      %v2135 = vpop.permute.xlu0 %2134
      %2136 = vrot.lane.b32.xlu0 %v2129, 32
      %v2137 = vpop.permute.xlu0 %2136
      %v2138 = vunpack.c.l.b16 %v2037
      %v2139 = vunpack.c.l.b16 %v2041
      %v2140 = vunpack.c.l.b16 %v2045
      %v2141 = vunpack.c.l.b16 %v2049
      %v2142 = vunpack.c.l.b16 %v2053
      %v2143 = vunpack.c.l.b16 %v2057
      %v2144 = vunpack.c.l.b16 %v2061
      %v2145 = vunpack.c.l.b16 %v2065
      %v2146 = vpack.c.b16 %v2139, %v2138
      %v2147 = vpack.c.b16 %v2141, %v2140
      %v2148 = vpack.c.b16 %v2143, %v2142
      %v2149 = vpack.c.b16 %v2145, %v2144
      %2150 = vrot.lane.b32.xlu0 %v2146, 64
      %v2151 = vpop.permute.xlu0 %2150
      %2152 = vrot.lane.b32.xlu0 %v2147, 64
      %v2153 = vpop.permute.xlu0 %2152
      %2154 = vrot.lane.b32.xlu0 %v2148, 64
      %v2155 = vpop.permute.xlu0 %2154
      %2156 = vrot.lane.b32.xlu0 %v2149, 64
      %v2157 = vpop.permute.xlu0 %2156
      %v2158 = vunpack.c.l.b16 %v1896
      %v2159 = vpack.c.b16 %v2108, %v2107
      %v2160 = vpack.c.b16 %v2110, %v2109
      %v2161 = vpack.c.b16 %v2112, %v2111
      %v2162 = vpack.c.b16 %v2158, %v2113
      %2163 = vrot.lane.b32.xlu0 %v2159, 96
      %v2164 = vpop.permute.xlu0 %2163
      %2165 = vrot.lane.b32.xlu0 %v2160, 96
      %v2166 = vpop.permute.xlu0 %2165
      %2167 = vrot.lane.b32.xlu0 %v2161, 96
      %v2168 = vpop.permute.xlu0 %2167
      %2169 = vrot.lane.b32.xlu0 %v2162, 96
      %v2170 = vpop.permute.xlu0 %2169
      %v2171 = vunpack.c.l.b16 %v2079
      %v2172 = vpack.c.b16 %v2120, %v2119
      %v2173 = vpack.c.b16 %v2122, %v2121
      %v2174 = vpack.c.b16 %v2124, %v2123
      %v2175 = vpack.c.b16 %v2171, %v2125
      %v2176 = vunpack.c.l.b16 %v2085
      %v2177 = vpack.c.b16 %v2140, %v2139
      %v2178 = vpack.c.b16 %v2142, %v2141
      %v2179 = vpack.c.b16 %v2144, %v2143
      %v2180 = vpack.c.b16 %v2176, %v2145
      %2181 = vrot.lane.b32.xlu0 %v2177, 32
      %v2182 = vpop.permute.xlu0 %2181
      %2183 = vrot.lane.b32.xlu0 %v2178, 32
      %v2184 = vpop.permute.xlu0 %2183
      %2185 = vrot.lane.b32.xlu0 %v2179, 32
      %v2186 = vpop.permute.xlu0 %2185
      %2187 = vrot.lane.b32.xlu0 %v2180, 32
      %v2188 = vpop.permute.xlu0 %2187
      %v2189 = vunpack.c.l.b16 %v1898
      %v2190 = vpack.c.b16 %v2189, %v2158
      %2191 = vrot.lane.b32.xlu0 %v2115, 64
      %v2192 = vpop.permute.xlu0 %2191
      %2193 = vrot.lane.b32.xlu0 %v2116, 64
      %v2194 = vpop.permute.xlu0 %2193
      %2195 = vrot.lane.b32.xlu0 %v2117, 64
      %v2196 = vpop.permute.xlu0 %2195
      %2197 = vrot.lane.b32.xlu0 %v2190, 64
      %v2198 = vpop.permute.xlu0 %2197
      %v2199 = vunpack.c.l.b16 %v2099
      %v2200 = vpack.c.b16 %v2199, %v2171
      %2201 = vrot.lane.b32.xlu0 %v2127, 96
      %v2202 = vpop.permute.xlu0 %2201
      %2203 = vrot.lane.b32.xlu0 %v2128, 96
      %v2204 = vpop.permute.xlu0 %2203
      %2205 = vrot.lane.b32.xlu0 %v2129, 96
      %v2206 = vpop.permute.xlu0 %2205
      %2207 = vrot.lane.b32.xlu0 %v2200, 96
      %v2208 = vpop.permute.xlu0 %2207
      %v2209 = vunpack.c.l.b16 %v2105
      %v2210 = vpack.c.b16 %v2209, %v2176
      %vm2211 = vcmask 261120
      %v2214 = vsel %vm2211, %v2114, %v2131
      %v2217 = vsel %vm2211, %v2115, %v2133
      %v2220 = vsel %vm2211, %v2116, %v2135
      %v2223 = vsel %vm2211, %v2117, %v2137
      %vm2224 = vcmask 523264
      %v2226 = vsel %vm2224, %v2214, %v2151
      %v2228 = vsel %vm2224, %v2217, %v2153
      %v2230 = vsel %vm2224, %v2220, %v2155
      %v2232 = vsel %vm2224, %v2223, %v2157
      %vm2233 = vcmask 785408
      %v2235 = vsel %vm2233, %v2226, %v2164
      %v2238 = vsel %vm2233, %v2228, %v2166
      %v2241 = vsel %vm2233, %v2230, %v2168
      %v2244 = vsel %vm2233, %v2232, %v2170
      %v2248 = vsel %vm2211, %v2172, %v2182
      %v2251 = vsel %vm2211, %v2173, %v2184
      %v2254 = vsel %vm2211, %v2174, %v2186
      %v2257 = vsel %vm2211, %v2175, %v2188
      %v2259 = vsel %vm2224, %v2248, %v2192
      %v2261 = vsel %vm2224, %v2251, %v2194
      %v2263 = vsel %vm2224, %v2254, %v2196
      %v2265 = vsel %vm2224, %v2257, %v2198
      %v2267 = vsel %vm2233, %v2259, %v2202
      %v2270 = vsel %vm2233, %v2261, %v2204
      %v2273 = vsel %vm2233, %v2263, %v2206
      %v2276 = vsel %vm2233, %v2265, %v2208
      %v2278 = vld [vmem:[%s3] sm:$0xf]
      %v2279 = vld [vmem:[%s3 + $0x4] sm:$0xf]
      %v2280 = vld [vmem:[%s3 + $0x8] sm:$0xf]
      %v2281 = vld [vmem:[%s3 + $0xc] sm:$0xf]
      %v2282 = vld [vmem:[%s3 + $0x10] sm:$0xf]
      %v2283 = vld [vmem:[%s3 + $0x14] sm:$0xf]
      %v2284 = vld [vmem:[%s3 + $0x18] sm:$0xf]
      %v2285 = vld [vmem:[%s3 + $0x1c] sm:$0xf]
      %v2286 = vld [vmem:[%s3 + $0x20] sm:$0xf]
      %v2287 = vld [vmem:[%s3 + $0x24] sm:$0xf]
      %v2288 = vld [vmem:[%s3 + $0x28] sm:$0xf]
      %v2289 = vld [vmem:[%s3 + $0x2c] sm:$0xf]
      %v2290 = vld [vmem:[%s3 + $0x30] sm:$0xf]
      %v2291 = vld [vmem:[%s3 + $0x34] sm:$0xf]
      %v2292 = vld [vmem:[%s3 + $0x38] sm:$0xf]
      %v2293 = vld [vmem:[%s3 + $0x3c] sm:$0xf]
      %v2294 = vld [vmem:[%s3 + $0x40] sm:$0xf]
      %v2295 = vld [vmem:[%s3 + $0x44] sm:$0xf]
      %v2296 = vld [vmem:[%s3 + $0x48] sm:$0xf]
      %v2297 = vld [vmem:[%s3 + $0x4c] sm:$0xf]
      %v2298 = vld [vmem:[%s3 + $0x50] sm:$0xf]
      %v2299 = vld [vmem:[%s3 + $0x54] sm:$0xf]
      %v2300 = vld [vmem:[%s3 + $0x58] sm:$0xf]
      %v2301 = vld [vmem:[%s3 + $0x5c] sm:$0xf]
      %v2302 = vld [vmem:[%s3 + $0x60] sm:$0xf]
      %v2303 = vld [vmem:[%s3 + $0x64] sm:$0xf]
      %v2304 = vld [vmem:[%s3 + $0x68] sm:$0xf]
      %v2305 = vld [vmem:[%s3 + $0x6c] sm:$0xf]
      %v2306 = vld [vmem:[%s3 + $0x70] sm:$0xf]
      %v2307 = vld [vmem:[%s3 + $0x74] sm:$0xf]
      %v2308 = vld [vmem:[%s3 + $0x78] sm:$0xf]
      %v2309 = vld [vmem:[%s3 + $0x7c] sm:$0xf]
      %v2310 = vld [vmem:[%s3 + $0x80] sm:$0xf]
      %v2311 = vld [vmem:[%s3 + $0x84] sm:$0xf]
      %v2312 = vld [vmem:[%s3 + $0x88] sm:$0xf]
      %v2313 = vld [vmem:[%s3 + $0x8c] sm:$0xf]
      %v2314 = vld [vmem:[%s4] sm:$0x1]
      %v2316 = vlaneseq
      %v2317 = vshrl.u32 %v2316, 7
      %v2318 = vsub.s32 0, %v2317
      %v2319 = vrot.slane %v2314, %v2318
      %v2357 = vunpack.c.l.b16 %v2278
      %v2358 = vunpack.c.l.b16 %v2279
      %v2359 = vunpack.c.l.b16 %v2280
      %v2360 = vunpack.c.l.b16 %v2281
      %v2361 = vunpack.c.l.b16 %v2282
      %v2362 = vunpack.c.l.b16 %v2283
      %v2363 = vunpack.c.l.b16 %v2284
      %v2364 = vunpack.c.l.b16 %v2285
      %v2365 = vunpack.c.l.b16 %v2286
      %v2366 = vunpack.c.l.b16 %v2287
      %v2367 = vunpack.c.l.b16 %v2288
      %v2368 = vunpack.c.l.b16 %v2289
      %v2369 = vunpack.c.l.b16 %v2290
      %v2370 = vunpack.c.l.b16 %v2291
      %v2371 = vunpack.c.l.b16 %v2292
      %v2372 = vunpack.c.l.b16 %v2293
      %v2373 = vunpack.c.l.b16 %v2294
      %v2374 = vunpack.c.l.b16 %v2295
      %v2375 = vunpack.c.l.b16 %v2296
      %v2376 = vunpack.c.l.b16 %v2297
      %v2377 = vunpack.c.l.b16 %v2298
      %v2378 = vunpack.c.l.b16 %v2299
      %v2379 = vunpack.c.l.b16 %v2300
      %v2380 = vunpack.c.l.b16 %v2301
      %v2381 = vunpack.c.l.b16 %v2302
      %v2382 = vunpack.c.l.b16 %v2303
      %v2383 = vunpack.c.l.b16 %v2304
      %v2384 = vunpack.c.l.b16 %v2305
      %v2385 = vunpack.c.l.b16 %v2306
      %v2386 = vunpack.c.l.b16 %v2307
      %v2387 = vunpack.c.l.b16 %v2308
      %v2388 = vunpack.c.l.b16 %v2309
      %v2389 = vunpack.c.l.b16 %v2310
      %v2390 = vunpack.c.l.b16 %v2311
      %v2391 = vunpack.c.l.b16 %v2312
      %v2392 = vunpack.c.l.b16 %v2313
      %v2393 = vpack.c.b16 %v2358, %v2357
      %v2394 = vpack.c.b16 %v2360, %v2359
      %v2395 = vpack.c.b16 %v2362, %v2361
      %v2396 = vpack.c.b16 %v2364, %v2363
      %v2397 = vpack.c.b16 %v2366, %v2365
      %v2398 = vpack.c.b16 %v2368, %v2367
      %v2399 = vpack.c.b16 %v2370, %v2369
      %v2400 = vpack.c.b16 %v2372, %v2371
      %v2401 = vpack.c.b16 %v2374, %v2373
      %v2402 = vpack.c.b16 %v2376, %v2375
      %v2403 = vpack.c.b16 %v2378, %v2377
      %v2404 = vpack.c.b16 %v2380, %v2379
      %v2405 = vpack.c.b16 %v2382, %v2381
      %v2406 = vpack.c.b16 %v2384, %v2383
      %v2407 = vpack.c.b16 %v2386, %v2385
      %v2408 = vpack.c.b16 %v2388, %v2387
      %v2409 = vpack.c.b16 %v2390, %v2389
      %v2410 = vpack.c.b16 %v2392, %v2391
      %v2430 = vsel %vm2211, %v2147, 0
      %v2433 = vsel %vm2211, %v2148, 0
      %v2436 = vsel %vm2211, %v2149, 0
      %v2439 = vsel %vm2211, %v2210, 0
      %2441 = vmatprep.subr.bf16.mxu0 0
      %2442 = vmatpush1.bf16.msra.mxu0 %v2393
      %2443 = vmatprep.subr.bf16.mxu0 0
      %2444 = vmatpush1.bf16.msra.mxu0 %v2394
      %2445 = vmatprep.subr.bf16.mxu0 0
      %2446 = vmatpush1.bf16.msra.mxu0 %v2395
      %2447 = vmatprep.subr.bf16.mxu0 0
      %2448 = vmatpush1.bf16.msra.mxu0 %v2396
      %2449 = vmatprep.subr.bf16.mxu0 0
      %2450 = vmatpush1.bf16.msra.mxu0 %v2397
      %2451 = vmatprep.subr.bf16.mxu0 0
      %2452 = vmatpush1.bf16.msra.mxu0 %v2398
      %2453 = vmatprep.subr.bf16.mxu0 0
      %2454 = vmatpush1.bf16.msra.mxu0 %v2399
      %2455 = vmatprep.subr.bf16.mxu0 0
      %2456 = vmatpush1.bf16.msra.mxu0 %v2400
      %2457 = vmatprep.subr.bf16.mxu0 0
      %2458 = vmatpush1.bf16.msra.mxu0 %v2401
      %2459 = vmatprep.subr.bf16.mxu0 0
      %2460 = vmatpush1.bf16.msra.mxu0 %v2402
      %2461 = vmatprep.subr.bf16.mxu0 0
      %2462 = vmatpush1.bf16.msra.mxu0 %v2403
      %2463 = vmatprep.subr.bf16.mxu0 0
      %2464 = vmatpush1.bf16.msra.mxu0 %v2404
      %2465 = vmatprep.subr.bf16.mxu0 0
      %2466 = vmatpush1.bf16.msra.mxu0 %v2405
      %2467 = vmatprep.subr.bf16.mxu0 0
      %2468 = vmatpush1.bf16.msra.mxu0 %v2406
      %2469 = vmatprep.subr.bf16.mxu0 0
      %2470 = vmatpush1.bf16.msra.mxu0 %v2407
      %2471 = vmatprep.subr.bf16.mxu0 0
      %2472 = vmatpush1.bf16.msra.mxu0 %v2408
      %2473 = vmatprep.mubr.bf16.mxu0 %v2267
      %2474 = vmatmul.mubr.bf16.gmra.mrb[0].mxu0 %v2235
      %v2475 = vpop.f32.mrb[0].mxu0
      %v2476 = vadd.f32 %v2319, %v2475
      %v2477 = vpop.f32.mrb[0].mxu0
      %v2478 = vpop.f32.mrb[0].mxu0
      %v2479 = vadd.f32 %v2319, %v2478
      %v2480 = vpop.f32.mrb[0].mxu0
      %2481 = vmatprep.mubr.bf16.mxu0 %v2270
      %2482 = vmatmul.mubr.bf16.gmra.mrb[0].mxu0 %v2238
      %v2483 = vpop.f32.mrb[0].mxu0
      %v2484 = vadd.f32 %v2319, %v2483
      %v2485 = vpop.f32.mrb[0].mxu0
      %v2486 = vpop.f32.mrb[0].mxu0
      %v2487 = vadd.f32 %v2319, %v2486
      %v2488 = vpop.f32.mrb[0].mxu0
      %2489 = vmatprep.mubr.bf16.mxu0 %v2273
      %2490 = vmatmul.mubr.bf16.gmra.mrb[0].mxu0 %v2241
      %v2491 = vpop.f32.mrb[0].mxu0
      %v2492 = vadd.f32 %v2319, %v2491
      %v2493 = vpop.f32.mrb[0].mxu0
      %v2494 = vpop.f32.mrb[0].mxu0
      %v2495 = vadd.f32 %v2319, %v2494
      %v2496 = vpop.f32.mrb[0].mxu0
      %2497 = vmatprep.mubr.bf16.mxu0 %v2276
      %2498 = vmatmul.mubr.bf16.gmra.mrb[0].mxu0 %v2244
      %v2499 = vpop.f32.mrb[0].mxu0
      %v2500 = vadd.f32 %v2319, %v2499
      %v2501 = vpop.f32.mrb[0].mxu0
      %v2502 = vpop.f32.mrb[0].mxu0
      %v2503 = vadd.f32 %v2319, %v2502
      %v2504 = vpop.f32.mrb[0].mxu0
      %2505 = vdwg.mxu0
      %2506 = vmatprep.subr.bf16.mxu0 0
      %2507 = vmatpush1.bf16.msra.mxu0 %v2409
      %2508 = vmatprep.subr.bf16.mxu0 0
      %2509 = vmatpush1.bf16.msra.mxu0 %v2410
      %2510 = vmatprep.subr.bf16.mxu0 0
      %2511 = vmatpush1.bf16.msra.mxu0 0
      %2512 = vmatprep.subr.bf16.mxu0 0
      %2513 = vmatpush1.bf16.msra.mxu0 0
      %2514 = vmatprep.subr.bf16.mxu0 0
      %2515 = vmatpush1.bf16.msra.mxu0 0
      %2516 = vmatprep.subr.bf16.mxu0 0
      %2517 = vmatpush1.bf16.msra.mxu0 0
      %2518 = vmatprep.subr.bf16.mxu0 0
      %2519 = vmatpush1.bf16.msra.mxu0 0
      %2520 = vmatprep.subr.bf16.mxu0 0
      %2521 = vmatpush1.bf16.msra.mxu0 0
      %2522 = vmatprep.subr.bf16.mxu0 0
      %2523 = vmatpush1.bf16.msra.mxu0 0
      %2524 = vmatprep.subr.bf16.mxu0 0
      %2525 = vmatpush1.bf16.msra.mxu0 0
      %2526 = vmatprep.subr.bf16.mxu0 0
      %2527 = vmatpush1.bf16.msra.mxu0 0
      %2528 = vmatprep.subr.bf16.mxu0 0
      %2529 = vmatpush1.bf16.msra.mxu0 0
      %2530 = vmatprep.subr.bf16.mxu0 0
      %2531 = vmatpush1.bf16.msra.mxu0 0
      %2532 = vmatprep.subr.bf16.mxu0 0
      %2533 = vmatpush1.bf16.msra.mxu0 0
      %2534 = vmatprep.subr.bf16.mxu0 0
      %2535 = vmatpush1.bf16.msra.mxu0 0
      %2536 = vmatprep.subr.bf16.mxu0 0
      %2537 = vmatpush1.bf16.msra.mxu0 0
      %2538 = vmatprep.mubr.bf16.mxu0 0
      %2539 = vmatmul.mubr.bf16.gmra.mrb[0].mxu0 %v2430
      %v2540 = vpop.f32.mrb[0].mxu0
      %v2541 = vadd.f32 %v2476, %v2540
      %v2542 = vpop.f32.mrb[0].mxu0
      %v2543 = vpop.f32.mrb[0].mxu0
      %v2544 = vadd.f32 %v2479, %v2543
      %v2545 = vpop.f32.mrb[0].mxu0
      %2546 = vmatprep.mubr.bf16.mxu0 0
      %2547 = vmatmul.mubr.bf16.gmra.mrb[0].mxu0 %v2433
      %v2548 = vpop.f32.mrb[0].mxu0
      %v2549 = vadd.f32 %v2484, %v2548
      %v2550 = vpop.f32.mrb[0].mxu0
      %v2551 = vpop.f32.mrb[0].mxu0
      %v2552 = vadd.f32 %v2487, %v2551
      %v2553 = vpop.f32.mrb[0].mxu0
      %2554 = vmatprep.mubr.bf16.mxu0 0
      %2555 = vmatmul.mubr.bf16.gmra.mrb[0].mxu0 %v2436
      %v2556 = vpop.f32.mrb[0].mxu0
      %v2557 = vadd.f32 %v2492, %v2556
      %v2558 = vpop.f32.mrb[0].mxu0
      %v2559 = vpop.f32.mrb[0].mxu0
      %v2560 = vadd.f32 %v2495, %v2559
      %v2561 = vpop.f32.mrb[0].mxu0
      %2562 = vmatprep.mubr.bf16.mxu0 0
      %2563 = vmatmul.mubr.bf16.gmra.mrb[0].mxu0 %v2439
      %v2564 = vpop.f32.mrb[0].mxu0
      %v2565 = vadd.f32 %v2500, %v2564
      %v2566 = vpop.f32.mrb[0].mxu0
      %v2567 = vpop.f32.mrb[0].mxu0
      %v2568 = vadd.f32 %v2503, %v2567
      %v2569 = vpop.f32.mrb[0].mxu0
      %2570 = vdwg.mxu0
      %v2571 = vmax.f32 %v2541, 0.0
      %v2572 = vmax.f32 %v2544, 0.0
      %v2573 = vmax.f32 %v2549, 0.0
      %v2574 = vmax.f32 %v2552, 0.0
      %v2575 = vmax.f32 %v2557, 0.0
      %v2576 = vmax.f32 %v2560, 0.0
      %v2577 = vmax.f32 %v2565, 0.0
      %v2578 = vmax.f32 %v2568, 0.0
      %v2579 = vmax.f32 %v2571, %v2572
      %v2580 = vmax.f32 %v2573, %v2574
      %v2581 = vmax.f32 %v2575, %v2576
      %v2582 = vmax.f32 %v2577, %v2578
      %v2587 = vcombine.high %v2579, %v2579
      %v2589 = vunpack.c.l.s4 1983009808
      %v2590 = vunpack.c.0.s8 %v2589
      %v2591 = vlaneseq
      %v2592 = vshrl.u32 %v2591, 7
      %v2593 = vsub.s32 %v2590, %v2592
      %v2594 = vrot.slane %v2579, %v2593
      %v2596 = vunpack.c.l.s4 1983009808
      %v2597 = vunpack.c.0.s8 %v2596
      %v2598 = vlaneseq
      %v2599 = vshrl.u32 %v2598, 7
      %v2600 = vsub.s32 %v2597, %v2599
      %v2601 = vrot.slane %v2587, %v2600
      %v2602 = vcombine.high %v2594, %v2594
      %v2603 = vcombine.high %v2601, %v2601
      %v2604 = vcombine.high %v2580, %v2580
      %v2606 = vunpack.c.l.s4 1983009808
      %v2607 = vunpack.c.0.s8 %v2606
      %v2608 = vlaneseq
      %v2609 = vshrl.u32 %v2608, 7
      %v2610 = vsub.s32 %v2607, %v2609
      %v2611 = vrot.slane %v2580, %v2610
      %v2613 = vunpack.c.l.s4 1983009808
      %v2614 = vunpack.c.0.s8 %v2613
      %v2615 = vlaneseq
      %v2616 = vshrl.u32 %v2615, 7
      %v2617 = vsub.s32 %v2614, %v2616
      %v2618 = vrot.slane %v2604, %v2617
      %v2619 = vcombine.high %v2611, %v2611
      %v2620 = vcombine.high %v2618, %v2618
      %v2621 = vcombine.high %v2581, %v2581
      %v2623 = vunpack.c.l.s4 1983009808
      %v2624 = vunpack.c.0.s8 %v2623
      %v2625 = vlaneseq
      %v2626 = vshrl.u32 %v2625, 7
      %v2627 = vsub.s32 %v2624, %v2626
      %v2628 = vrot.slane %v2581, %v2627
      %v2630 = vunpack.c.l.s4 1983009808
      %v2631 = vunpack.c.0.s8 %v2630
      %v2632 = vlaneseq
      %v2633 = vshrl.u32 %v2632, 7
      %v2634 = vsub.s32 %v2631, %v2633
      %v2635 = vrot.slane %v2621, %v2634
      %v2636 = vcombine.high %v2628, %v2628
      %v2637 = vcombine.high %v2635, %v2635
      %v2638 = vcombine.high %v2582, %v2582
      %v2640 = vunpack.c.l.s4 1983009808
      %v2641 = vunpack.c.0.s8 %v2640
      %v2642 = vlaneseq
      %v2643 = vshrl.u32 %v2642, 7
      %v2644 = vsub.s32 %v2641, %v2643
      %v2645 = vrot.slane %v2582, %v2644
      %v2647 = vunpack.c.l.s4 1983009808
      %v2648 = vunpack.c.0.s8 %v2647
      %v2649 = vlaneseq
      %v2650 = vshrl.u32 %v2649, 7
      %v2651 = vsub.s32 %v2648, %v2650
      %v2652 = vrot.slane %v2638, %v2651
      %v2653 = vcombine.high %v2645, %v2645
      %v2654 = vcombine.high %v2652, %v2652
      %v2671 = vrot.slane %v2594, 7
      %v2672 = vrot.slane %v2671, 2
      %v2673 = vrot.slane %v2602, 7
      %v2674 = vrot.slane %v2673, 2
      %v2675 = vrot.slane %v2601, 7
      %v2676 = vrot.slane %v2675, 2
      %v2677 = vrot.slane %v2603, 7
      %v2678 = vrot.slane %v2677, 2
      %v2679 = vrot.slane %v2611, 7
      %v2680 = vrot.slane %v2679, 2
      %v2681 = vrot.slane %v2619, 7
      %v2682 = vrot.slane %v2681, 2
      %v2683 = vrot.slane %v2618, 7
      %v2684 = vrot.slane %v2683, 2
      %v2685 = vrot.slane %v2620, 7
      %v2686 = vrot.slane %v2685, 2
      %v2687 = vrot.slane %v2628, 7
      %v2688 = vrot.slane %v2687, 2
      %v2689 = vrot.slane %v2636, 7
      %v2690 = vrot.slane %v2689, 2
      %v2691 = vrot.slane %v2635, 7
      %v2692 = vrot.slane %v2691, 2
      %v2693 = vrot.slane %v2637, 7
      %v2694 = vrot.slane %v2693, 2
      %v2695 = vrot.slane %v2645, 7
      %v2696 = vrot.slane %v2695, 2
      %v2697 = vrot.slane %v2653, 7
      %v2698 = vrot.slane %v2697, 2
      %v2699 = vrot.slane %v2652, 7
      %v2700 = vrot.slane %v2699, 2
      %v2701 = vrot.slane %v2654, 7
      %v2702 = vrot.slane %v2701, 2
      %v2719 = vmax.f32 %v2594, %v2672
      %v2720 = vmax.f32 %v2602, %v2674
      %v2721 = vmax.f32 %v2601, %v2676
      %v2722 = vmax.f32 %v2603, %v2678
      %v2723 = vmax.f32 %v2611, %v2680
      %v2724 = vmax.f32 %v2619, %v2682
      %v2725 = vmax.f32 %v2618, %v2684
      %v2726 = vmax.f32 %v2620, %v2686
      %v2727 = vmax.f32 %v2628, %v2688
      %v2728 = vmax.f32 %v2636, %v2690
      %v2729 = vmax.f32 %v2635, %v2692
      %v2730 = vmax.f32 %v2637, %v2694
      %v2731 = vmax.f32 %v2645, %v2696
      %v2732 = vmax.f32 %v2653, %v2698
      %v2733 = vmax.f32 %v2652, %v2700
      %v2734 = vmax.f32 %v2654, %v2702
      %v2736 = vlaneseq
      %v2737 = vshrl.u32 %v2736, 7
      %v2738 = vsub.s32 0, %v2737
      %v2739 = vrot.slane %v2720, %v2738
      %2740 = vrot.lane.b32.xlu0 %v2739, 64
      %v2741 = vpop.permute.xlu0 %2740
      %v2744 = vlaneseq
      %v2745 = vshrl.u32 %v2744, 7
      %v2746 = vsub.s32 0, %v2745
      %v2747 = vrot.slane %v2722, %v2746
      %2748 = vrot.lane.b32.xlu0 %v2747, 64
      %v2749 = vpop.permute.xlu0 %2748
      %v2752 = vlaneseq
      %v2753 = vshrl.u32 %v2752, 7
      %v2754 = vsub.s32 0, %v2753
      %v2755 = vrot.slane %v2724, %v2754
      %2756 = vrot.lane.b32.xlu0 %v2755, 64
      %v2757 = vpop.permute.xlu0 %2756
      %v2760 = vlaneseq
      %v2761 = vshrl.u32 %v2760, 7
      %v2762 = vsub.s32 0, %v2761
      %v2763 = vrot.slane %v2726, %v2762
      %2764 = vrot.lane.b32.xlu0 %v2763, 64
      %v2765 = vpop.permute.xlu0 %2764
      %v2768 = vlaneseq
      %v2769 = vshrl.u32 %v2768, 7
      %v2770 = vsub.s32 0, %v2769
      %v2771 = vrot.slane %v2728, %v2770
      %2772 = vrot.lane.b32.xlu0 %v2771, 64
      %v2773 = vpop.permute.xlu0 %2772
      %v2776 = vlaneseq
      %v2777 = vshrl.u32 %v2776, 7
      %v2778 = vsub.s32 0, %v2777
      %v2779 = vrot.slane %v2730, %v2778
      %2780 = vrot.lane.b32.xlu0 %v2779, 64
      %v2781 = vpop.permute.xlu0 %2780
      %v2784 = vlaneseq
      %v2785 = vshrl.u32 %v2784, 7
      %v2786 = vsub.s32 0, %v2785
      %v2787 = vrot.slane %v2732, %v2786
      %2788 = vrot.lane.b32.xlu0 %v2787, 64
      %v2789 = vpop.permute.xlu0 %2788
      %v2792 = vlaneseq
      %v2793 = vshrl.u32 %v2792, 7
      %v2794 = vsub.s32 0, %v2793
      %v2795 = vrot.slane %v2734, %v2794
      %2796 = vrot.lane.b32.xlu0 %v2795, 64
      %v2797 = vpop.permute.xlu0 %2796
      %v2799 = vsel %vm2224, %v2719, %v2741
      %v2800 = vsel %vm2224, %v2721, %v2749
      %v2801 = vsel %vm2224, %v2723, %v2757
      %v2802 = vsel %vm2224, %v2725, %v2765
      %v2803 = vsel %vm2224, %v2727, %v2773
      %v2804 = vsel %vm2224, %v2729, %v2781
      %v2805 = vsel %vm2224, %v2731, %v2789
      %v2806 = vsel %vm2224, %v2733, %v2797
      %v2807 = vpack.c.bf16 %v2799, %v2799
      %v2808 = vpack.c.bf16 %v2800, %v2800
      %v2809 = vpack.c.bf16 %v2801, %v2801
      %v2810 = vpack.c.bf16 %v2802, %v2802
      %v2811 = vpack.c.bf16 %v2803, %v2803
      %v2812 = vpack.c.bf16 %v2804, %v2804
      %v2813 = vpack.c.bf16 %v2805, %v2805
      %v2814 = vpack.c.bf16 %v2806, %v2806
      %v2815 = vld [vmem:[%s5] sm:$0xf]
      %v2816 = vld [vmem:[%s5 + $0x4] sm:$0xf]
      %v2817 = vld [vmem:[%s5 + $0x8] sm:$0xf]
      %v2818 = vld [vmem:[%s5 + $0xc] sm:$0xf]
      %v2819 = vld [vmem:[%s5 + $0x10] sm:$0xf]
      %v2820 = vld [vmem:[%s5 + $0x14] sm:$0xf]
      %v2821 = vld [vmem:[%s5 + $0x18] sm:$0xf]
      %v2822 = vld [vmem:[%s5 + $0x1c] sm:$0xf]
      %v2823 = vld [vmem:[%s5 + $0x20] sm:$0xf]
      %v2824 = vld [vmem:[%s5 + $0x24] sm:$0xf]
      %v2825 = vld [vmem:[%s5 + $0x28] sm:$0xf]
      %v2826 = vld [vmem:[%s5 + $0x2c] sm:$0xf]
      %v2827 = vld [vmem:[%s5 + $0x30] sm:$0xf]
      %v2828 = vld [vmem:[%s5 + $0x34] sm:$0xf]
      %v2829 = vld [vmem:[%s5 + $0x38] sm:$0xf]
      %v2830 = vld [vmem:[%s5 + $0x3c] sm:$0xf]
      %v2831 = vld [vmem:[%s5 + $0x40] sm:$0xf]
      %v2832 = vld [vmem:[%s5 + $0x44] sm:$0xf]
      %v2833 = vld [vmem:[%s5 + $0x48] sm:$0xf]
      %v2834 = vld [vmem:[%s5 + $0x4c] sm:$0xf]
      %v2835 = vld [vmem:[%s5 + $0x50] sm:$0xf]
      %v2836 = vld [vmem:[%s5 + $0x54] sm:$0xf]
      %v2837 = vld [vmem:[%s5 + $0x58] sm:$0xf]
      %v2838 = vld [vmem:[%s5 + $0x5c] sm:$0xf]
      %v2839 = vld [vmem:[%s5 + $0x60] sm:$0xf]
      %v2840 = vld [vmem:[%s5 + $0x64] sm:$0xf]
      %v2841 = vld [vmem:[%s5 + $0x68] sm:$0xf]
      %v2842 = vld [vmem:[%s5 + $0x6c] sm:$0xf]
      %v2843 = vld [vmem:[%s5 + $0x70] sm:$0xf]
      %v2844 = vld [vmem:[%s5 + $0x74] sm:$0xf]
      %v2845 = vld [vmem:[%s5 + $0x78] sm:$0xf]
      %v2846 = vld [vmem:[%s5 + $0x7c] sm:$0xf]
      %v2847 = vld [vmem:[%s5 + $0x80] sm:$0xf]
      %v2848 = vld [vmem:[%s5 + $0x84] sm:$0xf]
      %v2849 = vld [vmem:[%s5 + $0x88] sm:$0xf]
      %v2850 = vld [vmem:[%s5 + $0x8c] sm:$0xf]
      %v2851 = vld [vmem:[%s5 + $0x90] sm:$0xf]
      %v2852 = vld [vmem:[%s5 + $0x94] sm:$0xf]
      %v2853 = vld [vmem:[%s5 + $0x98] sm:$0xf]
      %v2854 = vld [vmem:[%s5 + $0x9c] sm:$0xf]
      %v2855 = vld [vmem:[%s5 + $0xa0] sm:$0xf]
      %v2856 = vld [vmem:[%s5 + $0xa4] sm:$0xf]
      %v2857 = vld [vmem:[%s5 + $0xa8] sm:$0xf]
      %v2858 = vld [vmem:[%s5 + $0xac] sm:$0xf]
      %v2859 = vld [vmem:[%s5 + $0xb0] sm:$0xf]
      %v2860 = vld [vmem:[%s5 + $0xb4] sm:$0xf]
      %v2861 = vld [vmem:[%s5 + $0xb8] sm:$0xf]
      %v2862 = vld [vmem:[%s5 + $0xbc] sm:$0xf]
      %v2863 = vld [vmem:[%s5 + $0xc0] sm:$0xf]
      %v2864 = vld [vmem:[%s5 + $0xc4] sm:$0xf]
      %v2865 = vld [vmem:[%s5 + $0xc8] sm:$0xf]
      %v2866 = vld [vmem:[%s5 + $0xcc] sm:$0xf]
      %v2867 = vld [vmem:[%s5 + $0xd0] sm:$0xf]
      %v2868 = vld [vmem:[%s5 + $0xd4] sm:$0xf]
      %v2869 = vld [vmem:[%s5 + $0xd8] sm:$0xf]
      %v2870 = vld [vmem:[%s5 + $0xdc] sm:$0xf]
      %v2871 = vld [vmem:[%s5 + $0xe0] sm:$0xf]
      %v2872 = vld [vmem:[%s5 + $0xe4] sm:$0xf]
      %v2873 = vld [vmem:[%s5 + $0xe8] sm:$0xf]
      %v2874 = vld [vmem:[%s5 + $0xec] sm:$0xf]
      %v2875 = vld [vmem:[%s5 + $0xf0] sm:$0xf]
      %v2876 = vld [vmem:[%s5 + $0xf4] sm:$0xf]
      %v2877 = vld [vmem:[%s5 + $0xf8] sm:$0xf]
      %v2878 = vld [vmem:[%s5 + $0xfc] sm:$0xf]
      %v2879 = vld [vmem:[%s5 + $0x100] sm:$0xf]
      %v2880 = vld [vmem:[%s5 + $0x104] sm:$0xf]
      %v2881 = vld [vmem:[%s5 + $0x108] sm:$0xf]
      %v2882 = vld [vmem:[%s5 + $0x10c] sm:$0xf]
      %v2883 = vld [vmem:[%s5 + $0x110] sm:$0xf]
      %v2884 = vld [vmem:[%s5 + $0x114] sm:$0xf]
      %v2885 = vld [vmem:[%s5 + $0x118] sm:$0xf]
      %v2886 = vld [vmem:[%s5 + $0x11c] sm:$0xf]
      %v2887 = vld [vmem:[%s5 + $0x120] sm:$0xf]
      %v2888 = vld [vmem:[%s5 + $0x124] sm:$0xf]
      %v2889 = vld [vmem:[%s5 + $0x128] sm:$0xf]
      %v2890 = vld [vmem:[%s5 + $0x12c] sm:$0xf]
      %v2891 = vld [vmem:[%s5 + $0x130] sm:$0xf]
      %v2892 = vld [vmem:[%s5 + $0x134] sm:$0xf]
      %v2893 = vld [vmem:[%s5 + $0x138] sm:$0xf]
      %v2894 = vld [vmem:[%s5 + $0x13c] sm:$0xf]
      %v2895 = vld [vmem:[%s5 + $0x140] sm:$0xf]
      %v2896 = vld [vmem:[%s5 + $0x144] sm:$0xf]
      %v2897 = vld [vmem:[%s5 + $0x148] sm:$0xf]
      %v2898 = vld [vmem:[%s5 + $0x14c] sm:$0xf]
      %v2899 = vld [vmem:[%s5 + $0x150] sm:$0xf]
      %v2900 = vld [vmem:[%s5 + $0x154] sm:$0xf]
      %v2901 = vld [vmem:[%s5 + $0x158] sm:$0xf]
      %v2902 = vld [vmem:[%s5 + $0x15c] sm:$0xf]
      %v2903 = vld [vmem:[%s5 + $0x160] sm:$0xf]
      %v2904 = vld [vmem:[%s5 + $0x164] sm:$0xf]
      %v2905 = vld [vmem:[%s5 + $0x168] sm:$0xf]
      %v2906 = vld [vmem:[%s5 + $0x16c] sm:$0xf]
      %v2907 = vld [vmem:[%s5 + $0x170] sm:$0xf]
      %v2908 = vld [vmem:[%s5 + $0x174] sm:$0xf]
      %v2909 = vld [vmem:[%s5 + $0x178] sm:$0xf]
      %v2910 = vld [vmem:[%s5 + $0x17c] sm:$0xf]
      %v2911 = vld [vmem:[%s5 + $0x180] sm:$0xf]
      %v2912 = vld [vmem:[%s5 + $0x184] sm:$0xf]
      %v2913 = vld [vmem:[%s5 + $0x188] sm:$0xf]
      %v2914 = vld [vmem:[%s5 + $0x18c] sm:$0xf]
      %v2915 = vld [vmem:[%s5 + $0x190] sm:$0xf]
      %v2916 = vld [vmem:[%s5 + $0x194] sm:$0xf]
      %v2917 = vld [vmem:[%s5 + $0x198] sm:$0xf]
      %v2918 = vld [vmem:[%s5 + $0x19c] sm:$0xf]
      %v2919 = vld [vmem:[%s5 + $0x1a0] sm:$0xf]
      %v2920 = vld [vmem:[%s5 + $0x1a4] sm:$0xf]
      %v2921 = vld [vmem:[%s5 + $0x1a8] sm:$0xf]
      %v2922 = vld [vmem:[%s5 + $0x1ac] sm:$0xf]
      %v2923 = vld [vmem:[%s5 + $0x1b0] sm:$0xf]
      %v2924 = vld [vmem:[%s5 + $0x1b4] sm:$0xf]
      %v2925 = vld [vmem:[%s5 + $0x1b8] sm:$0xf]
      %v2926 = vld [vmem:[%s5 + $0x1bc] sm:$0xf]
      %v2927 = vld [vmem:[%s5 + $0x1c0] sm:$0xf]
      %v2928 = vld [vmem:[%s5 + $0x1c4] sm:$0xf]
      %v2929 = vld [vmem:[%s5 + $0x1c8] sm:$0xf]
      %v2930 = vld [vmem:[%s5 + $0x1cc] sm:$0xf]
      %v2931 = vld [vmem:[%s5 + $0x1d0] sm:$0xf]
      %v2932 = vld [vmem:[%s5 + $0x1d4] sm:$0xf]
      %v2933 = vld [vmem:[%s5 + $0x1d8] sm:$0xf]
      %v2934 = vld [vmem:[%s5 + $0x1dc] sm:$0xf]
      %v2935 = vld [vmem:[%s5 + $0x1e0] sm:$0xf]
      %v2936 = vld [vmem:[%s5 + $0x1e4] sm:$0xf]
      %v2937 = vld [vmem:[%s5 + $0x1e8] sm:$0xf]
      %v2938 = vld [vmem:[%s5 + $0x1ec] sm:$0xf]
      %v2939 = vld [vmem:[%s5 + $0x1f0] sm:$0xf]
      %v2940 = vld [vmem:[%s5 + $0x1f4] sm:$0xf]
      %v2941 = vld [vmem:[%s5 + $0x1f8] sm:$0xf]
      %v2942 = vld [vmem:[%s5 + $0x1fc] sm:$0xf]
      %v2943 = vld [vmem:[%s6] sm:$0x1]
      %v3072 = vunpack.c.l.b16 %v2815
      %v3073 = vunpack.c.l.b16 %v2816
      %v3074 = vunpack.c.l.b16 %v2817
      %v3075 = vunpack.c.l.b16 %v2818
      %v3076 = vunpack.c.l.b16 %v2819
      %v3077 = vunpack.c.l.b16 %v2820
      %v3078 = vunpack.c.l.b16 %v2821
      %v3079 = vunpack.c.l.b16 %v2822
      %v3080 = vunpack.c.l.b16 %v2823
      %v3081 = vunpack.c.l.b16 %v2824
      %v3082 = vunpack.c.l.b16 %v2825
      %v3083 = vunpack.c.l.b16 %v2826
      %v3084 = vunpack.c.l.b16 %v2827
      %v3085 = vunpack.c.l.b16 %v2828
      %v3086 = vunpack.c.l.b16 %v2829
      %v3087 = vunpack.c.l.b16 %v2830
      %v3088 = vunpack.c.l.b16 %v2831
      %v3089 = vunpack.c.l.b16 %v2832
      %v3090 = vunpack.c.l.b16 %v2833
      %v3091 = vunpack.c.l.b16 %v2834
      %v3092 = vunpack.c.l.b16 %v2835
      %v3093 = vunpack.c.l.b16 %v2836
      %v3094 = vunpack.c.l.b16 %v2837
      %v3095 = vunpack.c.l.b16 %v2838
      %v3096 = vunpack.c.l.b16 %v2839
      %v3097 = vunpack.c.l.b16 %v2840
      %v3098 = vunpack.c.l.b16 %v2841
      %v3099 = vunpack.c.l.b16 %v2842
      %v3100 = vunpack.c.l.b16 %v2843
      %v3101 = vunpack.c.l.b16 %v2844
      %v3102 = vunpack.c.l.b16 %v2845
      %v3103 = vunpack.c.l.b16 %v2846
      %v3104 = vunpack.c.l.b16 %v2847
      %v3105 = vunpack.c.l.b16 %v2848
      %v3106 = vunpack.c.l.b16 %v2849
      %v3107 = vunpack.c.l.b16 %v2850
      %v3108 = vunpack.c.l.b16 %v2851
      %v3109 = vunpack.c.l.b16 %v2852
      %v3110 = vunpack.c.l.b16 %v2853
      %v3111 = vunpack.c.l.b16 %v2854
      %v3112 = vunpack.c.l.b16 %v2855
      %v3113 = vunpack.c.l.b16 %v2856
      %v3114 = vunpack.c.l.b16 %v2857
      %v3115 = vunpack.c.l.b16 %v2858
      %v3116 = vunpack.c.l.b16 %v2859
      %v3117 = vunpack.c.l.b16 %v2860
      %v3118 = vunpack.c.l.b16 %v2861
      %v3119 = vunpack.c.l.b16 %v2862
      %v3120 = vunpack.c.l.b16 %v2863
      %v3121 = vunpack.c.l.b16 %v2864
      %v3122 = vunpack.c.l.b16 %v2865
      %v3123 = vunpack.c.l.b16 %v2866
      %v3124 = vunpack.c.l.b16 %v2867
      %v3125 = vunpack.c.l.b16 %v2868
      %v3126 = vunpack.c.l.b16 %v2869
      %v3127 = vunpack.c.l.b16 %v2870
      %v3128 = vunpack.c.l.b16 %v2871
      %v3129 = vunpack.c.l.b16 %v2872
      %v3130 = vunpack.c.l.b16 %v2873
      %v3131 = vunpack.c.l.b16 %v2874
      %v3132 = vunpack.c.l.b16 %v2875
      %v3133 = vunpack.c.l.b16 %v2876
      %v3134 = vunpack.c.l.b16 %v2877
      %v3135 = vunpack.c.l.b16 %v2878
      %v3136 = vunpack.c.l.b16 %v2879
      %v3137 = vunpack.c.l.b16 %v2880
      %v3138 = vunpack.c.l.b16 %v2881
      %v3139 = vunpack.c.l.b16 %v2882
      %v3140 = vunpack.c.l.b16 %v2883
      %v3141 = vunpack.c.l.b16 %v2884
      %v3142 = vunpack.c.l.b16 %v2885
      %v3143 = vunpack.c.l.b16 %v2886
      %v3144 = vunpack.c.l.b16 %v2887
      %v3145 = vunpack.c.l.b16 %v2888
      %v3146 = vunpack.c.l.b16 %v2889
      %v3147 = vunpack.c.l.b16 %v2890
      %v3148 = vunpack.c.l.b16 %v2891
      %v3149 = vunpack.c.l.b16 %v2892
      %v3150 = vunpack.c.l.b16 %v2893
      %v3151 = vunpack.c.l.b16 %v2894
      %v3152 = vunpack.c.l.b16 %v2895
      %v3153 = vunpack.c.l.b16 %v2896
      %v3154 = vunpack.c.l.b16 %v2897
      %v3155 = vunpack.c.l.b16 %v2898
      %v3156 = vunpack.c.l.b16 %v2899
      %v3157 = vunpack.c.l.b16 %v2900
      %v3158 = vunpack.c.l.b16 %v2901
      %v3159 = vunpack.c.l.b16 %v2902
      %v3160 = vunpack.c.l.b16 %v2903
      %v3161 = vunpack.c.l.b16 %v2904
      %v3162 = vunpack.c.l.b16 %v2905
      %v3163 = vunpack.c.l.b16 %v2906
      %v3164 = vunpack.c.l.b16 %v2907
      %v3165 = vunpack.c.l.b16 %v2908
      %v3166 = vunpack.c.l.b16 %v2909
      %v3167 = vunpack.c.l.b16 %v2910
      %v3168 = vunpack.c.l.b16 %v2911
      %v3169 = vunpack.c.l.b16 %v2912
      %v3170 = vunpack.c.l.b16 %v2913
      %v3171 = vunpack.c.l.b16 %v2914
      %v3172 = vunpack.c.l.b16 %v2915
      %v3173 = vunpack.c.l.b16 %v2916
      %v3174 = vunpack.c.l.b16 %v2917
      %v3175 = vunpack.c.l.b16 %v2918
      %v3176 = vunpack.c.l.b16 %v2919
      %v3177 = vunpack.c.l.b16 %v2920
      %v3178 = vunpack.c.l.b16 %v2921
      %v3179 = vunpack.c.l.b16 %v2922
      %v3180 = vunpack.c.l.b16 %v2923
      %v3181 = vunpack.c.l.b16 %v2924
      %v3182 = vunpack.c.l.b16 %v2925
      %v3183 = vunpack.c.l.b16 %v2926
      %v3184 = vunpack.c.l.b16 %v2927
      %v3185 = vunpack.c.l.b16 %v2928
      %v3186 = vunpack.c.l.b16 %v2929
      %v3187 = vunpack.c.l.b16 %v2930
      %v3188 = vunpack.c.l.b16 %v2931
      %v3189 = vunpack.c.l.b16 %v2932
      %v3190 = vunpack.c.l.b16 %v2933
      %v3191 = vunpack.c.l.b16 %v2934
      %v3192 = vunpack.c.l.b16 %v2935
      %v3193 = vunpack.c.l.b16 %v2936
      %v3194 = vunpack.c.l.b16 %v2937
      %v3195 = vunpack.c.l.b16 %v2938
      %v3196 = vunpack.c.l.b16 %v2939
      %v3197 = vunpack.c.l.b16 %v2940
      %v3198 = vunpack.c.l.b16 %v2941
      %v3199 = vunpack.c.l.b16 %v2942
      %v3200 = vpack.c.b16 %v3073, %v3072
      %v3201 = vpack.c.b16 %v3075, %v3074
      %v3202 = vpack.c.b16 %v3077, %v3076
      %v3203 = vpack.c.b16 %v3079, %v3078
      %v3204 = vpack.c.b16 %v3081, %v3080
      %v3205 = vpack.c.b16 %v3083, %v3082
      %v3206 = vpack.c.b16 %v3085, %v3084
      %v3207 = vpack.c.b16 %v3087, %v3086
      %v3208 = vpack.c.b16 %v3089, %v3088
      %v3209 = vpack.c.b16 %v3091, %v3090
      %v3210 = vpack.c.b16 %v3093, %v3092
      %v3211 = vpack.c.b16 %v3095, %v3094
      %v3212 = vpack.c.b16 %v3097, %v3096
      %v3213 = vpack.c.b16 %v3099, %v3098
      %v3214 = vpack.c.b16 %v3101, %v3100
      %v3215 = vpack.c.b16 %v3103, %v3102
      %v3216 = vpack.c.b16 %v3105, %v3104
      %v3217 = vpack.c.b16 %v3107, %v3106
      %v3218 = vpack.c.b16 %v3109, %v3108
      %v3219 = vpack.c.b16 %v3111, %v3110
      %v3220 = vpack.c.b16 %v3113, %v3112
      %v3221 = vpack.c.b16 %v3115, %v3114
      %v3222 = vpack.c.b16 %v3117, %v3116
      %v3223 = vpack.c.b16 %v3119, %v3118
      %v3224 = vpack.c.b16 %v3121, %v3120
      %v3225 = vpack.c.b16 %v3123, %v3122
      %v3226 = vpack.c.b16 %v3125, %v3124
      %v3227 = vpack.c.b16 %v3127, %v3126
      %v3228 = vpack.c.b16 %v3129, %v3128
      %v3229 = vpack.c.b16 %v3131, %v3130
      %v3230 = vpack.c.b16 %v3133, %v3132
      %v3231 = vpack.c.b16 %v3135, %v3134
      %v3232 = vpack.c.b16 %v3137, %v3136
      %v3233 = vpack.c.b16 %v3139, %v3138
      %v3234 = vpack.c.b16 %v3141, %v3140
      %v3235 = vpack.c.b16 %v3143, %v3142
      %v3236 = vpack.c.b16 %v3145, %v3144
      %v3237 = vpack.c.b16 %v3147, %v3146
      %v3238 = vpack.c.b16 %v3149, %v3148
      %v3239 = vpack.c.b16 %v3151, %v3150
      %v3240 = vpack.c.b16 %v3153, %v3152
      %v3241 = vpack.c.b16 %v3155, %v3154
      %v3242 = vpack.c.b16 %v3157, %v3156
      %v3243 = vpack.c.b16 %v3159, %v3158
      %v3244 = vpack.c.b16 %v3161, %v3160
      %v3245 = vpack.c.b16 %v3163, %v3162
      %v3246 = vpack.c.b16 %v3165, %v3164
      %v3247 = vpack.c.b16 %v3167, %v3166
      %v3248 = vpack.c.b16 %v3169, %v3168
      %v3249 = vpack.c.b16 %v3171, %v3170
      %v3250 = vpack.c.b16 %v3173, %v3172
      %v3251 = vpack.c.b16 %v3175, %v3174
      %v3252 = vpack.c.b16 %v3177, %v3176
      %v3253 = vpack.c.b16 %v3179, %v3178
      %v3254 = vpack.c.b16 %v3181, %v3180
      %v3255 = vpack.c.b16 %v3183, %v3182
      %v3256 = vpack.c.b16 %v3185, %v3184
      %v3257 = vpack.c.b16 %v3187, %v3186
      %v3258 = vpack.c.b16 %v3189, %v3188
      %v3259 = vpack.c.b16 %v3191, %v3190
      %v3260 = vpack.c.b16 %v3193, %v3192
      %v3261 = vpack.c.b16 %v3195, %v3194
      %v3262 = vpack.c.b16 %v3197, %v3196
      %v3263 = vpack.c.b16 %v3199, %v3198
      %3328 = vmatprep.subr.bf16.mxu0 0
      %3329 = vmatpush1.bf16.msra.mxu0 %v3200
      %3330 = vmatprep.subr.bf16.mxu0 0
      %3331 = vmatpush1.bf16.msra.mxu0 %v3201
      %3332 = vmatprep.subr.bf16.mxu0 0
      %3333 = vmatpush1.bf16.msra.mxu0 %v3202
      %3334 = vmatprep.subr.bf16.mxu0 0
      %3335 = vmatpush1.bf16.msra.mxu0 %v3203
      %3336 = vmatprep.subr.bf16.mxu0 0
      %3337 = vmatpush1.bf16.msra.mxu0 %v3204
      %3338 = vmatprep.subr.bf16.mxu0 0
      %3339 = vmatpush1.bf16.msra.mxu0 %v3205
      %3340 = vmatprep.subr.bf16.mxu0 0
      %3341 = vmatpush1.bf16.msra.mxu0 %v3206
      %3342 = vmatprep.subr.bf16.mxu0 0
      %3343 = vmatpush1.bf16.msra.mxu0 %v3207
      %3344 = vmatprep.subr.bf16.mxu0 0
      %3345 = vmatpush1.bf16.msra.mxu0 %v3208
      %3346 = vmatprep.subr.bf16.mxu0 0
      %3347 = vmatpush1.bf16.msra.mxu0 %v3209
      %3348 = vmatprep.subr.bf16.mxu0 0
      %3349 = vmatpush1.bf16.msra.mxu0 %v3210
      %3350 = vmatprep.subr.bf16.mxu0 0
      %3351 = vmatpush1.bf16.msra.mxu0 %v3211
      %3352 = vmatprep.subr.bf16.mxu0 0
      %3353 = vmatpush1.bf16.msra.mxu0 %v3212
      %3354 = vmatprep.subr.bf16.mxu0 0
      %3355 = vmatpush1.bf16.msra.mxu0 %v3213
      %3356 = vmatprep.subr.bf16.mxu0 0
      %3357 = vmatpush1.bf16.msra.mxu0 %v3214
      %3358 = vmatprep.subr.bf16.mxu0 0
      %3359 = vmatpush1.bf16.msra.mxu0 %v3215
      %3360 = vmatprep.mubr.bf16.mxu0 %v2808
      %3361 = vmatmul.mubr.bf16.gmra.mrb[0].mxu0 %v2807
      %v3362 = vpop.f32.mrb[0].mxu0
      %v3363 = vadd.f32 %v2943, %v3362
      %v3364 = vpop.f32.mrb[0].mxu0
      %v3365 = vpop.f32.mrb[0].mxu0
      %v3366 = vpop.f32.mrb[0].mxu0
      %3367 = vdwg.mxu0
      %3368 = vmatprep.subr.bf16.mxu0 0
      %3369 = vmatpush1.bf16.msra.mxu0 %v3216
      %3370 = vmatprep.subr.bf16.mxu0 0
      %3371 = vmatpush1.bf16.msra.mxu0 %v3217
      %3372 = vmatprep.subr.bf16.mxu0 0
      %3373 = vmatpush1.bf16.msra.mxu0 %v3218
      %3374 = vmatprep.subr.bf16.mxu0 0
      %3375 = vmatpush1.bf16.msra.mxu0 %v3219
      %3376 = vmatprep.subr.bf16.mxu0 0
      %3377 = vmatpush1.bf16.msra.mxu0 %v3220
      %3378 = vmatprep.subr.bf16.mxu0 0
      %3379 = vmatpush1.bf16.msra.mxu0 %v3221
      %3380 = vmatprep.subr.bf16.mxu0 0
      %3381 = vmatpush1.bf16.msra.mxu0 %v3222
      %3382 = vmatprep.subr.bf16.mxu0 0
      %3383 = vmatpush1.bf16.msra.mxu0 %v3223
      %3384 = vmatprep.subr.bf16.mxu0 0
      %3385 = vmatpush1.bf16.msra.mxu0 %v3224
      %3386 = vmatprep.subr.bf16.mxu0 0
      %3387 = vmatpush1.bf16.msra.mxu0 %v3225
      %3388 = vmatprep.subr.bf16.mxu0 0
      %3389 = vmatpush1.bf16.msra.mxu0 %v3226
      %3390 = vmatprep.subr.bf16.mxu0 0
      %3391 = vmatpush1.bf16.msra.mxu0 %v3227
      %3392 = vmatprep.subr.bf16.mxu0 0
      %3393 = vmatpush1.bf16.msra.mxu0 %v3228
      %3394 = vmatprep.subr.bf16.mxu0 0
      %3395 = vmatpush1.bf16.msra.mxu0 %v3229
      %3396 = vmatprep.subr.bf16.mxu0 0
      %3397 = vmatpush1.bf16.msra.mxu0 %v3230
      %3398 = vmatprep.subr.bf16.mxu0 0
      %3399 = vmatpush1.bf16.msra.mxu0 %v3231
      %3400 = vmatprep.mubr.bf16.mxu0 %v2810
      %3401 = vmatmul.mubr.bf16.gmra.mrb[0].mxu0 %v2809
      %v3402 = vpop.f32.mrb[0].mxu0
      %v3403 = vadd.f32 %v3363, %v3402
      %v3404 = vpop.f32.mrb[0].mxu0
      %v3405 = vpop.f32.mrb[0].mxu0
      %v3406 = vpop.f32.mrb[0].mxu0
      %3407 = vdwg.mxu0
      %3408 = vmatprep.subr.bf16.mxu0 0
      %3409 = vmatpush1.bf16.msra.mxu0 %v3232
      %3410 = vmatprep.subr.bf16.mxu0 0
      %3411 = vmatpush1.bf16.msra.mxu0 %v3233
      %3412 = vmatprep.subr.bf16.mxu0 0
      %3413 = vmatpush1.bf16.msra.mxu0 %v3234
      %3414 = vmatprep.subr.bf16.mxu0 0
      %3415 = vmatpush1.bf16.msra.mxu0 %v3235
      %3416 = vmatprep.subr.bf16.mxu0 0
      %3417 = vmatpush1.bf16.msra.mxu0 %v3236
      %3418 = vmatprep.subr.bf16.mxu0 0
      %3419 = vmatpush1.bf16.msra.mxu0 %v3237
      %3420 = vmatprep.subr.bf16.mxu0 0
      %3421 = vmatpush1.bf16.msra.mxu0 %v3238
      %3422 = vmatprep.subr.bf16.mxu0 0
      %3423 = vmatpush1.bf16.msra.mxu0 %v3239
      %3424 = vmatprep.subr.bf16.mxu0 0
      %3425 = vmatpush1.bf16.msra.mxu0 %v3240
      %3426 = vmatprep.subr.bf16.mxu0 0
      %3427 = vmatpush1.bf16.msra.mxu0 %v3241
      %3428 = vmatprep.subr.bf16.mxu0 0
      %3429 = vmatpush1.bf16.msra.mxu0 %v3242
      %3430 = vmatprep.subr.bf16.mxu0 0
      %3431 = vmatpush1.bf16.msra.mxu0 %v3243
      %3432 = vmatprep.subr.bf16.mxu0 0
      %3433 = vmatpush1.bf16.msra.mxu0 %v3244
      %3434 = vmatprep.subr.bf16.mxu0 0
      %3435 = vmatpush1.bf16.msra.mxu0 %v3245
      %3436 = vmatprep.subr.bf16.mxu0 0
      %3437 = vmatpush1.bf16.msra.mxu0 %v3246
      %3438 = vmatprep.subr.bf16.mxu0 0
      %3439 = vmatpush1.bf16.msra.mxu0 %v3247
      %3440 = vmatprep.mubr.bf16.mxu0 %v2812
      %3441 = vmatmul.mubr.bf16.gmra.mrb[0].mxu0 %v2811
      %v3442 = vpop.f32.mrb[0].mxu0
      %v3443 = vadd.f32 %v3403, %v3442
      %v3444 = vpop.f32.mrb[0].mxu0
      %v3445 = vpop.f32.mrb[0].mxu0
      %v3446 = vpop.f32.mrb[0].mxu0
      %3447 = vdwg.mxu0
      %3448 = vmatprep.subr.bf16.mxu0 0
      %3449 = vmatpush1.bf16.msra.mxu0 %v3248
      %3450 = vmatprep.subr.bf16.mxu0 0
      %3451 = vmatpush1.bf16.msra.mxu0 %v3249
      %3452 = vmatprep.subr.bf16.mxu0 0
      %3453 = vmatpush1.bf16.msra.mxu0 %v3250
      %3454 = vmatprep.subr.bf16.mxu0 0
      %3455 = vmatpush1.bf16.msra.mxu0 %v3251
      %3456 = vmatprep.subr.bf16.mxu0 0
      %3457 = vmatpush1.bf16.msra.mxu0 %v3252
      %3458 = vmatprep.subr.bf16.mxu0 0
      %3459 = vmatpush1.bf16.msra.mxu0 %v3253
      %3460 = vmatprep.subr.bf16.mxu0 0
      %3461 = vmatpush1.bf16.msra.mxu0 %v3254
      %3462 = vmatprep.subr.bf16.mxu0 0
      %3463 = vmatpush1.bf16.msra.mxu0 %v3255
      %3464 = vmatprep.subr.bf16.mxu0 0
      %3465 = vmatpush1.bf16.msra.mxu0 %v3256
      %3466 = vmatprep.subr.bf16.mxu0 0
      %3467 = vmatpush1.bf16.msra.mxu0 %v3257
      %3468 = vmatprep.subr.bf16.mxu0 0
      %3469 = vmatpush1.bf16.msra.mxu0 %v3258
      %3470 = vmatprep.subr.bf16.mxu0 0
      %3471 = vmatpush1.bf16.msra.mxu0 %v3259
      %3472 = vmatprep.subr.bf16.mxu0 0
      %3473 = vmatpush1.bf16.msra.mxu0 %v3260
      %3474 = vmatprep.subr.bf16.mxu0 0
      %3475 = vmatpush1.bf16.msra.mxu0 %v3261
      %3476 = vmatprep.subr.bf16.mxu0 0
      %3477 = vmatpush1.bf16.msra.mxu0 %v3262
      %3478 = vmatprep.subr.bf16.mxu0 0
      %3479 = vmatpush1.bf16.msra.mxu0 %v3263
      %3480 = vmatprep.mubr.bf16.mxu0 %v2814
      %3481 = vmatmul.mubr.bf16.gmra.mrb[0].mxu0 %v2813
      %v3482 = vpop.f32.mrb[0].mxu0
      %v3483 = vadd.f32 %v3443, %v3482
      %v3484 = vpop.f32.mrb[0].mxu0
      %v3485 = vpop.f32.mrb[0].mxu0
      %v3486 = vpop.f32.mrb[0].mxu0
      %3487 = vdwg.mxu0
      %v3488 = vmax.f32 %v3483, 0.0
      %v3489 = vld [vmem:[%s7] sm:$0x1]
      %v3490 = vmul.f32 %v3488, %v3489
      %vm3491 = vcmask 1040384
      %v3492 = vsel %vm3491, %v3490, 0.0
      %3493 = vadd.xlane.f32.xlu0 %v3492
      %v3494 = vpop.xlane.xlu0 %3493
      %v3495 = vld [vmem:[#allocation3] sm:$0x1]
      %v3496 = vadd.f32 %v3494, %v3495
      %v3497 = vxor.u32 %v3496, 2147483648
      %v3498 = vmul.f32 %v3497, 1.442695
      %v3499 = vpow.pop %v3498
      %v3500 = vadd.f32 %v3499, 1.0
      %v3501 = vrcp.pop %v3500
      %v3502 = vmul.f32 1.0, %v3501
      %vm3503 = vcmask 0
      %3504 = vst.msk [vmem:[%s330] sm:$0x1] %vm3503, %v3502
      %p3505 = scmp.lt.s32.totalorder %s22, 1
      %s3506 = scalar_select %p3505, %s22, 1
      %s3507 = scalar_lea.vmem %s9, %s3506
      // Predicated region
      $region57: #{eegcnn_forward.1} parent=55 // pred_check
        %p3508 = pneg %p234
      $region58: #{eegcnn_forward.1} parent=55 // pred_check_branch
        %3510 = sbr.rel (%p3508) target = $region60
      $region59: #{eegcnn_forward.1} parent=55 // pred_region
        _
      $region60: #{eegcnn_forward.1} parent=55 // pred_fallthru
        _
    $region56: #{eegcnn_forward.1} parent=5 // pred_fallthru
      _
    %p3511 = scmp.le.s32.totalorder 2, %s17
    // Predicated region
    $region61: #{eegcnn_forward.1} parent=5 // pred_check
      %p3512 = pneg %p3511
    $region62: #{eegcnn_forward.1} parent=5 // pred_check_branch
      %3514 = sbr.rel (%p3512) target = $region64
    $region63: #{eegcnn_forward.1} parent=5 // pred_region
      %s3515 = ssub.s32 %s17, 2
      // Predicated region
      $region65: #{eegcnn_forward.1} parent=63 // pred_check
        %p3516 = pneg %p240
      $region66: #{eegcnn_forward.1} parent=63 // pred_check_branch
        %3518 = sbr.rel (%p3516) target = $region68
      $region67: #{eegcnn_forward.1} parent=63 // pred_region
        %p3519 = scmp.lt.s32.totalorder %s23, 1
        %s3520 = scalar_select %p3519, %s23, 1
        %s3521 = scalar_lea.vmem %s9, %s3520
      $region68: #{eegcnn_forward.1} parent=63 // pred_fallthru
        _
    $region64: #{eegcnn_forward.1} parent=5 // pred_fallthru
      _
  $region6: #{eegcnn_forward.1} parent=0 // loop_footer
    %s21 = sadd.s32 1, %s17
  $region7: #{eegcnn_forward.1} parent=0 // loop_footer_branch
    %16 = sbr.rel target = $region3
  $region8: #{eegcnn_forward.1} parent=0 // loop_exit
    _

</llo_original>
